<compile_context>
chip_gen: v7x
topology: tpu7x:2x2x1
jax: 0.10.0
libtpu: 0.0.40
codegen_flags: <defaults>
</compile_context>

<pallas_src>
import re
from functools import partial

import numpy as np
import jax
import jax.numpy as jnp
from jax import lax
from jax.experimental import pallas as pl
from jax.experimental.pallas import tpu as pltpu


LANE = 128
SUBLANE = 8


def _round_up(x, m):
    return ((x + m - 1) // m) * m


def _tpu_generation():
    """Best-effort TPU generation from device_kind (0 if unknown)."""
    try:
        kind = jax.devices()[0].device_kind
    except Exception:
        return 0
    m = re.search(r"(\d+)", kind)
    return int(m.group(1)) if m else 0


def _sigmoid(x):
    # One EUP push (tanh) instead of exp + reciprocal.
    return 0.5 * jnp.tanh(0.5 * x) + 0.5


# ----------------------------------------------------------------------------
# Pallas kernel: one LSTM layer, one (batch_block, time_block) grid cell.
# h/c live in VMEM scratch and carry across the (sequential) time grid axis.
# ----------------------------------------------------------------------------
def lstm_layer_kernel(x_ref, w_ih_ref, w_hh_ref, b_ref,
                      out_ref, h_out_ref, c_out_ref,
                      h_sc, c_sc, gx_sc,
                      *, hidden_pad, t_real, time_mask, unroll):
    ti = pl.program_id(1)                      # time-block index (inner axis)
    tc, tb, din = x_ref.shape
    H = hidden_pad

    # h0 = c0 = 0 (PyTorch default) at the start of every batch block.
    @pl.when(ti == 0)
    def _init():
        h_sc[...] = jnp.zeros_like(h_sc)
        c_sc[...] = jnp.zeros_like(c_sc)

    # ---- batched input projection for the whole time tile (bias folded) ----
    # One (tc*tb, Din) x (Din, 4H) MXU matmul (bf16 in, f32 accumulate).
    x2d = x_ref[...].reshape(tc * tb, din)
    gx = (jnp.dot(x2d, w_ih_ref[...], preferred_element_type=jnp.float32)
          + b_ref[...])
    gx_sc[...] = gx.reshape(tc, tb, 4 * H)

    # ---- sequential recurrence over the tile (only the h @ W_hh matmul) ----
    def step(t, carry):
        h, c = carry
        gates = gx_sc[t] + jnp.dot(h.astype(w_hh_ref.dtype), w_hh_ref[...],
                                   preferred_element_type=jnp.float32)
        # Lane-aligned gate slices (H is a multiple of 128).
        i = _sigmoid(gates[:, 0 * H:1 * H])
        f = _sigmoid(gates[:, 1 * H:2 * H])
        g = jnp.tanh(gates[:, 2 * H:3 * H])
        o = _sigmoid(gates[:, 3 * H:4 * H])
        c_new = f * c + i * g
        h_new = o * jnp.tanh(c_new)
        if time_mask:
            # Padded (beyond t_real) timesteps must not advance the state.
            valid = (ti * tc + t) < t_real
            h_new = jnp.where(valid, h_new, h)
            c_new = jnp.where(valid, c_new, c)
        out_ref[t] = h_new.astype(out_ref.dtype)
        return (h_new, c_new)

    h_fin, c_fin = lax.fori_loop(0, tc, step, (h_sc[...], c_sc[...]),
                                 unroll=unroll)
    h_sc[...] = h_fin
    c_sc[...] = c_fin

    # Final h/c of this batch block (output block is resident across ti).
    @pl.when(ti == pl.num_programs(1) - 1)
    def _final():
        h_out_ref[...] = h_sc[...]
        c_out_ref[...] = c_sc[...]


def lstm_layer_pallas(x, w_ih_t, w_hh_t, b, *, hidden_pad, t_real,
                      time_block=None, batch_block=None):
    """Run one LSTM layer.

    x       : (T_in, B_pad, Din_pad), already zero-padded (B_pad % 8 == 0,
              Din_pad % 128 == 0); T_in >= t_real (extra rows are padding).
    w_ih_t  : (Din_pad, 4*H_pad) (pre-transposed, gate-padded, bf16)
    w_hh_t  : (H_pad,  4*H_pad) (bf16)
    b       : (1, 4*H_pad) f32 (b_ih + b_hh, gate-padded)
    """
    T_in, B_pad, Din_pad = x.shape
    H_pad = hidden_pad
    gen = _tpu_generation()
    n_tc = 2 if gen >= 7 else 1

    # ---- time tile: big tiles amortize per-grid-step overhead; pad + mask ----
    target = 16 if gen >= 7 else 32
    tc = target if time_block is None else time_block
    tc = max(1, min(tc, T_in))
    T_pad = _round_up(T_in, tc)
    if T_pad != T_in:
        x = jnp.concatenate(
            [x, jnp.zeros((T_pad - T_in, B_pad, Din_pad), x.dtype)], axis=0)

    # ---- batch tile: engage the 2nd TensorCore on v7x when possible ----
    if batch_block is not None:
        tb = batch_block
    elif n_tc >= 2 and B_pad % (2 * SUBLANE) == 0:
        tb = B_pad // 2
    else:
        tb = B_pad
    assert B_pad % tb == 0 and tb % SUBLANE == 0

    grid = (B_pad // tb, T_pad // tc)

    # Unroll scaled with vreg pressure.
    unroll_base = 8 if H_pad <= 256 else (4 if H_pad <= 512 else 2)
    unroll = True if tc <= unroll_base else unroll_base

    kernel = partial(lstm_layer_kernel, hidden_pad=H_pad, t_real=t_real,
                     time_mask=(T_pad > t_real), unroll=unroll)

    # ---- exact VMEM budget + headroom, capped below physical VMEM ----
    isz_x = jnp.dtype(x.dtype).itemsize
    isz_w = jnp.dtype(w_ih_t.dtype).itemsize
    vmem_bytes = (
        2 * tc * tb * Din_pad * isz_x            # x tiles (double buffered)
        + 2 * tc * tb * H_pad * 2                # out tiles (bf16, double buf)
        + (Din_pad + H_pad) * 4 * H_pad * isz_w  # weights (single buffered)
        + 4 * H_pad * 4                          # bias
        + 2 * 2 * tb * H_pad * 4                 # resident h/c output blocks
        + 2 * tb * H_pad * 4                     # h/c scratch
        + tc * tb * 4 * H_pad * 4                # gx scratch (f32)
    )
    headroom = 8 * 1024 * 1024
    cap_mib = 56 if (gen >= 7 or gen == 0) else 100
    vmem_limit = int(min(cap_mib * 1024 * 1024,
                         max(vmem_bytes + headroom, 16 * 1024 * 1024)))

    out_shape = (
        jax.ShapeDtypeStruct((T_pad, B_pad, H_pad), jnp.bfloat16),
        jax.ShapeDtypeStruct((B_pad, H_pad), jnp.float32),
        jax.ShapeDtypeStruct((B_pad, H_pad), jnp.float32),
    )
    scratch_shapes = [
        pltpu.VMEM((tb, H_pad), jnp.float32),          # h state
        pltpu.VMEM((tb, H_pad), jnp.float32),          # c state
        pltpu.VMEM((tc, tb, 4 * H_pad), jnp.float32),  # gates_x tile
    ]
    out_specs = [
        pl.BlockSpec((tc, tb, H_pad), lambda bi, ti: (ti, bi, 0)),
        pl.BlockSpec((tb, H_pad), lambda bi, ti: (bi, 0)),
        pl.BlockSpec((tb, H_pad), lambda bi, ti: (bi, 0)),
    ]

    def _run(single_buffer_weights):
        if single_buffer_weights:
            def wspec(shape):
                return pl.BlockSpec(shape, lambda bi, ti: (0, 0),
                                    pipeline_mode=pl.Buffered(1))
        else:
            def wspec(shape):
                return pl.BlockSpec(shape, lambda bi, ti: (0, 0))
        in_specs = [
            pl.BlockSpec((tc, tb, Din_pad), lambda bi, ti: (ti, bi, 0)),
            wspec((Din_pad, 4 * H_pad)),
            wspec((H_pad, 4 * H_pad)),
            wspec((1, 4 * H_pad)),
        ]
        return pl.pallas_call(
            kernel,
            out_shape=out_shape,
            grid_spec=pltpu.PrefetchScalarGridSpec(
                num_scalar_prefetch=0,
                grid=grid,
                in_specs=in_specs,
                out_specs=out_specs,
                scratch_shapes=scratch_shapes,
            ),
            compiler_params=pltpu.CompilerParams(
                dimension_semantics=("parallel", "arbitrary"),
                vmem_limit_bytes=vmem_limit,
            ),
        )(x, w_ih_t, w_hh_t, b)

    try:
        out, h_n, c_n = _run(single_buffer_weights=True)
    except Exception:
        # Fallback if this jax build rejects pipeline_mode / Buffered(1).
        out, h_n, c_n = _run(single_buffer_weights=False)
    return out, h_n, c_n


# ----------------------------------------------------------------------------
# Encoder module (mirrors the PyTorch Encoder, unidirectional, dropout=0.0)
# ----------------------------------------------------------------------------
class EncoderPallas:
    def __init__(self, input_dim, hidden_dim, n_layers, dropout=0.0,
                 is_bidirectional=False, key=None, time_block=None,
                 param_dtype=jnp.bfloat16):
        assert not is_bidirectional, "bidirectional not implemented here"
        assert dropout == 0.0, "dropout handled as identity (eval mode)"
        self.input_dim = input_dim
        self.hidden_dim = hidden_dim
        self.n_layers = n_layers
        self.time_block = time_block
        self.param_dtype = param_dtype
        self.h_pad = _round_up(hidden_dim, LANE)
        self.din_pad0 = _round_up(input_dim, LANE)

        if key is None:
            key = jax.random.PRNGKey(0)
        k = 1.0 / np.sqrt(hidden_dim)

        self.raw_params = []   # PyTorch-layout params (for reference check)
        self.layers = []       # pre-transposed / padded kernel params
        din = input_dim
        for l in range(n_layers):
            key, k1, k2, k3, k4 = jax.random.split(key, 5)
            w_ih = jax.random.uniform(k1, (4 * hidden_dim, din), jnp.float32, -k, k)
            w_hh = jax.random.uniform(k2, (4 * hidden_dim, hidden_dim), jnp.float32, -k, k)
            b_ih = jax.random.uniform(k3, (4 * hidden_dim,), jnp.float32, -k, k)
            b_hh = jax.random.uniform(k4, (4 * hidden_dim,), jnp.float32, -k, k)
            self.raw_params.append((w_ih, w_hh, b_ih, b_hh))

            din_pad = self.din_pad0 if l == 0 else self.h_pad
            self.layers.append(self._pack(w_ih, w_hh, b_ih, b_hh, din, din_pad))
            din = hidden_dim

    def _pack(self, w_ih, w_hh, b_ih, b_hh, din, din_pad):
        """Pre-transpose weights and pad each gate block to H_pad lanes so the
        gate slices inside the kernel are lane-aligned.  Padding is zeros, so
        padded h/c stay exactly 0 through the recurrence.  Weights are stored
        bf16 (f32 accumulation in the kernel); the combined bias stays f32."""
        H, Hp = self.hidden_dim, self.h_pad
        w_ih_t = jnp.zeros((din_pad, 4 * Hp), jnp.float32)
        w_hh_t = jnp.zeros((Hp, 4 * Hp), jnp.float32)
        b = jnp.zeros((1, 4 * Hp), jnp.float32)
        bsum = b_ih + b_hh
        for g in range(4):
            w_ih_t = w_ih_t.at[:din, g * Hp:g * Hp + H].set(w_ih[g * H:(g + 1) * H, :].T)
            w_hh_t = w_hh_t.at[:H, g * Hp:g * Hp + H].set(w_hh[g * H:(g + 1) * H, :].T)
            b = b.at[0, g * Hp:g * Hp + H].set(bsum[g * H:(g + 1) * H])
        return (w_ih_t.astype(self.param_dtype),
                w_hh_t.astype(self.param_dtype),
                b)

    def __call__(self, source):
        # source: (T, B, input_dim).  nn.Dropout(p=0.0) -> identity.
        T, B, Din = source.shape
        assert Din == self.input_dim
        B_pad = _round_up(B, SUBLANE)

        # Pad once; inter-layer activations stay in padded bf16 layout.
        x = jnp.zeros((T, B_pad, self.din_pad0), self.param_dtype)
        x = x.at[:, :B, :Din].set(source.astype(self.param_dtype))

        hs, cs = [], []
        for (w_ih_t, w_hh_t, b) in self.layers:
            x, h_n, c_n = lstm_layer_pallas(
                x, w_ih_t, w_hh_t, b,
                hidden_pad=self.h_pad, t_real=T, time_block=self.time_block)
            hs.append(h_n[:B, :self.hidden_dim])
            cs.append(c_n[:B, :self.hidden_dim])

        output = x[:T, :B, :self.hidden_dim].astype(jnp.float32)  # (T, B, H)
        hidden = jnp.stack(hs, axis=0)                            # (L, B, H)
        cell = jnp.stack(cs, axis=0)                              # (L, B, H)
        return output, hidden, cell


# ----------------------------------------------------------------------------
# Pure-JAX reference LSTM (for correctness check).  `quant` emulates the
# kernel's bf16 quantization points so the comparison isolates kernel bugs.
# ----------------------------------------------------------------------------
def lstm_layer_ref(x, w_ih, w_hh, b_ih, b_hh, quant=None):
    r = quant if quant is not None else (lambda v: v)
    w_ih = r(w_ih)
    w_hh = r(w_hh)
    T, B, _ = x.shape
    H = w_hh.shape[1]
    h0 = jnp.zeros((B, H), jnp.float32)
    c0 = jnp.zeros((B, H), jnp.float32)

    def step(carry, x_t):
        h, c = carry
        gates = x_t @ w_ih.T + r(h) @ w_hh.T + b_ih + b_hh
        i = jax.nn.sigmoid(gates[:, 0 * H:1 * H])
        f = jax.nn.sigmoid(gates[:, 1 * H:2 * H])
        g = jnp.tanh(gates[:, 2 * H:3 * H])
        o = jax.nn.sigmoid(gates[:, 3 * H:4 * H])
        c = f * c + i * g
        h = o * jnp.tanh(c)
        return (h, c), r(h)     # inter-layer activation is bf16 in the kernel

    (h_n, c_n), out = lax.scan(step, (h0, c0), x)
    return out, h_n, c_n


if __name__ == "__main__":
    seq_len, batch, input_dim, hidden_dim, n_layers = 10, 4, 16, 32, 2

    key = jax.random.PRNGKey(0)
    k_src, k_par = jax.random.split(key)
    source = jax.random.normal(k_src, (seq_len, batch, input_dim), jnp.float32)

    # time_block=4 -> 3 time tiles (last one partially padded/masked),
    # exercising the cross-tile state carry and the ragged-T handling.
    enc = EncoderPallas(input_dim, hidden_dim, n_layers,
                        dropout=0.0, is_bidirectional=False,
                        key=k_par, time_block=4)

    output, hidden, cell = enc(source)
    jax.block_until_ready((output, hidden, cell))

    # Reference with the same bf16 quantization points as the kernel.
    quant = lambda v: v.astype(jnp.bfloat16).astype(jnp.float32)
    x = quant(source)
    hs, cs = [], []
    for p in enc.raw_params:
        x, h_n, c_n = lstm_layer_ref(x, *p, quant=quant)
        hs.append(h_n)
        cs.append(c_n)
    out_ref = x
    hid_ref = jnp.stack(hs, 0)
    cel_ref = jnp.stack(cs, 0)

    np.testing.assert_allclose(np.asarray(output), np.asarray(out_ref),
                               rtol=1e-2, atol=1e-2)
    np.testing.assert_allclose(np.asarray(hidden), np.asarray(hid_ref),
                               rtol=1e-2, atol=1e-2)
    np.testing.assert_allclose(np.asarray(cell), np.asarray(cel_ref),
                               rtol=1e-2, atol=1e-2)

    assert output.shape == (seq_len, batch, hidden_dim)
    assert hidden.shape == (n_layers, batch, hidden_dim)
    assert cell.shape == (n_layers, batch, hidden_dim)

    print("KERNEL_OK")
</pallas_src>

<mosaic_0001>
module attributes {stable_mosaic.version = 11 : i64} {
  func.func @lstm_layer_kernel(%arg0: i32, %arg1: i32, %arg2: memref<4x8x128xbf16, #tpu.memory_space<vmem>>, %arg3: memref<128x512xbf16, #tpu.memory_space<vmem>>, %arg4: memref<128x512xbf16, #tpu.memory_space<vmem>>, %arg5: memref<1x512xf32, #tpu.memory_space<vmem>>, %arg6: memref<4x8x128xbf16, #tpu.memory_space<vmem>>, %arg7: memref<8x128xf32, #tpu.memory_space<vmem>>, %arg8: memref<8x128xf32, #tpu.memory_space<vmem>>, %arg9: memref<8x128xf32, #tpu.memory_space<vmem>>, %arg10: memref<8x128xf32, #tpu.memory_space<vmem>>, %arg11: memref<4x8x512xf32, #tpu.memory_space<vmem>>) attributes {dimension_semantics = [#tpu.dimension_semantics<parallel>, #tpu.dimension_semantics<arbitrary>], iteration_bounds = array<i64: 1, 3>, scalar_prefetch = 0 : i64, scratch_operands = 3 : i64, tpu.core_type = #tpu.core_type<tc>, window_params = [{transform_indices = @transform_0, window_bounds = array<i64: 4, 8, 128>}, {pipeline_mode = #tpu.pipeline_mode<synchronous>, transform_indices = @transform_1, window_bounds = array<i64: 128, 512>}, {pipeline_mode = #tpu.pipeline_mode<synchronous>, transform_indices = @transform_2, window_bounds = array<i64: 128, 512>}, {pipeline_mode = #tpu.pipeline_mode<synchronous>, transform_indices = @transform_3, window_bounds = array<i64: 1, 512>}, {transform_indices = @transform_4, window_bounds = array<i64: 4, 8, 128>}, {transform_indices = @transform_5, window_bounds = array<i64: 8, 128>}, {transform_indices = @transform_6, window_bounds = array<i64: 8, 128>}]} {
    %c0_i32 = arith.constant 0 : i32
    %0 = arith.cmpi eq, %arg1, %c0_i32 : i32
    %1 = arith.extui %0 : i1 to i32
    %c0_i32_0 = arith.constant 0 : i32
    %2 = arith.cmpi ne, %1, %c0_i32_0 : i32
    scf.if %2 {
      %cst_92 = arith.constant 0.000000e+00 : f32
      %211 = vector.broadcast %cst_92 : f32 to vector<8x128xf32>
      %c0_93 = arith.constant 0 : index
      %c0_94 = arith.constant 0 : index
      %212 = vector.load %arg9[%c0_93, %c0_94] : memref<8x128xf32, #tpu.memory_space<vmem>>, vector<8x128xf32>
      tpu.vector_store %arg9[%c0_93, %c0_94], %211 {strides = array<i32>} : memref<8x128xf32, #tpu.memory_space<vmem>>, vector<8x128xf32>,
      %cst_95 = arith.constant 0.000000e+00 : f32
      %213 = vector.broadcast %cst_95 : f32 to vector<8x128xf32>
      %c0_96 = arith.constant 0 : index
      %c0_97 = arith.constant 0 : index
      %214 = vector.load %arg10[%c0_96, %c0_97] : memref<8x128xf32, #tpu.memory_space<vmem>>, vector<8x128xf32>
      tpu.vector_store %arg10[%c0_96, %c0_97], %213 {strides = array<i32>} : memref<8x128xf32, #tpu.memory_space<vmem>>, vector<8x128xf32>,
    } else {
    }
    %c0 = arith.constant 0 : index
    %c0_1 = arith.constant 0 : index
    %c0_2 = arith.constant 0 : index
    %3 = vector.load %arg2[%c0, %c0_1, %c0_2] : memref<4x8x128xbf16, #tpu.memory_space<vmem>>, vector<4x8x128xbf16>
    %4 = vector.shape_cast %3 : vector<4x8x128xbf16> to vector<32x128xbf16>
    %c0_3 = arith.constant 0 : index
    %c0_4 = arith.constant 0 : index
    %5 = vector.load %arg3[%c0_3, %c0_4] : memref<128x512xbf16, #tpu.memory_space<vmem>>, vector<128x512xbf16>
    %cst = arith.constant dense<0.000000e+00> : vector<32x512xf32>
    %6 = tpu.matmul %4, %5, %cst {dimension_numbers = #tpu.dot_dimension_numbers<[1], [0], [0], [1], [0, 0, 1, 1], [], []>} : vector<32x128xbf16>, vector<128x512xbf16>, vector<32x512xf32> -> vector<32x512xf32>
    %c0_5 = arith.constant 0 : index
    %c0_6 = arith.constant 0 : index
    %7 = vector.load %arg5[%c0_5, %c0_6] : memref<1x512xf32, #tpu.memory_space<vmem>>, vector<1x512xf32>
    %8 = vector.broadcast %7 : vector<1x512xf32> to vector<32x512xf32>
    %9 = arith.addf %6, %8 : vector<32x512xf32>
    %10 = vector.shape_cast %9 : vector<32x512xf32> to vector<4x8x512xf32>
    %c0_7 = arith.constant 0 : index
    %c0_8 = arith.constant 0 : index
    %c0_9 = arith.constant 0 : index
    %11 = vector.load %arg11[%c0_7, %c0_8, %c0_9] : memref<4x8x512xf32, #tpu.memory_space<vmem>>, vector<4x8x512xf32>
    tpu.vector_store %arg11[%c0_7, %c0_8, %c0_9], %10 {strides = array<i32>} : memref<4x8x512xf32, #tpu.memory_space<vmem>>, vector<4x8x512xf32>,
    %c0_10 = arith.constant 0 : index
    %c0_11 = arith.constant 0 : index
    %12 = vector.load %arg9[%c0_10, %c0_11] : memref<8x128xf32, #tpu.memory_space<vmem>>, vector<8x128xf32>
    %c0_12 = arith.constant 0 : index
    %c0_13 = arith.constant 0 : index
    %13 = vector.load %arg10[%c0_12, %c0_13] : memref<8x128xf32, #tpu.memory_space<vmem>>, vector<8x128xf32>
    %c0_i32_14 = arith.constant 0 : i32
    %14 = arith.index_cast %c0_i32_14 : i32 to index
    %c0_15 = arith.constant 0 : index
    %c0_16 = arith.constant 0 : index
    %15 = vector.load %arg11[%14, %c0_15, %c0_16] : memref<4x8x512xf32, #tpu.memory_space<vmem>>, vector<1x8x512xf32>
    %16 = vector.shape_cast %15 : vector<1x8x512xf32> to vector<8x512xf32>
    %17 = arith.truncf %12 : vector<8x128xf32> to vector<8x128xbf16>
    %c0_17 = arith.constant 0 : index
    %c0_18 = arith.constant 0 : index
    %18 = vector.load %arg4[%c0_17, %c0_18] : memref<128x512xbf16, #tpu.memory_space<vmem>>, vector<128x512xbf16>
    %cst_19 = arith.constant dense<0.000000e+00> : vector<8x512xf32>
    %19 = tpu.matmul %17, %18, %cst_19 {dimension_numbers = #tpu.dot_dimension_numbers<[1], [0], [0], [1], [0, 0, 1, 1], [], []>} : vector<8x128xbf16>, vector<128x512xbf16>, vector<8x512xf32> -> vector<8x512xf32>
    %20 = arith.addf %16, %19 : vector<8x512xf32>
    %21 = vector.extract_strided_slice %20 {offsets = [0, 0], sizes = [8, 128], strides = [1, 1]} : vector<8x512xf32> to vector<8x128xf32>
    %cst_20 = arith.constant 5.000000e-01 : f32
    %22 = vector.broadcast %cst_20 : f32 to vector<8x128xf32>
    %23 = arith.mulf %22, %21 : vector<8x128xf32>
    %24 = math.tanh %23 : vector<8x128xf32>
    %cst_21 = arith.constant 5.000000e-01 : f32
    %25 = vector.broadcast %cst_21 : f32 to vector<8x128xf32>
    %26 = arith.mulf %25, %24 : vector<8x128xf32>
    %cst_22 = arith.constant 5.000000e-01 : f32
    %27 = vector.broadcast %cst_22 : f32 to vector<8x128xf32>
    %28 = arith.addf %26, %27 : vector<8x128xf32>
    %29 = vector.extract_strided_slice %20 {offsets = [0, 128], sizes = [8, 128], strides = [1, 1]} : vector<8x512xf32> to vector<8x128xf32>
    %cst_23 = arith.constant 5.000000e-01 : f32
    %30 = vector.broadcast %cst_23 : f32 to vector<8x128xf32>
    %31 = arith.mulf %30, %29 : vector<8x128xf32>
    %32 = math.tanh %31 : vector<8x128xf32>
    %cst_24 = arith.constant 5.000000e-01 : f32
    %33 = vector.broadcast %cst_24 : f32 to vector<8x128xf32>
    %34 = arith.mulf %33, %32 : vector<8x128xf32>
    %cst_25 = arith.constant 5.000000e-01 : f32
    %35 = vector.broadcast %cst_25 : f32 to vector<8x128xf32>
    %36 = arith.addf %34, %35 : vector<8x128xf32>
    %37 = vector.extract_strided_slice %20 {offsets = [0, 256], sizes = [8, 128], strides = [1, 1]} : vector<8x512xf32> to vector<8x128xf32>
    %38 = math.tanh %37 : vector<8x128xf32>
    %39 = vector.extract_strided_slice %20 {offsets = [0, 384], sizes = [8, 128], strides = [1, 1]} : vector<8x512xf32> to vector<8x128xf32>
    %cst_26 = arith.constant 5.000000e-01 : f32
    %40 = vector.broadcast %cst_26 : f32 to vector<8x128xf32>
    %41 = arith.mulf %40, %39 : vector<8x128xf32>
    %42 = math.tanh %41 : vector<8x128xf32>
    %cst_27 = arith.constant 5.000000e-01 : f32
    %43 = vector.broadcast %cst_27 : f32 to vector<8x128xf32>
    %44 = arith.mulf %43, %42 : vector<8x128xf32>
    %cst_28 = arith.constant 5.000000e-01 : f32
    %45 = vector.broadcast %cst_28 : f32 to vector<8x128xf32>
    %46 = arith.addf %44, %45 : vector<8x128xf32>
    %47 = arith.mulf %36, %13 : vector<8x128xf32>
    %48 = arith.mulf %28, %38 : vector<8x128xf32>
    %49 = arith.addf %47, %48 : vector<8x128xf32>
    %50 = math.tanh %49 : vector<8x128xf32>
    %51 = arith.mulf %46, %50 : vector<8x128xf32>
    %c4_i32 = arith.constant 4 : i32
    %52 = arith.muli %arg1, %c4_i32 : i32
    %53 = arith.addi %52, %c0_i32_14 : i32
    %c10_i32 = arith.constant 10 : i32
    %54 = arith.cmpi slt, %53, %c10_i32 : i32
    %55 = arith.select %54, %51, %12 : vector<8x128xf32>
    %56 = arith.select %54, %49, %13 : vector<8x128xf32>
    %57 = arith.truncf %55 : vector<8x128xf32> to vector<8x128xbf16>
    %58 = arith.index_cast %c0_i32_14 : i32 to index
    %c0_29 = arith.constant 0 : index
    %c0_30 = arith.constant 0 : index
    %59 = vector.load %arg6[%58, %c0_29, %c0_30] : memref<4x8x128xbf16, #tpu.memory_space<vmem>>, vector<1x8x128xbf16>
    %60 = vector.shape_cast %59 : vector<1x8x128xbf16> to vector<8x128xbf16>
    %61 = vector.shape_cast %57 : vector<8x128xbf16> to vector<1x8x128xbf16>
    tpu.vector_store %arg6[%58, %c0_29, %c0_30], %61 {strides = array<i32>} : memref<4x8x128xbf16, #tpu.memory_space<vmem>>, vector<1x8x128xbf16>,
    %c1_i32 = arith.constant 1 : i32
    %62 = arith.index_cast %c1_i32 : i32 to index
    %c0_31 = arith.constant 0 : index
    %c0_32 = arith.constant 0 : index
    %63 = vector.load %arg11[%62, %c0_31, %c0_32] : memref<4x8x512xf32, #tpu.memory_space<vmem>>, vector<1x8x512xf32>
    %64 = vector.shape_cast %63 : vector<1x8x512xf32> to vector<8x512xf32>
    %65 = arith.truncf %55 : vector<8x128xf32> to vector<8x128xbf16>
    %c0_33 = arith.constant 0 : index
    %c0_34 = arith.constant 0 : index
    %66 = vector.load %arg4[%c0_33, %c0_34] : memref<128x512xbf16, #tpu.memory_space<vmem>>, vector<128x512xbf16>
    %cst_35 = arith.constant dense<0.000000e+00> : vector<8x512xf32>
    %67 = tpu.matmul %65, %66, %cst_35 {dimension_numbers = #tpu.dot_dimension_numbers<[1], [0], [0], [1], [0, 0, 1, 1], [], []>} : vector<8x128xbf16>, vector<128x512xbf16>, vector<8x512xf32> -> vector<8x512xf32>
    %68 = arith.addf %64, %67 : vector<8x512xf32>
    %69 = vector.extract_strided_slice %68 {offsets = [0, 0], sizes = [8, 128], strides = [1, 1]} : vector<8x512xf32> to vector<8x128xf32>
    %cst_36 = arith.constant 5.000000e-01 : f32
    %70 = vector.broadcast %cst_36 : f32 to vector<8x128xf32>
    %71 = arith.mulf %70, %69 : vector<8x128xf32>
    %72 = math.tanh %71 : vector<8x128xf32>
    %cst_37 = arith.constant 5.000000e-01 : f32
    %73 = vector.broadcast %cst_37 : f32 to vector<8x128xf32>
    %74 = arith.mulf %73, %72 : vector<8x128xf32>
    %cst_38 = arith.constant 5.000000e-01 : f32
    %75 = vector.broadcast %cst_38 : f32 to vector<8x128xf32>
    %76 = arith.addf %74, %75 : vector<8x128xf32>
    %77 = vector.extract_strided_slice %68 {offsets = [0, 128], sizes = [8, 128], strides = [1, 1]} : vector<8x512xf32> to vector<8x128xf32>
    %cst_39 = arith.constant 5.000000e-01 : f32
    %78 = vector.broadcast %cst_39 : f32 to vector<8x128xf32>
    %79 = arith.mulf %78, %77 : vector<8x128xf32>
    %80 = math.tanh %79 : vector<8x128xf32>
    %cst_40 = arith.constant 5.000000e-01 : f32
    %81 = vector.broadcast %cst_40 : f32 to vector<8x128xf32>
    %82 = arith.mulf %81, %80 : vector<8x128xf32>
    %cst_41 = arith.constant 5.000000e-01 : f32
    %83 = vector.broadcast %cst_41 : f32 to vector<8x128xf32>
    %84 = arith.addf %82, %83 : vector<8x128xf32>
    %85 = vector.extract_strided_slice %68 {offsets = [0, 256], sizes = [8, 128], strides = [1, 1]} : vector<8x512xf32> to vector<8x128xf32>
    %86 = math.tanh %85 : vector<8x128xf32>
    %87 = vector.extract_strided_slice %68 {offsets = [0, 384], sizes = [8, 128], strides = [1, 1]} : vector<8x512xf32> to vector<8x128xf32>
    %cst_42 = arith.constant 5.000000e-01 : f32
    %88 = vector.broadcast %cst_42 : f32 to vector<8x128xf32>
    %89 = arith.mulf %88, %87 : vector<8x128xf32>
    %90 = math.tanh %89 : vector<8x128xf32>
    %cst_43 = arith.constant 5.000000e-01 : f32
    %91 = vector.broadcast %cst_43 : f32 to vector<8x128xf32>
    %92 = arith.mulf %91, %90 : vector<8x128xf32>
    %cst_44 = arith.constant 5.000000e-01 : f32
    %93 = vector.broadcast %cst_44 : f32 to vector<8x128xf32>
    %94 = arith.addf %92, %93 : vector<8x128xf32>
    %95 = arith.mulf %84, %56 : vector<8x128xf32>
    %96 = arith.mulf %76, %86 : vector<8x128xf32>
    %97 = arith.addf %95, %96 : vector<8x128xf32>
    %98 = math.tanh %97 : vector<8x128xf32>
    %99 = arith.mulf %94, %98 : vector<8x128xf32>
    %c4_i32_45 = arith.constant 4 : i32
    %100 = arith.muli %arg1, %c4_i32_45 : i32
    %101 = arith.addi %100, %c1_i32 : i32
    %c10_i32_46 = arith.constant 10 : i32
    %102 = arith.cmpi slt, %101, %c10_i32_46 : i32
    %103 = arith.select %102, %99, %55 : vector<8x128xf32>
    %104 = arith.select %102, %97, %56 : vector<8x128xf32>
    %105 = arith.truncf %103 : vector<8x128xf32> to vector<8x128xbf16>
    %106 = arith.index_cast %c1_i32 : i32 to index
    %c0_47 = arith.constant 0 : index
    %c0_48 = arith.constant 0 : index
    %107 = vector.load %arg6[%106, %c0_47, %c0_48] : memref<4x8x128xbf16, #tpu.memory_space<vmem>>, vector<1x8x128xbf16>
    %108 = vector.shape_cast %107 : vector<1x8x128xbf16> to vector<8x128xbf16>
    %109 = vector.shape_cast %105 : vector<8x128xbf16> to vector<1x8x128xbf16>
    tpu.vector_store %arg6[%106, %c0_47, %c0_48], %109 {strides = array<i32>} : memref<4x8x128xbf16, #tpu.memory_space<vmem>>, vector<1x8x128xbf16>,
    %c2_i32 = arith.constant 2 : i32
    %110 = arith.index_cast %c2_i32 : i32 to index
    %c0_49 = arith.constant 0 : index
    %c0_50 = arith.constant 0 : index
    %111 = vector.load %arg11[%110, %c0_49, %c0_50] : memref<4x8x512xf32, #tpu.memory_space<vmem>>, vector<1x8x512xf32>
    %112 = vector.shape_cast %111 : vector<1x8x512xf32> to vector<8x512xf32>
    %113 = arith.truncf %103 : vector<8x128xf32> to vector<8x128xbf16>
    %c0_51 = arith.constant 0 : index
    %c0_52 = arith.constant 0 : index
    %114 = vector.load %arg4[%c0_51, %c0_52] : memref<128x512xbf16, #tpu.memory_space<vmem>>, vector<128x512xbf16>
    %cst_53 = arith.constant dense<0.000000e+00> : vector<8x512xf32>
    %115 = tpu.matmul %113, %114, %cst_53 {dimension_numbers = #tpu.dot_dimension_numbers<[1], [0], [0], [1], [0, 0, 1, 1], [], []>} : vector<8x128xbf16>, vector<128x512xbf16>, vector<8x512xf32> -> vector<8x512xf32>
    %116 = arith.addf %112, %115 : vector<8x512xf32>
    %117 = vector.extract_strided_slice %116 {offsets = [0, 0], sizes = [8, 128], strides = [1, 1]} : vector<8x512xf32> to vector<8x128xf32>
    %cst_54 = arith.constant 5.000000e-01 : f32
    %118 = vector.broadcast %cst_54 : f32 to vector<8x128xf32>
    %119 = arith.mulf %118, %117 : vector<8x128xf32>
    %120 = math.tanh %119 : vector<8x128xf32>
    %cst_55 = arith.constant 5.000000e-01 : f32
    %121 = vector.broadcast %cst_55 : f32 to vector<8x128xf32>
    %122 = arith.mulf %121, %120 : vector<8x128xf32>
    %cst_56 = arith.constant 5.000000e-01 : f32
    %123 = vector.broadcast %cst_56 : f32 to vector<8x128xf32>
    %124 = arith.addf %122, %123 : vector<8x128xf32>
    %125 = vector.extract_strided_slice %116 {offsets = [0, 128], sizes = [8, 128], strides = [1, 1]} : vector<8x512xf32> to vector<8x128xf32>
    %cst_57 = arith.constant 5.000000e-01 : f32
    %126 = vector.broadcast %cst_57 : f32 to vector<8x128xf32>
    %127 = arith.mulf %126, %125 : vector<8x128xf32>
    %128 = math.tanh %127 : vector<8x128xf32>
    %cst_58 = arith.constant 5.000000e-01 : f32
    %129 = vector.broadcast %cst_58 : f32 to vector<8x128xf32>
    %130 = arith.mulf %129, %128 : vector<8x128xf32>
    %cst_59 = arith.constant 5.000000e-01 : f32
    %131 = vector.broadcast %cst_59 : f32 to vector<8x128xf32>
    %132 = arith.addf %130, %131 : vector<8x128xf32>
    %133 = vector.extract_strided_slice %116 {offsets = [0, 256], sizes = [8, 128], strides = [1, 1]} : vector<8x512xf32> to vector<8x128xf32>
    %134 = math.tanh %133 : vector<8x128xf32>
    %135 = vector.extract_strided_slice %116 {offsets = [0, 384], sizes = [8, 128], strides = [1, 1]} : vector<8x512xf32> to vector<8x128xf32>
    %cst_60 = arith.constant 5.000000e-01 : f32
    %136 = vector.broadcast %cst_60 : f32 to vector<8x128xf32>
    %137 = arith.mulf %136, %135 : vector<8x128xf32>
    %138 = math.tanh %137 : vector<8x128xf32>
    %cst_61 = arith.constant 5.000000e-01 : f32
    %139 = vector.broadcast %cst_61 : f32 to vector<8x128xf32>
    %140 = arith.mulf %139, %138 : vector<8x128xf32>
    %cst_62 = arith.constant 5.000000e-01 : f32
    %141 = vector.broadcast %cst_62 : f32 to vector<8x128xf32>
    %142 = arith.addf %140, %141 : vector<8x128xf32>
    %143 = arith.mulf %132, %104 : vector<8x128xf32>
    %144 = arith.mulf %124, %134 : vector<8x128xf32>
    %145 = arith.addf %143, %144 : vector<8x128xf32>
    %146 = math.tanh %145 : vector<8x128xf32>
    %147 = arith.mulf %142, %146 : vector<8x128xf32>
    %c4_i32_63 = arith.constant 4 : i32
    %148 = arith.muli %arg1, %c4_i32_63 : i32
    %149 = arith.addi %148, %c2_i32 : i32
    %c10_i32_64 = arith.constant 10 : i32
    %150 = arith.cmpi slt, %149, %c10_i32_64 : i32
    %151 = arith.select %150, %147, %103 : vector<8x128xf32>
    %152 = arith.select %150, %145, %104 : vector<8x128xf32>
    %153 = arith.truncf %151 : vector<8x128xf32> to vector<8x128xbf16>
    %154 = arith.index_cast %c2_i32 : i32 to index
    %c0_65 = arith.constant 0 : index
    %c0_66 = arith.constant 0 : index
    %155 = vector.load %arg6[%154, %c0_65, %c0_66] : memref<4x8x128xbf16, #tpu.memory_space<vmem>>, vector<1x8x128xbf16>
    %156 = vector.shape_cast %155 : vector<1x8x128xbf16> to vector<8x128xbf16>
    %157 = vector.shape_cast %153 : vector<8x128xbf16> to vector<1x8x128xbf16>
    tpu.vector_store %arg6[%154, %c0_65, %c0_66], %157 {strides = array<i32>} : memref<4x8x128xbf16, #tpu.memory_space<vmem>>, vector<1x8x128xbf16>,
    %c3_i32 = arith.constant 3 : i32
    %158 = arith.index_cast %c3_i32 : i32 to index
    %c0_67 = arith.constant 0 : index
    %c0_68 = arith.constant 0 : index
    %159 = vector.load %arg11[%158, %c0_67, %c0_68] : memref<4x8x512xf32, #tpu.memory_space<vmem>>, vector<1x8x512xf32>
    %160 = vector.shape_cast %159 : vector<1x8x512xf32> to vector<8x512xf32>
    %161 = arith.truncf %151 : vector<8x128xf32> to vector<8x128xbf16>
    %c0_69 = arith.constant 0 : index
    %c0_70 = arith.constant 0 : index
    %162 = vector.load %arg4[%c0_69, %c0_70] : memref<128x512xbf16, #tpu.memory_space<vmem>>, vector<128x512xbf16>
    %cst_71 = arith.constant dense<0.000000e+00> : vector<8x512xf32>
    %163 = tpu.matmul %161, %162, %cst_71 {dimension_numbers = #tpu.dot_dimension_numbers<[1], [0], [0], [1], [0, 0, 1, 1], [], []>} : vector<8x128xbf16>, vector<128x512xbf16>, vector<8x512xf32> -> vector<8x512xf32>
    %164 = arith.addf %160, %163 : vector<8x512xf32>
    %165 = vector.extract_strided_slice %164 {offsets = [0, 0], sizes = [8, 128], strides = [1, 1]} : vector<8x512xf32> to vector<8x128xf32>
    %cst_72 = arith.constant 5.000000e-01 : f32
    %166 = vector.broadcast %cst_72 : f32 to vector<8x128xf32>
    %167 = arith.mulf %166, %165 : vector<8x128xf32>
    %168 = math.tanh %167 : vector<8x128xf32>
    %cst_73 = arith.constant 5.000000e-01 : f32
    %169 = vector.broadcast %cst_73 : f32 to vector<8x128xf32>
    %170 = arith.mulf %169, %168 : vector<8x128xf32>
    %cst_74 = arith.constant 5.000000e-01 : f32
    %171 = vector.broadcast %cst_74 : f32 to vector<8x128xf32>
    %172 = arith.addf %170, %171 : vector<8x128xf32>
    %173 = vector.extract_strided_slice %164 {offsets = [0, 128], sizes = [8, 128], strides = [1, 1]} : vector<8x512xf32> to vector<8x128xf32>
    %cst_75 = arith.constant 5.000000e-01 : f32
    %174 = vector.broadcast %cst_75 : f32 to vector<8x128xf32>
    %175 = arith.mulf %174, %173 : vector<8x128xf32>
    %176 = math.tanh %175 : vector<8x128xf32>
    %cst_76 = arith.constant 5.000000e-01 : f32
    %177 = vector.broadcast %cst_76 : f32 to vector<8x128xf32>
    %178 = arith.mulf %177, %176 : vector<8x128xf32>
    %cst_77 = arith.constant 5.000000e-01 : f32
    %179 = vector.broadcast %cst_77 : f32 to vector<8x128xf32>
    %180 = arith.addf %178, %179 : vector<8x128xf32>
    %181 = vector.extract_strided_slice %164 {offsets = [0, 256], sizes = [8, 128], strides = [1, 1]} : vector<8x512xf32> to vector<8x128xf32>
    %182 = math.tanh %181 : vector<8x128xf32>
    %183 = vector.extract_strided_slice %164 {offsets = [0, 384], sizes = [8, 128], strides = [1, 1]} : vector<8x512xf32> to vector<8x128xf32>
    %cst_78 = arith.constant 5.000000e-01 : f32
    %184 = vector.broadcast %cst_78 : f32 to vector<8x128xf32>
    %185 = arith.mulf %184, %183 : vector<8x128xf32>
    %186 = math.tanh %185 : vector<8x128xf32>
    %cst_79 = arith.constant 5.000000e-01 : f32
    %187 = vector.broadcast %cst_79 : f32 to vector<8x128xf32>
    %188 = arith.mulf %187, %186 : vector<8x128xf32>
    %cst_80 = arith.constant 5.000000e-01 : f32
    %189 = vector.broadcast %cst_80 : f32 to vector<8x128xf32>
    %190 = arith.addf %188, %189 : vector<8x128xf32>
    %191 = arith.mulf %180, %152 : vector<8x128xf32>
    %192 = arith.mulf %172, %182 : vector<8x128xf32>
    %193 = arith.addf %191, %192 : vector<8x128xf32>
    %194 = math.tanh %193 : vector<8x128xf32>
    %195 = arith.mulf %190, %194 : vector<8x128xf32>
    %c4_i32_81 = arith.constant 4 : i32
    %196 = arith.muli %arg1, %c4_i32_81 : i32
    %197 = arith.addi %196, %c3_i32 : i32
    %c10_i32_82 = arith.constant 10 : i32
    %198 = arith.cmpi slt, %197, %c10_i32_82 : i32
    %199 = arith.select %198, %195, %151 : vector<8x128xf32>
    %200 = arith.select %198, %193, %152 : vector<8x128xf32>
    %201 = arith.truncf %199 : vector<8x128xf32> to vector<8x128xbf16>
    %202 = arith.index_cast %c3_i32 : i32 to index
    %c0_83 = arith.constant 0 : index
    %c0_84 = arith.constant 0 : index
    %203 = vector.load %arg6[%202, %c0_83, %c0_84] : memref<4x8x128xbf16, #tpu.memory_space<vmem>>, vector<1x8x128xbf16>
    %204 = vector.shape_cast %203 : vector<1x8x128xbf16> to vector<8x128xbf16>
    %205 = vector.shape_cast %201 : vector<8x128xbf16> to vector<1x8x128xbf16>
    tpu.vector_store %arg6[%202, %c0_83, %c0_84], %205 {strides = array<i32>} : memref<4x8x128xbf16, #tpu.memory_space<vmem>>, vector<1x8x128xbf16>,
    %c4_i32_85 = arith.constant 4 : i32
    %c0_86 = arith.constant 0 : index
    %c0_87 = arith.constant 0 : index
    %206 = vector.load %arg9[%c0_86, %c0_87] : memref<8x128xf32, #tpu.memory_space<vmem>>, vector<8x128xf32>
    tpu.vector_store %arg9[%c0_86, %c0_87], %199 {strides = array<i32>} : memref<8x128xf32, #tpu.memory_space<vmem>>, vector<8x128xf32>,
    %c0_88 = arith.constant 0 : index
    %c0_89 = arith.constant 0 : index
    %207 = vector.load %arg10[%c0_88, %c0_89] : memref<8x128xf32, #tpu.memory_space<vmem>>, vector<8x128xf32>
    tpu.vector_store %arg10[%c0_88, %c0_89], %200 {strides = array<i32>} : memref<8x128xf32, #tpu.memory_space<vmem>>, vector<8x128xf32>,
    %c2_i32_90 = arith.constant 2 : i32
    %208 = arith.cmpi eq, %arg1, %c2_i32_90 : i32
    %209 = arith.extui %208 : i1 to i32
    %c0_i32_91 = arith.constant 0 : i32
    %210 = arith.cmpi ne, %209, %c0_i32_91 : i32
    scf.if %210 {
      %c0_92 = arith.constant 0 : index
      %c0_93 = arith.constant 0 : index
      %211 = vector.load %arg9[%c0_92, %c0_93] : memref<8x128xf32, #tpu.memory_space<vmem>>, vector<8x128xf32>
      %c0_94 = arith.constant 0 : index
      %c0_95 = arith.constant 0 : index
      %212 = vector.load %arg7[%c0_94, %c0_95] : memref<8x128xf32, #tpu.memory_space<vmem>>, vector<8x128xf32>
      tpu.vector_store %arg7[%c0_94, %c0_95], %211 {strides = array<i32>} : memref<8x128xf32, #tpu.memory_space<vmem>>, vector<8x128xf32>,
      %c0_96 = arith.constant 0 : index
      %c0_97 = arith.constant 0 : index
      %213 = vector.load %arg10[%c0_96, %c0_97] : memref<8x128xf32, #tpu.memory_space<vmem>>, vector<8x128xf32>
      %c0_98 = arith.constant 0 : index
      %c0_99 = arith.constant 0 : index
      %214 = vector.load %arg8[%c0_98, %c0_99] : memref<8x128xf32, #tpu.memory_space<vmem>>, vector<8x128xf32>
      tpu.vector_store %arg8[%c0_98, %c0_99], %213 {strides = array<i32>} : memref<8x128xf32, #tpu.memory_space<vmem>>, vector<8x128xf32>,
    } else {
    }
    return
  }
  func.func @transform_0(%arg0: i32, %arg1: i32) -> (i32, i32, i32) {
    %c0_i32 = arith.constant 0 : i32
    %c0_i32_0 = arith.constant 0 : i32
    return %arg1, %arg0, %c0_i32 : i32, i32, i32
  }
  func.func @transform_1(%arg0: i32, %arg1: i32) -> (i32, i32) {
    %c0_i32 = arith.constant 0 : i32
    %c0_i32_0 = arith.constant 0 : i32
    %c0_i32_1 = arith.constant 0 : i32
    return %c0_i32, %c0_i32_0 : i32, i32
  }
  func.func @transform_2(%arg0: i32, %arg1: i32) -> (i32, i32) {
    %c0_i32 = arith.constant 0 : i32
    %c0_i32_0 = arith.constant 0 : i32
    %c0_i32_1 = arith.constant 0 : i32
    return %c0_i32, %c0_i32_0 : i32, i32
  }
  func.func @transform_3(%arg0: i32, %arg1: i32) -> (i32, i32) {
    %c0_i32 = arith.constant 0 : i32
    %c0_i32_0 = arith.constant 0 : i32
    %c0_i32_1 = arith.constant 0 : i32
    return %c0_i32, %c0_i32_0 : i32, i32
  }
  func.func @transform_4(%arg0: i32, %arg1: i32) -> (i32, i32, i32) {
    %c0_i32 = arith.constant 0 : i32
    %c0_i32_0 = arith.constant 0 : i32
    return %arg1, %arg0, %c0_i32 : i32, i32, i32
  }
  func.func @transform_5(%arg0: i32, %arg1: i32) -> (i32, i32) {
    %c0_i32 = arith.constant 0 : i32
    %c0_i32_0 = arith.constant 0 : i32
    return %arg0, %c0_i32 : i32, i32
  }
  func.func @transform_6(%arg0: i32, %arg1: i32) -> (i32, i32) {
    %c0_i32 = arith.constant 0 : i32
    %c0_i32_0 = arith.constant 0 : i32
    return %arg0, %c0_i32 : i32, i32
  }
}

module attributes {stable_mosaic.version = 11 : i64} {
  func.func @lstm_layer_kernel(%arg0: i32, %arg1: i32, %arg2: memref<4x8x128xbf16, #tpu.memory_space<vmem>>, %arg3: memref<128x512xbf16, #tpu.memory_space<vmem>>, %arg4: memref<128x512xbf16, #tpu.memory_space<vmem>>, %arg5: memref<1x512xf32, #tpu.memory_space<vmem>>, %arg6: memref<4x8x128xbf16, #tpu.memory_space<vmem>>, %arg7: memref<8x128xf32, #tpu.memory_space<vmem>>, %arg8: memref<8x128xf32, #tpu.memory_space<vmem>>, %arg9: memref<8x128xf32, #tpu.memory_space<vmem>>, %arg10: memref<8x128xf32, #tpu.memory_space<vmem>>, %arg11: memref<4x8x512xf32, #tpu.memory_space<vmem>>) attributes {dimension_semantics = [#tpu.dimension_semantics<parallel>, #tpu.dimension_semantics<arbitrary>], iteration_bounds = array<i64: 1, 3>, scalar_prefetch = 0 : i64, scratch_operands = 3 : i64, tpu.core_type = #tpu.core_type<tc>, window_params = [{transform_indices = @transform_0, window_bounds = array<i64: 4, 8, 128>}, {pipeline_mode = #tpu.pipeline_mode<synchronous>, transform_indices = @transform_1, window_bounds = array<i64: 128, 512>}, {pipeline_mode = #tpu.pipeline_mode<synchronous>, transform_indices = @transform_2, window_bounds = array<i64: 128, 512>}, {pipeline_mode = #tpu.pipeline_mode<synchronous>, transform_indices = @transform_3, window_bounds = array<i64: 1, 512>}, {transform_indices = @transform_4, window_bounds = array<i64: 4, 8, 128>}, {transform_indices = @transform_5, window_bounds = array<i64: 8, 128>}, {transform_indices = @transform_6, window_bounds = array<i64: 8, 128>}]} {
    %c0_i32 = arith.constant 0 : i32
    %0 = arith.cmpi eq, %arg1, %c0_i32 : i32
    %1 = arith.extui %0 : i1 to i32
    %c0_i32_0 = arith.constant 0 : i32
    %2 = arith.cmpi ne, %1, %c0_i32_0 : i32
    scf.if %2 {
      %cst_92 = arith.constant 0.000000e+00 : f32
      %211 = vector.broadcast %cst_92 : f32 to vector<8x128xf32>
      %c0_93 = arith.constant 0 : index
      %c0_94 = arith.constant 0 : index
      %212 = vector.load %arg9[%c0_93, %c0_94] : memref<8x128xf32, #tpu.memory_space<vmem>>, vector<8x128xf32>
      tpu.vector_store %arg9[%c0_93, %c0_94], %211 {strides = array<i32>} : memref<8x128xf32, #tpu.memory_space<vmem>>, vector<8x128xf32>,
      %cst_95 = arith.constant 0.000000e+00 : f32
      %213 = vector.broadcast %cst_95 : f32 to vector<8x128xf32>
      %c0_96 = arith.constant 0 : index
      %c0_97 = arith.constant 0 : index
      %214 = vector.load %arg10[%c0_96, %c0_97] : memref<8x128xf32, #tpu.memory_space<vmem>>, vector<8x128xf32>
      tpu.vector_store %arg10[%c0_96, %c0_97], %213 {strides = array<i32>} : memref<8x128xf32, #tpu.memory_space<vmem>>, vector<8x128xf32>,
    } else {
    }
    %c0 = arith.constant 0 : index
    %c0_1 = arith.constant 0 : index
    %c0_2 = arith.constant 0 : index
    %3 = vector.load %arg2[%c0, %c0_1, %c0_2] : memref<4x8x128xbf16, #tpu.memory_space<vmem>>, vector<4x8x128xbf16>
    %4 = vector.shape_cast %3 : vector<4x8x128xbf16> to vector<32x128xbf16>
    %c0_3 = arith.constant 0 : index
    %c0_4 = arith.constant 0 : index
    %5 = vector.load %arg3[%c0_3, %c0_4] : memref<128x512xbf16, #tpu.memory_space<vmem>>, vector<128x512xbf16>
    %cst = arith.constant dense<0.000000e+00> : vector<32x512xf32>
    %6 = tpu.matmul %4, %5, %cst {dimension_numbers = #tpu.dot_dimension_numbers<[1], [0], [0], [1], [0, 0, 1, 1], [], []>} : vector<32x128xbf16>, vector<128x512xbf16>, vector<32x512xf32> -> vector<32x512xf32>
    %c0_5 = arith.constant 0 : index
    %c0_6 = arith.constant 0 : index
    %7 = vector.load %arg5[%c0_5, %c0_6] : memref<1x512xf32, #tpu.memory_space<vmem>>, vector<1x512xf32>
    %8 = vector.broadcast %7 : vector<1x512xf32> to vector<32x512xf32>
    %9 = arith.addf %6, %8 : vector<32x512xf32>
    %10 = vector.shape_cast %9 : vector<32x512xf32> to vector<4x8x512xf32>
    %c0_7 = arith.constant 0 : index
    %c0_8 = arith.constant 0 : index
    %c0_9 = arith.constant 0 : index
    %11 = vector.load %arg11[%c0_7, %c0_8, %c0_9] : memref<4x8x512xf32, #tpu.memory_space<vmem>>, vector<4x8x512xf32>
    tpu.vector_store %arg11[%c0_7, %c0_8, %c0_9], %10 {strides = array<i32>} : memref<4x8x512xf32, #tpu.memory_space<vmem>>, vector<4x8x512xf32>,
    %c0_10 = arith.constant 0 : index
    %c0_11 = arith.constant 0 : index
    %12 = vector.load %arg9[%c0_10, %c0_11] : memref<8x128xf32, #tpu.memory_space<vmem>>, vector<8x128xf32>
    %c0_12 = arith.constant 0 : index
    %c0_13 = arith.constant 0 : index
    %13 = vector.load %arg10[%c0_12, %c0_13] : memref<8x128xf32, #tpu.memory_space<vmem>>, vector<8x128xf32>
    %c0_i32_14 = arith.constant 0 : i32
    %14 = arith.index_cast %c0_i32_14 : i32 to index
    %c0_15 = arith.constant 0 : index
    %c0_16 = arith.constant 0 : index
    %15 = vector.load %arg11[%14, %c0_15, %c0_16] : memref<4x8x512xf32, #tpu.memory_space<vmem>>, vector<1x8x512xf32>
    %16 = vector.shape_cast %15 : vector<1x8x512xf32> to vector<8x512xf32>
    %17 = arith.truncf %12 : vector<8x128xf32> to vector<8x128xbf16>
    %c0_17 = arith.constant 0 : index
    %c0_18 = arith.constant 0 : index
    %18 = vector.load %arg4[%c0_17, %c0_18] : memref<128x512xbf16, #tpu.memory_space<vmem>>, vector<128x512xbf16>
    %cst_19 = arith.constant dense<0.000000e+00> : vector<8x512xf32>
    %19 = tpu.matmul %17, %18, %cst_19 {dimension_numbers = #tpu.dot_dimension_numbers<[1], [0], [0], [1], [0, 0, 1, 1], [], []>} : vector<8x128xbf16>, vector<128x512xbf16>, vector<8x512xf32> -> vector<8x512xf32>
    %20 = arith.addf %16, %19 : vector<8x512xf32>
    %21 = vector.extract_strided_slice %20 {offsets = [0, 0], sizes = [8, 128], strides = [1, 1]} : vector<8x512xf32> to vector<8x128xf32>
    %cst_20 = arith.constant 5.000000e-01 : f32
    %22 = vector.broadcast %cst_20 : f32 to vector<8x128xf32>
    %23 = arith.mulf %22, %21 : vector<8x128xf32>
    %24 = math.tanh %23 : vector<8x128xf32>
    %cst_21 = arith.constant 5.000000e-01 : f32
    %25 = vector.broadcast %cst_21 : f32 to vector<8x128xf32>
    %26 = arith.mulf %25, %24 : vector<8x128xf32>
    %cst_22 = arith.constant 5.000000e-01 : f32
    %27 = vector.broadcast %cst_22 : f32 to vector<8x128xf32>
    %28 = arith.addf %26, %27 : vector<8x128xf32>
    %29 = vector.extract_strided_slice %20 {offsets = [0, 128], sizes = [8, 128], strides = [1, 1]} : vector<8x512xf32> to vector<8x128xf32>
    %cst_23 = arith.constant 5.000000e-01 : f32
    %30 = vector.broadcast %cst_23 : f32 to vector<8x128xf32>
    %31 = arith.mulf %30, %29 : vector<8x128xf32>
    %32 = math.tanh %31 : vector<8x128xf32>
    %cst_24 = arith.constant 5.000000e-01 : f32
    %33 = vector.broadcast %cst_24 : f32 to vector<8x128xf32>
    %34 = arith.mulf %33, %32 : vector<8x128xf32>
    %cst_25 = arith.constant 5.000000e-01 : f32
    %35 = vector.broadcast %cst_25 : f32 to vector<8x128xf32>
    %36 = arith.addf %34, %35 : vector<8x128xf32>
    %37 = vector.extract_strided_slice %20 {offsets = [0, 256], sizes = [8, 128], strides = [1, 1]} : vector<8x512xf32> to vector<8x128xf32>
    %38 = math.tanh %37 : vector<8x128xf32>
    %39 = vector.extract_strided_slice %20 {offsets = [0, 384], sizes = [8, 128], strides = [1, 1]} : vector<8x512xf32> to vector<8x128xf32>
    %cst_26 = arith.constant 5.000000e-01 : f32
    %40 = vector.broadcast %cst_26 : f32 to vector<8x128xf32>
    %41 = arith.mulf %40, %39 : vector<8x128xf32>
    %42 = math.tanh %41 : vector<8x128xf32>
    %cst_27 = arith.constant 5.000000e-01 : f32
    %43 = vector.broadcast %cst_27 : f32 to vector<8x128xf32>
    %44 = arith.mulf %43, %42 : vector<8x128xf32>
    %cst_28 = arith.constant 5.000000e-01 : f32
    %45 = vector.broadcast %cst_28 : f32 to vector<8x128xf32>
    %46 = arith.addf %44, %45 : vector<8x128xf32>
    %47 = arith.mulf %36, %13 : vector<8x128xf32>
    %48 = arith.mulf %28, %38 : vector<8x128xf32>
    %49 = arith.addf %47, %48 : vector<8x128xf32>
    %50 = math.tanh %49 : vector<8x128xf32>
    %51 = arith.mulf %46, %50 : vector<8x128xf32>
    %c4_i32 = arith.constant 4 : i32
    %52 = arith.muli %arg1, %c4_i32 : i32
    %53 = arith.addi %52, %c0_i32_14 : i32
    %c10_i32 = arith.constant 10 : i32
    %54 = arith.cmpi slt, %53, %c10_i32 : i32
    %55 = arith.select %54, %51, %12 : vector<8x128xf32>
    %56 = arith.select %54, %49, %13 : vector<8x128xf32>
    %57 = arith.truncf %55 : vector<8x128xf32> to vector<8x128xbf16>
    %58 = arith.index_cast %c0_i32_14 : i32 to index
    %c0_29 = arith.constant 0 : index
    %c0_30 = arith.constant 0 : index
    %59 = vector.load %arg6[%58, %c0_29, %c0_30] : memref<4x8x128xbf16, #tpu.memory_space<vmem>>, vector<1x8x128xbf16>
    %60 = vector.shape_cast %59 : vector<1x8x128xbf16> to vector<8x128xbf16>
    %61 = vector.shape_cast %57 : vector<8x128xbf16> to vector<1x8x128xbf16>
    tpu.vector_store %arg6[%58, %c0_29, %c0_30], %61 {strides = array<i32>} : memref<4x8x128xbf16, #tpu.memory_space<vmem>>, vector<1x8x128xbf16>,
    %c1_i32 = arith.constant 1 : i32
    %62 = arith.index_cast %c1_i32 : i32 to index
    %c0_31 = arith.constant 0 : index
    %c0_32 = arith.constant 0 : index
    %63 = vector.load %arg11[%62, %c0_31, %c0_32] : memref<4x8x512xf32, #tpu.memory_space<vmem>>, vector<1x8x512xf32>
    %64 = vector.shape_cast %63 : vector<1x8x512xf32> to vector<8x512xf32>
    %65 = arith.truncf %55 : vector<8x128xf32> to vector<8x128xbf16>
    %c0_33 = arith.constant 0 : index
    %c0_34 = arith.constant 0 : index
    %66 = vector.load %arg4[%c0_33, %c0_34] : memref<128x512xbf16, #tpu.memory_space<vmem>>, vector<128x512xbf16>
    %cst_35 = arith.constant dense<0.000000e+00> : vector<8x512xf32>
    %67 = tpu.matmul %65, %66, %cst_35 {dimension_numbers = #tpu.dot_dimension_numbers<[1], [0], [0], [1], [0, 0, 1, 1], [], []>} : vector<8x128xbf16>, vector<128x512xbf16>, vector<8x512xf32> -> vector<8x512xf32>
    %68 = arith.addf %64, %67 : vector<8x512xf32>
    %69 = vector.extract_strided_slice %68 {offsets = [0, 0], sizes = [8, 128], strides = [1, 1]} : vector<8x512xf32> to vector<8x128xf32>
    %cst_36 = arith.constant 5.000000e-01 : f32
    %70 = vector.broadcast %cst_36 : f32 to vector<8x128xf32>
    %71 = arith.mulf %70, %69 : vector<8x128xf32>
    %72 = math.tanh %71 : vector<8x128xf32>
    %cst_37 = arith.constant 5.000000e-01 : f32
    %73 = vector.broadcast %cst_37 : f32 to vector<8x128xf32>
    %74 = arith.mulf %73, %72 : vector<8x128xf32>
    %cst_38 = arith.constant 5.000000e-01 : f32
    %75 = vector.broadcast %cst_38 : f32 to vector<8x128xf32>
    %76 = arith.addf %74, %75 : vector<8x128xf32>
    %77 = vector.extract_strided_slice %68 {offsets = [0, 128], sizes = [8, 128], strides = [1, 1]} : vector<8x512xf32> to vector<8x128xf32>
    %cst_39 = arith.constant 5.000000e-01 : f32
    %78 = vector.broadcast %cst_39 : f32 to vector<8x128xf32>
    %79 = arith.mulf %78, %77 : vector<8x128xf32>
    %80 = math.tanh %79 : vector<8x128xf32>
    %cst_40 = arith.constant 5.000000e-01 : f32
    %81 = vector.broadcast %cst_40 : f32 to vector<8x128xf32>
    %82 = arith.mulf %81, %80 : vector<8x128xf32>
    %cst_41 = arith.constant 5.000000e-01 : f32
    %83 = vector.broadcast %cst_41 : f32 to vector<8x128xf32>
    %84 = arith.addf %82, %83 : vector<8x128xf32>
    %85 = vector.extract_strided_slice %68 {offsets = [0, 256], sizes = [8, 128], strides = [1, 1]} : vector<8x512xf32> to vector<8x128xf32>
    %86 = math.tanh %85 : vector<8x128xf32>
    %87 = vector.extract_strided_slice %68 {offsets = [0, 384], sizes = [8, 128], strides = [1, 1]} : vector<8x512xf32> to vector<8x128xf32>
    %cst_42 = arith.constant 5.000000e-01 : f32
    %88 = vector.broadcast %cst_42 : f32 to vector<8x128xf32>
    %89 = arith.mulf %88, %87 : vector<8x128xf32>
    %90 = math.tanh %89 : vector<8x128xf32>
    %cst_43 = arith.constant 5.000000e-01 : f32
    %91 = vector.broadcast %cst_43 : f32 to vector<8x128xf32>
    %92 = arith.mulf %91, %90 : vector<8x128xf32>
    %cst_44 = arith.constant 5.000000e-01 : f32
    %93 = vector.broadcast %cst_44 : f32 to vector<8x128xf32>
    %94 = arith.addf %92, %93 : vector<8x128xf32>
    %95 = arith.mulf %84, %56 : vector<8x128xf32>
    %96 = arith.mulf %76, %86 : vector<8x128xf32>
    %97 = arith.addf %95, %96 : vector<8x128xf32>
    %98 = math.tanh %97 : vector<8x128xf32>
    %99 = arith.mulf %94, %98 : vector<8x128xf32>
    %c4_i32_45 = arith.constant 4 : i32
    %100 = arith.muli %arg1, %c4_i32_45 : i32
    %101 = arith.addi %100, %c1_i32 : i32
    %c10_i32_46 = arith.constant 10 : i32
    %102 = arith.cmpi slt, %101, %c10_i32_46 : i32
    %103 = arith.select %102, %99, %55 : vector<8x128xf32>
    %104 = arith.select %102, %97, %56 : vector<8x128xf32>
    %105 = arith.truncf %103 : vector<8x128xf32> to vector<8x128xbf16>
    %106 = arith.index_cast %c1_i32 : i32 to index
    %c0_47 = arith.constant 0 : index
    %c0_48 = arith.constant 0 : index
    %107 = vector.load %arg6[%106, %c0_47, %c0_48] : memref<4x8x128xbf16, #tpu.memory_space<vmem>>, vector<1x8x128xbf16>
    %108 = vector.shape_cast %107 : vector<1x8x128xbf16> to vector<8x128xbf16>
    %109 = vector.shape_cast %105 : vector<8x128xbf16> to vector<1x8x128xbf16>
    tpu.vector_store %arg6[%106, %c0_47, %c0_48], %109 {strides = array<i32>} : memref<4x8x128xbf16, #tpu.memory_space<vmem>>, vector<1x8x128xbf16>,
    %c2_i32 = arith.constant 2 : i32
    %110 = arith.index_cast %c2_i32 : i32 to index
    %c0_49 = arith.constant 0 : index
    %c0_50 = arith.constant 0 : index
    %111 = vector.load %arg11[%110, %c0_49, %c0_50] : memref<4x8x512xf32, #tpu.memory_space<vmem>>, vector<1x8x512xf32>
    %112 = vector.shape_cast %111 : vector<1x8x512xf32> to vector<8x512xf32>
    %113 = arith.truncf %103 : vector<8x128xf32> to vector<8x128xbf16>
    %c0_51 = arith.constant 0 : index
    %c0_52 = arith.constant 0 : index
    %114 = vector.load %arg4[%c0_51, %c0_52] : memref<128x512xbf16, #tpu.memory_space<vmem>>, vector<128x512xbf16>
    %cst_53 = arith.constant dense<0.000000e+00> : vector<8x512xf32>
    %115 = tpu.matmul %113, %114, %cst_53 {dimension_numbers = #tpu.dot_dimension_numbers<[1], [0], [0], [1], [0, 0, 1, 1], [], []>} : vector<8x128xbf16>, vector<128x512xbf16>, vector<8x512xf32> -> vector<8x512xf32>
    %116 = arith.addf %112, %115 : vector<8x512xf32>
    %117 = vector.extract_strided_slice %116 {offsets = [0, 0], sizes = [8, 128], strides = [1, 1]} : vector<8x512xf32> to vector<8x128xf32>
    %cst_54 = arith.constant 5.000000e-01 : f32
    %118 = vector.broadcast %cst_54 : f32 to vector<8x128xf32>
    %119 = arith.mulf %118, %117 : vector<8x128xf32>
    %120 = math.tanh %119 : vector<8x128xf32>
    %cst_55 = arith.constant 5.000000e-01 : f32
    %121 = vector.broadcast %cst_55 : f32 to vector<8x128xf32>
    %122 = arith.mulf %121, %120 : vector<8x128xf32>
    %cst_56 = arith.constant 5.000000e-01 : f32
    %123 = vector.broadcast %cst_56 : f32 to vector<8x128xf32>
    %124 = arith.addf %122, %123 : vector<8x128xf32>
    %125 = vector.extract_strided_slice %116 {offsets = [0, 128], sizes = [8, 128], strides = [1, 1]} : vector<8x512xf32> to vector<8x128xf32>
    %cst_57 = arith.constant 5.000000e-01 : f32
    %126 = vector.broadcast %cst_57 : f32 to vector<8x128xf32>
    %127 = arith.mulf %126, %125 : vector<8x128xf32>
    %128 = math.tanh %127 : vector<8x128xf32>
    %cst_58 = arith.constant 5.000000e-01 : f32
    %129 = vector.broadcast %cst_58 : f32 to vector<8x128xf32>
    %130 = arith.mulf %129, %128 : vector<8x128xf32>
    %cst_59 = arith.constant 5.000000e-01 : f32
    %131 = vector.broadcast %cst_59 : f32 to vector<8x128xf32>
    %132 = arith.addf %130, %131 : vector<8x128xf32>
    %133 = vector.extract_strided_slice %116 {offsets = [0, 256], sizes = [8, 128], strides = [1, 1]} : vector<8x512xf32> to vector<8x128xf32>
    %134 = math.tanh %133 : vector<8x128xf32>
    %135 = vector.extract_strided_slice %116 {offsets = [0, 384], sizes = [8, 128], strides = [1, 1]} : vector<8x512xf32> to vector<8x128xf32>
    %cst_60 = arith.constant 5.000000e-01 : f32
    %136 = vector.broadcast %cst_60 : f32 to vector<8x128xf32>
    %137 = arith.mulf %136, %135 : vector<8x128xf32>
    %138 = math.tanh %137 : vector<8x128xf32>
    %cst_61 = arith.constant 5.000000e-01 : f32
    %139 = vector.broadcast %cst_61 : f32 to vector<8x128xf32>
    %140 = arith.mulf %139, %138 : vector<8x128xf32>
    %cst_62 = arith.constant 5.000000e-01 : f32
    %141 = vector.broadcast %cst_62 : f32 to vector<8x128xf32>
    %142 = arith.addf %140, %141 : vector<8x128xf32>
    %143 = arith.mulf %132, %104 : vector<8x128xf32>
    %144 = arith.mulf %124, %134 : vector<8x128xf32>
    %145 = arith.addf %143, %144 : vector<8x128xf32>
    %146 = math.tanh %145 : vector<8x128xf32>
    %147 = arith.mulf %142, %146 : vector<8x128xf32>
    %c4_i32_63 = arith.constant 4 : i32
    %148 = arith.muli %arg1, %c4_i32_63 : i32
    %149 = arith.addi %148, %c2_i32 : i32
    %c10_i32_64 = arith.constant 10 : i32
    %150 = arith.cmpi slt, %149, %c10_i32_64 : i32
    %151 = arith.select %150, %147, %103 : vector<8x128xf32>
    %152 = arith.select %150, %145, %104 : vector<8x128xf32>
    %153 = arith.truncf %151 : vector<8x128xf32> to vector<8x128xbf16>
    %154 = arith.index_cast %c2_i32 : i32 to index
    %c0_65 = arith.constant 0 : index
    %c0_66 = arith.constant 0 : index
    %155 = vector.load %arg6[%154, %c0_65, %c0_66] : memref<4x8x128xbf16, #tpu.memory_space<vmem>>, vector<1x8x128xbf16>
    %156 = vector.shape_cast %155 : vector<1x8x128xbf16> to vector<8x128xbf16>
    %157 = vector.shape_cast %153 : vector<8x128xbf16> to vector<1x8x128xbf16>
    tpu.vector_store %arg6[%154, %c0_65, %c0_66], %157 {strides = array<i32>} : memref<4x8x128xbf16, #tpu.memory_space<vmem>>, vector<1x8x128xbf16>,
    %c3_i32 = arith.constant 3 : i32
    %158 = arith.index_cast %c3_i32 : i32 to index
    %c0_67 = arith.constant 0 : index
    %c0_68 = arith.constant 0 : index
    %159 = vector.load %arg11[%158, %c0_67, %c0_68] : memref<4x8x512xf32, #tpu.memory_space<vmem>>, vector<1x8x512xf32>
    %160 = vector.shape_cast %159 : vector<1x8x512xf32> to vector<8x512xf32>
    %161 = arith.truncf %151 : vector<8x128xf32> to vector<8x128xbf16>
    %c0_69 = arith.constant 0 : index
    %c0_70 = arith.constant 0 : index
    %162 = vector.load %arg4[%c0_69, %c0_70] : memref<128x512xbf16, #tpu.memory_space<vmem>>, vector<128x512xbf16>
    %cst_71 = arith.constant dense<0.000000e+00> : vector<8x512xf32>
    %163 = tpu.matmul %161, %162, %cst_71 {dimension_numbers = #tpu.dot_dimension_numbers<[1], [0], [0], [1], [0, 0, 1, 1], [], []>} : vector<8x128xbf16>, vector<128x512xbf16>, vector<8x512xf32> -> vector<8x512xf32>
    %164 = arith.addf %160, %163 : vector<8x512xf32>
    %165 = vector.extract_strided_slice %164 {offsets = [0, 0], sizes = [8, 128], strides = [1, 1]} : vector<8x512xf32> to vector<8x128xf32>
    %cst_72 = arith.constant 5.000000e-01 : f32
    %166 = vector.broadcast %cst_72 : f32 to vector<8x128xf32>
    %167 = arith.mulf %166, %165 : vector<8x128xf32>
    %168 = math.tanh %167 : vector<8x128xf32>
    %cst_73 = arith.constant 5.000000e-01 : f32
    %169 = vector.broadcast %cst_73 : f32 to vector<8x128xf32>
    %170 = arith.mulf %169, %168 : vector<8x128xf32>
    %cst_74 = arith.constant 5.000000e-01 : f32
    %171 = vector.broadcast %cst_74 : f32 to vector<8x128xf32>
    %172 = arith.addf %170, %171 : vector<8x128xf32>
    %173 = vector.extract_strided_slice %164 {offsets = [0, 128], sizes = [8, 128], strides = [1, 1]} : vector<8x512xf32> to vector<8x128xf32>
    %cst_75 = arith.constant 5.000000e-01 : f32
    %174 = vector.broadcast %cst_75 : f32 to vector<8x128xf32>
    %175 = arith.mulf %174, %173 : vector<8x128xf32>
    %176 = math.tanh %175 : vector<8x128xf32>
    %cst_76 = arith.constant 5.000000e-01 : f32
    %177 = vector.broadcast %cst_76 : f32 to vector<8x128xf32>
    %178 = arith.mulf %177, %176 : vector<8x128xf32>
    %cst_77 = arith.constant 5.000000e-01 : f32
    %179 = vector.broadcast %cst_77 : f32 to vector<8x128xf32>
    %180 = arith.addf %178, %179 : vector<8x128xf32>
    %181 = vector.extract_strided_slice %164 {offsets = [0, 256], sizes = [8, 128], strides = [1, 1]} : vector<8x512xf32> to vector<8x128xf32>
    %182 = math.tanh %181 : vector<8x128xf32>
    %183 = vector.extract_strided_slice %164 {offsets = [0, 384], sizes = [8, 128], strides = [1, 1]} : vector<8x512xf32> to vector<8x128xf32>
    %cst_78 = arith.constant 5.000000e-01 : f32
    %184 = vector.broadcast %cst_78 : f32 to vector<8x128xf32>
    %185 = arith.mulf %184, %183 : vector<8x128xf32>
    %186 = math.tanh %185 : vector<8x128xf32>
    %cst_79 = arith.constant 5.000000e-01 : f32
    %187 = vector.broadcast %cst_79 : f32 to vector<8x128xf32>
    %188 = arith.mulf %187, %186 : vector<8x128xf32>
    %cst_80 = arith.constant 5.000000e-01 : f32
    %189 = vector.broadcast %cst_80 : f32 to vector<8x128xf32>
    %190 = arith.addf %188, %189 : vector<8x128xf32>
    %191 = arith.mulf %180, %152 : vector<8x128xf32>
    %192 = arith.mulf %172, %182 : vector<8x128xf32>
    %193 = arith.addf %191, %192 : vector<8x128xf32>
    %194 = math.tanh %193 : vector<8x128xf32>
    %195 = arith.mulf %190, %194 : vector<8x128xf32>
    %c4_i32_81 = arith.constant 4 : i32
    %196 = arith.muli %arg1, %c4_i32_81 : i32
    %197 = arith.addi %196, %c3_i32 : i32
    %c10_i32_82 = arith.constant 10 : i32
    %198 = arith.cmpi slt, %197, %c10_i32_82 : i32
    %199 = arith.select %198, %195, %151 : vector<8x128xf32>
    %200 = arith.select %198, %193, %152 : vector<8x128xf32>
    %201 = arith.truncf %199 : vector<8x128xf32> to vector<8x128xbf16>
    %202 = arith.index_cast %c3_i32 : i32 to index
    %c0_83 = arith.constant 0 : index
    %c0_84 = arith.constant 0 : index
    %203 = vector.load %arg6[%202, %c0_83, %c0_84] : memref<4x8x128xbf16, #tpu.memory_space<vmem>>, vector<1x8x128xbf16>
    %204 = vector.shape_cast %203 : vector<1x8x128xbf16> to vector<8x128xbf16>
    %205 = vector.shape_cast %201 : vector<8x128xbf16> to vector<1x8x128xbf16>
    tpu.vector_store %arg6[%202, %c0_83, %c0_84], %205 {strides = array<i32>} : memref<4x8x128xbf16, #tpu.memory_space<vmem>>, vector<1x8x128xbf16>,
    %c4_i32_85 = arith.constant 4 : i32
    %c0_86 = arith.constant 0 : index
    %c0_87 = arith.constant 0 : index
    %206 = vector.load %arg9[%c0_86, %c0_87] : memref<8x128xf32, #tpu.memory_space<vmem>>, vector<8x128xf32>
    tpu.vector_store %arg9[%c0_86, %c0_87], %199 {strides = array<i32>} : memref<8x128xf32, #tpu.memory_space<vmem>>, vector<8x128xf32>,
    %c0_88 = arith.constant 0 : index
    %c0_89 = arith.constant 0 : index
    %207 = vector.load %arg10[%c0_88, %c0_89] : memref<8x128xf32, #tpu.memory_space<vmem>>, vector<8x128xf32>
    tpu.vector_store %arg10[%c0_88, %c0_89], %200 {strides = array<i32>} : memref<8x128xf32, #tpu.memory_space<vmem>>, vector<8x128xf32>,
    %c2_i32_90 = arith.constant 2 : i32
    %208 = arith.cmpi eq, %arg1, %c2_i32_90 : i32
    %209 = arith.extui %208 : i1 to i32
    %c0_i32_91 = arith.constant 0 : i32
    %210 = arith.cmpi ne, %209, %c0_i32_91 : i32
    scf.if %210 {
      %c0_92 = arith.constant 0 : index
      %c0_93 = arith.constant 0 : index
      %211 = vector.load %arg9[%c0_92, %c0_93] : memref<8x128xf32, #tpu.memory_space<vmem>>, vector<8x128xf32>
      %c0_94 = arith.constant 0 : index
      %c0_95 = arith.constant 0 : index
      %212 = vector.load %arg7[%c0_94, %c0_95] : memref<8x128xf32, #tpu.memory_space<vmem>>, vector<8x128xf32>
      tpu.vector_store %arg7[%c0_94, %c0_95], %211 {strides = array<i32>} : memref<8x128xf32, #tpu.memory_space<vmem>>, vector<8x128xf32>,
      %c0_96 = arith.constant 0 : index
      %c0_97 = arith.constant 0 : index
      %213 = vector.load %arg10[%c0_96, %c0_97] : memref<8x128xf32, #tpu.memory_space<vmem>>, vector<8x128xf32>
      %c0_98 = arith.constant 0 : index
      %c0_99 = arith.constant 0 : index
      %214 = vector.load %arg8[%c0_98, %c0_99] : memref<8x128xf32, #tpu.memory_space<vmem>>, vector<8x128xf32>
      tpu.vector_store %arg8[%c0_98, %c0_99], %213 {strides = array<i32>} : memref<8x128xf32, #tpu.memory_space<vmem>>, vector<8x128xf32>,
    } else {
    }
    return
  }
  func.func @transform_0(%arg0: i32, %arg1: i32) -> (i32, i32, i32) {
    %c0_i32 = arith.constant 0 : i32
    %c0_i32_0 = arith.constant 0 : i32
    return %arg1, %arg0, %c0_i32 : i32, i32, i32
  }
  func.func @transform_1(%arg0: i32, %arg1: i32) -> (i32, i32) {
    %c0_i32 = arith.constant 0 : i32
    %c0_i32_0 = arith.constant 0 : i32
    %c0_i32_1 = arith.constant 0 : i32
    return %c0_i32, %c0_i32_0 : i32, i32
  }
  func.func @transform_2(%arg0: i32, %arg1: i32) -> (i32, i32) {
    %c0_i32 = arith.constant 0 : i32
    %c0_i32_0 = arith.constant 0 : i32
    %c0_i32_1 = arith.constant 0 : i32
    return %c0_i32, %c0_i32_0 : i32, i32
  }
  func.func @transform_3(%arg0: i32, %arg1: i32) -> (i32, i32) {
    %c0_i32 = arith.constant 0 : i32
    %c0_i32_0 = arith.constant 0 : i32
    %c0_i32_1 = arith.constant 0 : i32
    return %c0_i32, %c0_i32_0 : i32, i32
  }
  func.func @transform_4(%arg0: i32, %arg1: i32) -> (i32, i32, i32) {
    %c0_i32 = arith.constant 0 : i32
    %c0_i32_0 = arith.constant 0 : i32
    return %arg1, %arg0, %c0_i32 : i32, i32, i32
  }
  func.func @transform_5(%arg0: i32, %arg1: i32) -> (i32, i32) {
    %c0_i32 = arith.constant 0 : i32
    %c0_i32_0 = arith.constant 0 : i32
    return %arg0, %c0_i32 : i32, i32
  }
  func.func @transform_6(%arg0: i32, %arg1: i32) -> (i32, i32) {
    %c0_i32 = arith.constant 0 : i32
    %c0_i32_0 = arith.constant 0 : i32
    return %arg0, %c0_i32 : i32, i32
  }
}

</mosaic_0001>

<llo_original>
// kernel: tpu_custom_call.1
$region0: #{tpu_custom_call.1}
  #allocation0 [shape = 'u32[]', space=smem, size = 0x4, offset = 0x4, fixed_abs, tag = 'smem constant byte address 0x4 - core index']
  #allocation1 [shape = 'u32[144,128]{1,0:T(1,128)}', space=vmem, size = 0x12000, scoped, tag = 'internal scratch']
  #allocation2 [shape = 'f32[8,128]{1,0:T(8,128)}', space=vmem, size = 0x1000, scoped, tag = 'scratch operand']
  #allocation3 [shape = 'f32[8,128]{1,0:T(8,128)}', space=vmem, size = 0x1000, scoped, tag = 'scratch operand']
  #allocation4 [shape = 'f32[4,8,512]{2,1,0:T(8,128)}', space=vmem, size = 0x10000, scoped, tag = 'scratch operand']
  %s0 = inlined_call_operand.hbm [shape: bf16[12,8,128], index: 0, kind: input, shape index: {}]
  %s1 = inlined_call_operand.hbm [shape: bf16[128,512], index: 1, kind: input, shape index: {}]
  %s2 = inlined_call_operand.hbm [shape: bf16[128,512], index: 2, kind: input, shape index: {}]
  %s3 = inlined_call_operand.vmem [shape: f32[1,512], index: 3, kind: input, shape index: {}]
  %s4 = inlined_call_operand.hbm [shape: bf16[12,8,128], index: 4, kind: output, shape index: {0}]
  %s5 = inlined_call_operand.hbm [shape: f32[8,128], index: 5, kind: output, shape index: {1}]
  %s6 = inlined_call_operand.hbm [shape: f32[8,128], index: 6, kind: output, shape index: {2}]
  %7 = xla_tuple %s4, %s5, %s6
  %s8 = sld [smem:[#allocation0]]
  $region85: #{tpu_custom_call.1} parent=0
    _
  %s10 = ssub.s32 1, %s8
  %s11 = scalar_select 0, %s10, %s8
  $region1: #{tpu_custom_call.1} parent=0
    #allocation5 [shape = 'u8[16384]{0}', space=vmem, size = 0x4000, scoped, tag = 'input window, operand 0']
    #allocation6 [shape = 's32[2]{0}', space=sflag, size = 0x8, scoped, tag = 'scoped memory for tpu_custom_call.1']
    #allocation7 [shape = 's32[2]{0}', space=sflag, size = 0x8, scoped, tag = 'scoped memory for tpu_custom_call.1']
    #allocation8 [shape = 'u8[131072]{0}', space=vmem, size = 0x20000, scoped, tag = 'input window, operand 1, single buffered']
    #allocation9 [shape = 's32[1]{0}', space=sflag, size = 0x4, scoped, tag = 'scoped memory for tpu_custom_call.1']
    #allocation10 [shape = 'u8[131072]{0}', space=vmem, size = 0x20000, scoped, tag = 'input window, operand 2, single buffered']
    #allocation11 [shape = 'u8[16384]{0}', space=vmem, size = 0x4000, scoped, tag = 'output window, operand 0']
    #allocation12 [shape = 'u8[4096]{0}', space=vmem, size = 0x1000, scoped, tag = 'output window, operand 1, single buffered']
    #allocation13 [shape = 's32[1]{0}', space=sflag, size = 0x4, scoped, tag = 'scoped memory for tpu_custom_call.1']
    #allocation14 [shape = 'u8[4096]{0}', space=vmem, size = 0x1000, scoped, tag = 'output window, operand 2, single buffered']
    %12 = vsyncpa [#allocation6], 0
    %s13 = scalar_lea.sflag [#allocation6], 1
    %14 = vsyncpa %s13, 0
    %15 = vsyncpa [#allocation9], 0
    %16 = vsyncpa [#allocation7], 0
    %s17 = scalar_lea.sflag [#allocation7], 1
    %18 = vsyncpa %s17, 0
    %19 = vsyncpa [#allocation13], 0
    loop: start=0, step=1, limit=5
    $region2: #{tpu_custom_call.1} parent=1 // loop_pre_header
      _
    $region3: #{tpu_custom_call.1} parent=1 // loop_header
      %s21 = sphi 0, %s25
      %p22 = scmp.ge.s32.totalorder %s21, 5
      %s28 = sphi 0, %s40
      %s29 = sphi 0, %s36
      %s30 = sphi 0, %s28
      %s31 = sphi 0, %s29
      %s32 = sphi 0, %s30
      %s33 = sphi 0, %s31
      %s45 = sphi 0, %s47
      %s48 = sphi 0, %s45
      %s49 = sphi 0, %s48
      %s65 = sphi 0, %s49
      %s69 = sphi 0, %s69
      %s71 = sphi 0, %s69
      %s72 = sphi 0, %s71
      %s86 = sphi 0, %s72
      %s90 = sphi 0, %s90
      %s92 = sphi 0, %s90
      %s93 = sphi 0, %s92
      %s107 = sphi 0, %s93
      %s111 = sphi 0, %s111
      %s113 = sphi 0, %s111
      %s114 = sphi 0, %s113
      %s128 = sphi 0, %s114
      %s136 = sphi 0, %s138
      %s139 = sphi 0, %s136
      %s140 = sphi 0, %s139
      %s156 = sphi 0, %s140
      %s162 = sphi 0, %s164
      %s165 = sphi 0, %s162
      %s166 = sphi 0, %s165
      %s182 = sphi 0, %s166
      %s188 = sphi 0, %s190
      %s191 = sphi 0, %s188
      %s192 = sphi 0, %s191
      %s208 = sphi 0, %s192
    $region4: #{tpu_custom_call.1} parent=1 // loop_header_branch
      %24 = sbr.rel (%p22) target = $region8
    $region5: #{tpu_custom_call.1} parent=1 // loop_body
      %s26 = ssub.s32 %s21, 1
      %s27 = ssub.s32 %s21, 2
      %s34 = sadd.s32 1, %s29
      %p35 = scmp.ge.s32.totalorder %s34, 3
      %s36 = scalar_select %p35, 0, %s34
      %s37 = sadd.s32 1, %s28
      %s38 = scalar_select %p35, %s37, %s28
      %p39 = scmp.ge.s32.totalorder %s38, 1
      %s40 = scalar_select %p39, 0, %s38
      %s41 = ssub.s32 %s29, %s36
      %s42 = ssub.s32 %s28, %s40
      %s43 = sor.u32 %s41, %s42
      %p44 = scmp.eq.s32.totalorder %s43, 0
      %s46 = sadd.s32 %s45, 1
      %s47 = scalar_select %p44, %s45, %s46
      %p50 = pneg %p44
      %p51 = scmp.eq.s32.totalorder %s21, 2
      %p52 = por %p50, %p51
      %p53 = scmp.ne.s32.totalorder %s45, %s48
      %p54 = scmp.eq.s32.totalorder %s21, 0
      %p55 = por %p53, %p54
      %p56 = scmp.ne.s32.totalorder %s45, %s48
      %p57 = scmp.eq.s32.totalorder %s26, 2
      %p58 = por %p56, %p57
      %p59 = scmp.ne.s32.totalorder %s48, %s49
      %p60 = scmp.eq.s32.totalorder %s26, 0
      %p61 = por %p59, %p60
      %p62 = scmp.ne.s32.totalorder %s48, %s49
      %p63 = scmp.eq.s32.totalorder %s27, 2
      %p64 = por %p62, %p63
      %p66 = scmp.ne.s32.totalorder %s49, %s65
      %p67 = scmp.eq.s32.totalorder %s27, 0
      %p68 = por %p66, %p67
      %s70 = sadd.s32 %s69, 1
      %p73 = scmp.eq.s32.totalorder %s21, 2
      %p74 = scmp.ne.s32.totalorder %s69, %s71
      %p75 = scmp.eq.s32.totalorder %s21, 0
      %p76 = por %p74, %p75
      %p77 = scmp.ne.s32.totalorder %s69, %s71
      %p78 = scmp.eq.s32.totalorder %s26, 2
      %p79 = por %p77, %p78
      %p80 = scmp.ne.s32.totalorder %s71, %s72
      %p81 = scmp.eq.s32.totalorder %s26, 0
      %p82 = por %p80, %p81
      %p83 = scmp.ne.s32.totalorder %s71, %s72
      %p84 = scmp.eq.s32.totalorder %s27, 2
      %p85 = por %p83, %p84
      %p87 = scmp.ne.s32.totalorder %s72, %s86
      %p88 = scmp.eq.s32.totalorder %s27, 0
      %p89 = por %p87, %p88
      %s91 = sadd.s32 %s90, 1
      %p94 = scmp.eq.s32.totalorder %s21, 2
      %p95 = scmp.ne.s32.totalorder %s90, %s92
      %p96 = scmp.eq.s32.totalorder %s21, 0
      %p97 = por %p95, %p96
      %p98 = scmp.ne.s32.totalorder %s90, %s92
      %p99 = scmp.eq.s32.totalorder %s26, 2
      %p100 = por %p98, %p99
      %p101 = scmp.ne.s32.totalorder %s92, %s93
      %p102 = scmp.eq.s32.totalorder %s26, 0
      %p103 = por %p101, %p102
      %p104 = scmp.ne.s32.totalorder %s92, %s93
      %p105 = scmp.eq.s32.totalorder %s27, 2
      %p106 = por %p104, %p105
      %p108 = scmp.ne.s32.totalorder %s93, %s107
      %p109 = scmp.eq.s32.totalorder %s27, 0
      %p110 = por %p108, %p109
      %s112 = sadd.s32 %s111, 1
      %p115 = scmp.eq.s32.totalorder %s21, 2
      %p116 = scmp.ne.s32.totalorder %s111, %s113
      %p117 = scmp.eq.s32.totalorder %s21, 0
      %p118 = por %p116, %p117
      %p119 = scmp.ne.s32.totalorder %s111, %s113
      %p120 = scmp.eq.s32.totalorder %s26, 2
      %p121 = por %p119, %p120
      %p122 = scmp.ne.s32.totalorder %s113, %s114
      %p123 = scmp.eq.s32.totalorder %s26, 0
      %p124 = por %p122, %p123
      %p125 = scmp.ne.s32.totalorder %s113, %s114
      %p126 = scmp.eq.s32.totalorder %s27, 2
      %p127 = por %p125, %p126
      %p129 = scmp.ne.s32.totalorder %s114, %s128
      %p130 = scmp.eq.s32.totalorder %s27, 0
      %p131 = por %p129, %p130
      %s132 = ssub.s32 %s29, %s36
      %s133 = ssub.s32 %s28, %s40
      %s134 = sor.u32 %s132, %s133
      %p135 = scmp.eq.s32.totalorder %s134, 0
      %s137 = sadd.s32 %s136, 1
      %s138 = scalar_select %p135, %s136, %s137
      %p141 = pneg %p135
      %p142 = scmp.eq.s32.totalorder %s21, 2
      %p143 = por %p141, %p142
      %p144 = scmp.ne.s32.totalorder %s136, %s139
      %p145 = scmp.eq.s32.totalorder %s21, 0
      %p146 = por %p144, %p145
      %p147 = scmp.ne.s32.totalorder %s136, %s139
      %p148 = scmp.eq.s32.totalorder %s26, 2
      %p149 = por %p147, %p148
      %p150 = scmp.ne.s32.totalorder %s139, %s140
      %p151 = scmp.eq.s32.totalorder %s26, 0
      %p152 = por %p150, %p151
      %p153 = scmp.ne.s32.totalorder %s139, %s140
      %p154 = scmp.eq.s32.totalorder %s27, 2
      %p155 = por %p153, %p154
      %p157 = scmp.ne.s32.totalorder %s140, %s156
      %p158 = scmp.eq.s32.totalorder %s27, 0
      %p159 = por %p157, %p158
      %s160 = ssub.s32 %s28, %s40
      %p161 = scmp.eq.s32.totalorder %s160, 0
      %s163 = sadd.s32 %s162, 1
      %s164 = scalar_select %p161, %s162, %s163
      %p167 = pneg %p161
      %p168 = scmp.eq.s32.totalorder %s21, 2
      %p169 = por %p167, %p168
      %p170 = scmp.ne.s32.totalorder %s162, %s165
      %p171 = scmp.eq.s32.totalorder %s21, 0
      %p172 = por %p170, %p171
      %p173 = scmp.ne.s32.totalorder %s162, %s165
      %p174 = scmp.eq.s32.totalorder %s26, 2
      %p175 = por %p173, %p174
      %p176 = scmp.ne.s32.totalorder %s165, %s166
      %p177 = scmp.eq.s32.totalorder %s26, 0
      %p178 = por %p176, %p177
      %p179 = scmp.ne.s32.totalorder %s165, %s166
      %p180 = scmp.eq.s32.totalorder %s27, 2
      %p181 = por %p179, %p180
      %p183 = scmp.ne.s32.totalorder %s166, %s182
      %p184 = scmp.eq.s32.totalorder %s27, 0
      %p185 = por %p183, %p184
      %s186 = ssub.s32 %s28, %s40
      %p187 = scmp.eq.s32.totalorder %s186, 0
      %s189 = sadd.s32 %s188, 1
      %s190 = scalar_select %p187, %s188, %s189
      %p193 = pneg %p187
      %p194 = scmp.eq.s32.totalorder %s21, 2
      %p195 = por %p193, %p194
      %p196 = scmp.ne.s32.totalorder %s188, %s191
      %p197 = scmp.eq.s32.totalorder %s21, 0
      %p198 = por %p196, %p197
      %p199 = scmp.ne.s32.totalorder %s188, %s191
      %p200 = scmp.eq.s32.totalorder %s26, 2
      %p201 = por %p199, %p200
      %p202 = scmp.ne.s32.totalorder %s191, %s192
      %p203 = scmp.eq.s32.totalorder %s26, 0
      %p204 = por %p202, %p203
      %p205 = scmp.ne.s32.totalorder %s191, %s192
      %p206 = scmp.eq.s32.totalorder %s27, 2
      %p207 = por %p205, %p206
      %p209 = scmp.ne.s32.totalorder %s192, %s208
      %p210 = scmp.eq.s32.totalorder %s27, 0
      %p211 = por %p209, %p210
      %p212 = scmp.le.s32.totalorder 1, %s21
      %p213 = scmp.lt.s32.totalorder %s21, 4
      %p214 = pnand %p212, %p213
      %p215 = pneg %p214
      // Predicated region
      $region9: #{tpu_custom_call.1} parent=5 // pred_check
        _
      $region10: #{tpu_custom_call.1} parent=5 // pred_check_branch
        %217 = sbr.rel (%p214) target = $region12
      $region11: #{tpu_custom_call.1} parent=5 // pred_region
        %s218 = ssub.s32 %s21, 1
        // Predicated region
        $region13: #{tpu_custom_call.1} parent=11 // pred_check
          %p219 = pneg %p82
        $region14: #{tpu_custom_call.1} parent=11 // pred_check_branch
          %221 = sbr.rel (%p219) target = $region16
        $region15: #{tpu_custom_call.1} parent=11 // pred_region
          %s223 = ssub.s32 4096, 4096
          %224 = vsyncadd [#allocation9], %s223
          %s225 = sshll.u32 [#allocation8], 4
          %s226 = int_to_ptr.vmem [resolvable:$true] %s225
          %231 = dma.hbm_to_vmem [thread:$0]  %s1, 4096, %s226, [#allocation9], 256, 256, 16
        $region16: #{tpu_custom_call.1} parent=11 // pred_fallthru
          _
        // Predicated region
        $region17: #{tpu_custom_call.1} parent=11 // pred_check
          %p232 = pneg %p103
        $region18: #{tpu_custom_call.1} parent=11 // pred_check_branch
          %234 = sbr.rel (%p232) target = $region20
        $region19: #{tpu_custom_call.1} parent=11 // pred_region
          %s236 = ssub.s32 4096, 4096
          %237 = vsyncadd [#allocation9], %s236
          %s238 = sshll.u32 [#allocation10], 4
          %s239 = int_to_ptr.vmem [resolvable:$true] %s238
          %244 = dma.hbm_to_vmem [thread:$0]  %s2, 4096, %s239, [#allocation9], 256, 256, 16
        $region20: #{tpu_custom_call.1} parent=11 // pred_fallthru
          _
        // Predicated region
        $region21: #{tpu_custom_call.1} parent=11 // pred_check
          %p245 = pneg %p124
        $region22: #{tpu_custom_call.1} parent=11 // pred_check_branch
          %247 = sbr.rel (%p245) target = $region24
        $region23: #{tpu_custom_call.1} parent=11 // pred_region
          _
        $region24: #{tpu_custom_call.1} parent=11 // pred_fallthru
          _
      $region12: #{tpu_custom_call.1} parent=5 // pred_fallthru
        _
      %p248 = scmp.lt.s32.totalorder %s21, 3
      // Predicated region
      $region25: #{tpu_custom_call.1} parent=5 // pred_check
        %p249 = pneg %p248
      $region26: #{tpu_custom_call.1} parent=5 // pred_check_branch
        %251 = sbr.rel (%p249) target = $region28
      $region27: #{tpu_custom_call.1} parent=5 // pred_region
        // Predicated region
        $region29: #{tpu_custom_call.1} parent=27 // pred_check
          %p252 = pneg %p55
        $region30: #{tpu_custom_call.1} parent=27 // pred_check_branch
          %254 = sbr.rel (%p252) target = $region32
        $region31: #{tpu_custom_call.1} parent=27 // pred_region
          %s255 = sand.u32 %s45, 1
          %s256 = scalar_lea.sflag [#allocation6], %s255
          %s257 = sand.u32 %s45, 1
          %s258 = smul.addr %s257, 16
          %s259 = scalar_lea.vmem [#allocation5], %s258
          %s260 = smul.u32 4, %s29
          %s262 = ssub.s32 256, 256
          %263 = vsyncadd %s256, %s262
          %s264 = sadd.s32 %s28, %s260
          %s265 = smul.addr %s264, 64
          %s266 = scalar_lea.hbm %s0, %s265
          %s267 = sshll.u32 %s259, 4
          %s268 = int_to_ptr.vmem [resolvable:$true] %s267
          %273 = dma.hbm_to_vmem [thread:$0]  %s266, 256, %s268, %s256, 64, 64, 4
        $region32: #{tpu_custom_call.1} parent=27 // pred_fallthru
          _
      $region28: #{tpu_custom_call.1} parent=5 // pred_fallthru
        _
      %p274 = scmp.le.s32.totalorder 1, %s21
      %p275 = scmp.lt.s32.totalorder %s21, 4
      %p276 = pnand %p274, %p275
      %p277 = pneg %p276
      // Predicated region
      $region33: #{tpu_custom_call.1} parent=5 // pred_check
        _
      $region34: #{tpu_custom_call.1} parent=5 // pred_check_branch
        %279 = sbr.rel (%p276) target = $region36
      $region35: #{tpu_custom_call.1} parent=5 // pred_region
        %s280 = ssub.s32 %s21, 1
        %s281 = sand.u32 %s48, 1
        %s282 = scalar_lea.sflag [#allocation6], %s281
        %s283 = sand.u32 %s48, 1
        %s284 = smul.addr %s283, 16
        %s285 = scalar_lea.vmem [#allocation5], %s284
        // Predicated region
        $region37: #{tpu_custom_call.1} parent=35 // pred_check
          %p286 = pneg %p61
        $region38: #{tpu_custom_call.1} parent=35 // pred_check_branch
          %288 = sbr.rel (%p286) target = $region40
        $region39: #{tpu_custom_call.1} parent=35 // pred_region
          %289 = dma.done %s282, 256
        $region40: #{tpu_custom_call.1} parent=35 // pred_fallthru
          _
        // Predicated region
        $region41: #{tpu_custom_call.1} parent=35 // pred_check
          %p290 = pneg %p82
        $region42: #{tpu_custom_call.1} parent=35 // pred_check_branch
          %292 = sbr.rel (%p290) target = $region44
        $region43: #{tpu_custom_call.1} parent=35 // pred_region
          %293 = dma.done [#allocation9], 4096
        $region44: #{tpu_custom_call.1} parent=35 // pred_fallthru
          _
        // Predicated region
        $region45: #{tpu_custom_call.1} parent=35 // pred_check
          %p294 = pneg %p103
        $region46: #{tpu_custom_call.1} parent=35 // pred_check_branch
          %296 = sbr.rel (%p294) target = $region48
        $region47: #{tpu_custom_call.1} parent=35 // pred_region
          %297 = dma.done [#allocation9], 4096
        $region48: #{tpu_custom_call.1} parent=35 // pred_fallthru
          _
        %s298 = sand.u32 %s48, 1
        %s299 = scalar_lea.sflag [#allocation6], %s298
        %s300 = sand.u32 %s48, 1
        %s301 = smul.addr %s300, 16
        %s302 = scalar_lea.vmem [#allocation5], %s301
        %p303 = pneg %p61
        %p304 = pneg %p58
        %p305 = pneg %p82
        %p306 = pneg %p79
        %p307 = pneg %p103
        %p308 = pneg %p100
        %p309 = pneg %p124
        %p310 = pneg %p121
        %p311 = pneg %p152
        %p312 = pneg %p149
        %s313 = sand.u32 %s139, 1
        %s314 = scalar_lea.sflag [#allocation7], %s313
        %s315 = sand.u32 %s139, 1
        %s316 = smul.addr %s315, 16
        %s317 = scalar_lea.vmem [#allocation11], %s316
        %p318 = pneg %p178
        %p319 = pneg %p175
        %p320 = pneg %p204
        %p321 = pneg %p201
        %s322 = smul.u32 4, %s31
        %s323 = smul.u32 4, %s31
        %p325 = scmp.eq.s32.totalorder %s31, 0
        // Predicated region
        $region49: #{tpu_custom_call.1} parent=35 // pred_check
          %p326 = pneg %p325
        $region50: #{tpu_custom_call.1} parent=35 // pred_check_branch
          %328 = sbr.rel (%p326) target = $region52
        $region51: #{tpu_custom_call.1} parent=35 // pred_region
          %329 = vst [vmem:[#allocation2] sm:$0xff] 0.0
          %330 = vst [vmem:[#allocation3] sm:$0xff] 0.0
        $region52: #{tpu_custom_call.1} parent=35 // pred_fallthru
          _
        %v331 = vld [vmem:[%s285] sm:$0xf]
        %v332 = vld [vmem:[%s285 + $0x4] sm:$0xf]
        %v333 = vld [vmem:[%s285 + $0x8] sm:$0xf]
        %v334 = vld [vmem:[%s285 + $0xc] sm:$0xf]
        %v335 = vld [vmem:[#allocation8] sm:$0xff]
        %v336 = vld [vmem:[#allocation8 + $0x8] sm:$0xff]
        %v337 = vld [vmem:[#allocation8 + $0x10] sm:$0xff]
        %v338 = vld [vmem:[#allocation8 + $0x18] sm:$0xff]
        %v339 = vld [vmem:[#allocation8 + $0x20] sm:$0xff]
        %v340 = vld [vmem:[#allocation8 + $0x28] sm:$0xff]
        %v341 = vld [vmem:[#allocation8 + $0x30] sm:$0xff]
        %v342 = vld [vmem:[#allocation8 + $0x38] sm:$0xff]
        %v343 = vld [vmem:[#allocation8 + $0x40] sm:$0xff]
        %v344 = vld [vmem:[#allocation8 + $0x48] sm:$0xff]
        %v345 = vld [vmem:[#allocation8 + $0x50] sm:$0xff]
        %v346 = vld [vmem:[#allocation8 + $0x58] sm:$0xff]
        %v347 = vld [vmem:[#allocation8 + $0x60] sm:$0xff]
        %v348 = vld [vmem:[#allocation8 + $0x68] sm:$0xff]
        %v349 = vld [vmem:[#allocation8 + $0x70] sm:$0xff]
        %v350 = vld [vmem:[#allocation8 + $0x78] sm:$0xff]
        %v351 = vld [vmem:[#allocation8 + $0x80] sm:$0xff]
        %v352 = vld [vmem:[#allocation8 + $0x88] sm:$0xff]
        %v353 = vld [vmem:[#allocation8 + $0x90] sm:$0xff]
        %v354 = vld [vmem:[#allocation8 + $0x98] sm:$0xff]
        %v355 = vld [vmem:[#allocation8 + $0xa0] sm:$0xff]
        %v356 = vld [vmem:[#allocation8 + $0xa8] sm:$0xff]
        %v357 = vld [vmem:[#allocation8 + $0xb0] sm:$0xff]
        %v358 = vld [vmem:[#allocation8 + $0xb8] sm:$0xff]
        %v359 = vld [vmem:[#allocation8 + $0xc0] sm:$0xff]
        %v360 = vld [vmem:[#allocation8 + $0xc8] sm:$0xff]
        %v361 = vld [vmem:[#allocation8 + $0xd0] sm:$0xff]
        %v362 = vld [vmem:[#allocation8 + $0xd8] sm:$0xff]
        %v363 = vld [vmem:[#allocation8 + $0xe0] sm:$0xff]
        %v364 = vld [vmem:[#allocation8 + $0xe8] sm:$0xff]
        %v365 = vld [vmem:[#allocation8 + $0xf0] sm:$0xff]
        %v366 = vld [vmem:[#allocation8 + $0xf8] sm:$0xff]
        %v367 = vld [vmem:[%s3] sm:$0xf]
        %v369 = vlaneseq
        %v370 = vshrl.u32 %v369, 7
        %v371 = vsub.s32 0, %v370
        %v372 = vrot.slane %v367, %v371
        %v373 = vlaneseq
        %v374 = vshrl.u32 %v373, 7
        %v375 = vsub.s32 1, %v374
        %v376 = vrot.slane %v367, %v375
        %v377 = vlaneseq
        %v378 = vshrl.u32 %v377, 7
        %v379 = vsub.s32 2, %v378
        %v380 = vrot.slane %v367, %v379
        %v381 = vlaneseq
        %v382 = vshrl.u32 %v381, 7
        %v383 = vsub.s32 3, %v382
        %v384 = vrot.slane %v367, %v383
        %v393 = vunpack.c.l.b16 %v331
        %v394 = vunpack.c.l.b16 %v332
        %v395 = vunpack.c.l.b16 %v333
        %v396 = vunpack.c.l.b16 %v334
        %v397 = vpack.c.b16 %v394, %v393
        %v398 = vpack.c.b16 %v396, %v395
        %v433 = vunpack.c.l.b16 %v335
        %v434 = vunpack.c.h.b16 %v335
        %v435 = vunpack.c.l.b16 %v336
        %v436 = vunpack.c.h.b16 %v336
        %v437 = vunpack.c.l.b16 %v337
        %v438 = vunpack.c.h.b16 %v337
        %v439 = vunpack.c.l.b16 %v338
        %v440 = vunpack.c.h.b16 %v338
        %v441 = vunpack.c.l.b16 %v339
        %v442 = vunpack.c.h.b16 %v339
        %v443 = vunpack.c.l.b16 %v340
        %v444 = vunpack.c.h.b16 %v340
        %v445 = vunpack.c.l.b16 %v341
        %v446 = vunpack.c.h.b16 %v341
        %v447 = vunpack.c.l.b16 %v342
        %v448 = vunpack.c.h.b16 %v342
        %v449 = vunpack.c.l.b16 %v343
        %v450 = vunpack.c.h.b16 %v343
        %v451 = vunpack.c.l.b16 %v344
        %v452 = vunpack.c.h.b16 %v344
        %v453 = vunpack.c.l.b16 %v345
        %v454 = vunpack.c.h.b16 %v345
        %v455 = vunpack.c.l.b16 %v346
        %v456 = vunpack.c.h.b16 %v346
        %v457 = vunpack.c.l.b16 %v347
        %v458 = vunpack.c.h.b16 %v347
        %v459 = vunpack.c.l.b16 %v348
        %v460 = vunpack.c.h.b16 %v348
        %v461 = vunpack.c.l.b16 %v349
        %v462 = vunpack.c.h.b16 %v349
        %v463 = vunpack.c.l.b16 %v350
        %v464 = vunpack.c.h.b16 %v350
        %v465 = vunpack.c.l.b16 %v351
        %v466 = vunpack.c.h.b16 %v351
        %v467 = vunpack.c.l.b16 %v352
        %v468 = vunpack.c.h.b16 %v352
        %v469 = vunpack.c.l.b16 %v353
        %v470 = vunpack.c.h.b16 %v353
        %v471 = vunpack.c.l.b16 %v354
        %v472 = vunpack.c.h.b16 %v354
        %v473 = vunpack.c.l.b16 %v355
        %v474 = vunpack.c.h.b16 %v355
        %v475 = vunpack.c.l.b16 %v356
        %v476 = vunpack.c.h.b16 %v356
        %v477 = vunpack.c.l.b16 %v357
        %v478 = vunpack.c.h.b16 %v357
        %v479 = vunpack.c.l.b16 %v358
        %v480 = vunpack.c.h.b16 %v358
        %v481 = vunpack.c.l.b16 %v359
        %v482 = vunpack.c.h.b16 %v359
        %v483 = vunpack.c.l.b16 %v360
        %v484 = vunpack.c.h.b16 %v360
        %v485 = vunpack.c.l.b16 %v361
        %v486 = vunpack.c.h.b16 %v361
        %v487 = vunpack.c.l.b16 %v362
        %v488 = vunpack.c.h.b16 %v362
        %v489 = vunpack.c.l.b16 %v363
        %v490 = vunpack.c.h.b16 %v363
        %v491 = vunpack.c.l.b16 %v364
        %v492 = vunpack.c.h.b16 %v364
        %v493 = vunpack.c.l.b16 %v365
        %v494 = vunpack.c.h.b16 %v365
        %v495 = vunpack.c.l.b16 %v366
        %v496 = vunpack.c.h.b16 %v366
        %v497 = vpack.c.b16 %v437, %v433
        %v498 = vpack.c.b16 %v438, %v434
        %v499 = vpack.c.b16 %v439, %v435
        %v500 = vpack.c.b16 %v440, %v436
        %v501 = vpack.c.b16 %v445, %v441
        %v502 = vpack.c.b16 %v446, %v442
        %v503 = vpack.c.b16 %v447, %v443
        %v504 = vpack.c.b16 %v448, %v444
        %v505 = vpack.c.b16 %v453, %v449
        %v506 = vpack.c.b16 %v454, %v450
        %v507 = vpack.c.b16 %v455, %v451
        %v508 = vpack.c.b16 %v456, %v452
        %v509 = vpack.c.b16 %v461, %v457
        %v510 = vpack.c.b16 %v462, %v458
        %v511 = vpack.c.b16 %v463, %v459
        %v512 = vpack.c.b16 %v464, %v460
        %v513 = vpack.c.b16 %v469, %v465
        %v514 = vpack.c.b16 %v470, %v466
        %v515 = vpack.c.b16 %v471, %v467
        %v516 = vpack.c.b16 %v472, %v468
        %v517 = vpack.c.b16 %v477, %v473
        %v518 = vpack.c.b16 %v478, %v474
        %v519 = vpack.c.b16 %v479, %v475
        %v520 = vpack.c.b16 %v480, %v476
        %v521 = vpack.c.b16 %v485, %v481
        %v522 = vpack.c.b16 %v486, %v482
        %v523 = vpack.c.b16 %v487, %v483
        %v524 = vpack.c.b16 %v488, %v484
        %v525 = vpack.c.b16 %v493, %v489
        %v526 = vpack.c.b16 %v494, %v490
        %v527 = vpack.c.b16 %v495, %v491
        %v528 = vpack.c.b16 %v496, %v492
        %561 = vmatprep.subr.bf16.mxu0 %v498
        %562 = vmatpush1.bf16.msra.mxu0 %v497
        %563 = vmatprep.subr.bf16.mxu0 %v502
        %564 = vmatpush1.bf16.msra.mxu0 %v501
        %565 = vmatprep.subr.bf16.mxu0 %v506
        %566 = vmatpush1.bf16.msra.mxu0 %v505
        %567 = vmatprep.subr.bf16.mxu0 %v510
        %568 = vmatpush1.bf16.msra.mxu0 %v509
        %569 = vmatprep.subr.bf16.mxu0 %v514
        %570 = vmatpush1.bf16.msra.mxu0 %v513
        %571 = vmatprep.subr.bf16.mxu0 %v518
        %572 = vmatpush1.bf16.msra.mxu0 %v517
        %573 = vmatprep.subr.bf16.mxu0 %v522
        %574 = vmatpush1.bf16.msra.mxu0 %v521
        %575 = vmatprep.subr.bf16.mxu0 %v526
        %576 = vmatpush1.bf16.msra.mxu0 %v525
        %577 = vmatprep.subr.bf16.mxu0 0
        %578 = vmatpush1.bf16.msra.mxu0 0
        %579 = vmatprep.subr.bf16.mxu0 0
        %580 = vmatpush1.bf16.msra.mxu0 0
        %581 = vmatprep.subr.bf16.mxu0 0
        %582 = vmatpush1.bf16.msra.mxu0 0
        %583 = vmatprep.subr.bf16.mxu0 0
        %584 = vmatpush1.bf16.msra.mxu0 0
        %585 = vmatprep.subr.bf16.mxu0 0
        %586 = vmatpush1.bf16.msra.mxu0 0
        %587 = vmatprep.subr.bf16.mxu0 0
        %588 = vmatpush1.bf16.msra.mxu0 0
        %589 = vmatprep.subr.bf16.mxu0 0
        %590 = vmatpush1.bf16.msra.mxu0 0
        %591 = vmatprep.subr.bf16.mxu0 0
        %592 = vmatpush1.bf16.msra.mxu0 0
        %593 = vmatprep.mubr.bf16.mxu0 0
        %594 = vmatmul.mubr.bf16.gmra.mrb[0].mxu0 %v397
        %v595 = vpop.f32.mrb[0].mxu0
        %v596 = vadd.f32 %v372, %v595
        %v597 = vpop.f32.mrb[0].mxu0
        %v598 = vadd.f32 %v376, %v597
        %v599 = vpop.f32.mrb[0].mxu0
        %v600 = vadd.f32 %v372, %v599
        %v601 = vpop.f32.mrb[0].mxu0
        %v602 = vadd.f32 %v376, %v601
        %603 = vmatprep.mubr.bf16.mxu0 0
        %604 = vmatmul.mubr.bf16.gmra.mrb[0].mxu0 %v398
        %v605 = vpop.f32.mrb[0].mxu0
        %v606 = vadd.f32 %v372, %v605
        %v607 = vpop.f32.mrb[0].mxu0
        %v608 = vadd.f32 %v376, %v607
        %v609 = vpop.f32.mrb[0].mxu0
        %v610 = vadd.f32 %v372, %v609
        %v611 = vpop.f32.mrb[0].mxu0
        %v612 = vadd.f32 %v376, %v611
        %613 = vdwg.mxu0
        %614 = vmatprep.subr.bf16.mxu0 %v500
        %615 = vmatpush1.bf16.msra.mxu0 %v499
        %616 = vmatprep.subr.bf16.mxu0 %v504
        %617 = vmatpush1.bf16.msra.mxu0 %v503
        %618 = vmatprep.subr.bf16.mxu0 %v508
        %619 = vmatpush1.bf16.msra.mxu0 %v507
        %620 = vmatprep.subr.bf16.mxu0 %v512
        %621 = vmatpush1.bf16.msra.mxu0 %v511
        %622 = vmatprep.subr.bf16.mxu0 %v516
        %623 = vmatpush1.bf16.msra.mxu0 %v515
        %624 = vmatprep.subr.bf16.mxu0 %v520
        %625 = vmatpush1.bf16.msra.mxu0 %v519
        %626 = vmatprep.subr.bf16.mxu0 %v524
        %627 = vmatpush1.bf16.msra.mxu0 %v523
        %628 = vmatprep.subr.bf16.mxu0 %v528
        %629 = vmatpush1.bf16.msra.mxu0 %v527
        %630 = vmatprep.subr.bf16.mxu0 0
        %631 = vmatpush1.bf16.msra.mxu0 0
        %632 = vmatprep.subr.bf16.mxu0 0
        %633 = vmatpush1.bf16.msra.mxu0 0
        %634 = vmatprep.subr.bf16.mxu0 0
        %635 = vmatpush1.bf16.msra.mxu0 0
        %636 = vmatprep.subr.bf16.mxu0 0
        %637 = vmatpush1.bf16.msra.mxu0 0
        %638 = vmatprep.subr.bf16.mxu0 0
        %639 = vmatpush1.bf16.msra.mxu0 0
        %640 = vmatprep.subr.bf16.mxu0 0
        %641 = vmatpush1.bf16.msra.mxu0 0
        %642 = vmatprep.subr.bf16.mxu0 0
        %643 = vmatpush1.bf16.msra.mxu0 0
        %644 = vmatprep.subr.bf16.mxu0 0
        %645 = vmatpush1.bf16.msra.mxu0 0
        %646 = vmatprep.mubr.bf16.mxu0 0
        %647 = vmatmul.mubr.bf16.gmra.mrb[0].mxu0 %v397
        %v648 = vpop.f32.mrb[0].mxu0
        %v649 = vadd.f32 %v380, %v648
        %v650 = vpop.f32.mrb[0].mxu0
        %v651 = vadd.f32 %v384, %v650
        %v652 = vpop.f32.mrb[0].mxu0
        %v653 = vadd.f32 %v380, %v652
        %v654 = vpop.f32.mrb[0].mxu0
        %v655 = vadd.f32 %v384, %v654
        %656 = vmatprep.mubr.bf16.mxu0 0
        %657 = vmatmul.mubr.bf16.gmra.mrb[0].mxu0 %v398
        %v658 = vpop.f32.mrb[0].mxu0
        %v659 = vadd.f32 %v380, %v658
        %v660 = vpop.f32.mrb[0].mxu0
        %v661 = vadd.f32 %v384, %v660
        %v662 = vpop.f32.mrb[0].mxu0
        %v663 = vadd.f32 %v380, %v662
        %v664 = vpop.f32.mrb[0].mxu0
        %v665 = vadd.f32 %v384, %v664
        %666 = vdwg.mxu0
        %667 = vst [vmem:[#allocation4] sm:$0xff] %v596
        %668 = vst [vmem:[#allocation4 + $0x8] sm:$0xff] %v598
        %669 = vst [vmem:[#allocation4 + $0x10] sm:$0xff] %v649
        %670 = vst [vmem:[#allocation4 + $0x18] sm:$0xff] %v651
        %671 = vst [vmem:[#allocation4 + $0x20] sm:$0xff] %v600
        %672 = vst [vmem:[#allocation4 + $0x28] sm:$0xff] %v602
        %673 = vst [vmem:[#allocation4 + $0x30] sm:$0xff] %v653
        %674 = vst [vmem:[#allocation4 + $0x38] sm:$0xff] %v655
        %675 = vst [vmem:[#allocation4 + $0x40] sm:$0xff] %v606
        %676 = vst [vmem:[#allocation4 + $0x48] sm:$0xff] %v608
        %677 = vst [vmem:[#allocation4 + $0x50] sm:$0xff] %v659
        %678 = vst [vmem:[#allocation4 + $0x58] sm:$0xff] %v661
        %679 = vst [vmem:[#allocation4 + $0x60] sm:$0xff] %v610
        %680 = vst [vmem:[#allocation4 + $0x68] sm:$0xff] %v612
        %681 = vst [vmem:[#allocation4 + $0x70] sm:$0xff] %v663
        %682 = vst [vmem:[#allocation4 + $0x78] sm:$0xff] %v665
        %v683 = vld [vmem:[#allocation2] sm:$0xff]
        %v684 = vld [vmem:[#allocation3] sm:$0xff]
        %v685 = vld [vmem:[#allocation4] sm:$0xff]
        %v686 = vld [vmem:[#allocation4 + $0x8] sm:$0xff]
        %v687 = vld [vmem:[#allocation4 + $0x10] sm:$0xff]
        %v688 = vld [vmem:[#allocation4 + $0x18] sm:$0xff]
        %v689 = vpack.c.bf16 %v683, %v683
        %v690 = vld [vmem:[#allocation10] sm:$0xff]
        %v691 = vld [vmem:[#allocation10 + $0x8] sm:$0xff]
        %v692 = vld [vmem:[#allocation10 + $0x10] sm:$0xff]
        %v693 = vld [vmem:[#allocation10 + $0x18] sm:$0xff]
        %v694 = vld [vmem:[#allocation10 + $0x20] sm:$0xff]
        %v695 = vld [vmem:[#allocation10 + $0x28] sm:$0xff]
        %v696 = vld [vmem:[#allocation10 + $0x30] sm:$0xff]
        %v697 = vld [vmem:[#allocation10 + $0x38] sm:$0xff]
        %v698 = vld [vmem:[#allocation10 + $0x40] sm:$0xff]
        %v699 = vld [vmem:[#allocation10 + $0x48] sm:$0xff]
        %v700 = vld [vmem:[#allocation10 + $0x50] sm:$0xff]
        %v701 = vld [vmem:[#allocation10 + $0x58] sm:$0xff]
        %v702 = vld [vmem:[#allocation10 + $0x60] sm:$0xff]
        %v703 = vld [vmem:[#allocation10 + $0x68] sm:$0xff]
        %v704 = vld [vmem:[#allocation10 + $0x70] sm:$0xff]
        %v705 = vld [vmem:[#allocation10 + $0x78] sm:$0xff]
        %v706 = vld [vmem:[#allocation10 + $0x80] sm:$0xff]
        %v707 = vld [vmem:[#allocation10 + $0x88] sm:$0xff]
        %v708 = vld [vmem:[#allocation10 + $0x90] sm:$0xff]
        %v709 = vld [vmem:[#allocation10 + $0x98] sm:$0xff]
        %v710 = vld [vmem:[#allocation10 + $0xa0] sm:$0xff]
        %v711 = vld [vmem:[#allocation10 + $0xa8] sm:$0xff]
        %v712 = vld [vmem:[#allocation10 + $0xb0] sm:$0xff]
        %v713 = vld [vmem:[#allocation10 + $0xb8] sm:$0xff]
        %v714 = vld [vmem:[#allocation10 + $0xc0] sm:$0xff]
        %v715 = vld [vmem:[#allocation10 + $0xc8] sm:$0xff]
        %v716 = vld [vmem:[#allocation10 + $0xd0] sm:$0xff]
        %v717 = vld [vmem:[#allocation10 + $0xd8] sm:$0xff]
        %v718 = vld [vmem:[#allocation10 + $0xe0] sm:$0xff]
        %v719 = vld [vmem:[#allocation10 + $0xe8] sm:$0xff]
        %v720 = vld [vmem:[#allocation10 + $0xf0] sm:$0xff]
        %v721 = vld [vmem:[#allocation10 + $0xf8] sm:$0xff]
        %v754 = vunpack.c.l.b16 %v690
        %v755 = vunpack.c.h.b16 %v690
        %v756 = vunpack.c.l.b16 %v691
        %v757 = vunpack.c.h.b16 %v691
        %v758 = vunpack.c.l.b16 %v692
        %v759 = vunpack.c.h.b16 %v692
        %v760 = vunpack.c.l.b16 %v693
        %v761 = vunpack.c.h.b16 %v693
        %v762 = vunpack.c.l.b16 %v694
        %v763 = vunpack.c.h.b16 %v694
        %v764 = vunpack.c.l.b16 %v695
        %v765 = vunpack.c.h.b16 %v695
        %v766 = vunpack.c.l.b16 %v696
        %v767 = vunpack.c.h.b16 %v696
        %v768 = vunpack.c.l.b16 %v697
        %v769 = vunpack.c.h.b16 %v697
        %v770 = vunpack.c.l.b16 %v698
        %v771 = vunpack.c.h.b16 %v698
        %v772 = vunpack.c.l.b16 %v699
        %v773 = vunpack.c.h.b16 %v699
        %v774 = vunpack.c.l.b16 %v700
        %v775 = vunpack.c.h.b16 %v700
        %v776 = vunpack.c.l.b16 %v701
        %v777 = vunpack.c.h.b16 %v701
        %v778 = vunpack.c.l.b16 %v702
        %v779 = vunpack.c.h.b16 %v702
        %v780 = vunpack.c.l.b16 %v703
        %v781 = vunpack.c.h.b16 %v703
        %v782 = vunpack.c.l.b16 %v704
        %v783 = vunpack.c.h.b16 %v704
        %v784 = vunpack.c.l.b16 %v705
        %v785 = vunpack.c.h.b16 %v705
        %v786 = vunpack.c.l.b16 %v706
        %v787 = vunpack.c.h.b16 %v706
        %v788 = vunpack.c.l.b16 %v707
        %v789 = vunpack.c.h.b16 %v707
        %v790 = vunpack.c.l.b16 %v708
        %v791 = vunpack.c.h.b16 %v708
        %v792 = vunpack.c.l.b16 %v709
        %v793 = vunpack.c.h.b16 %v709
        %v794 = vunpack.c.l.b16 %v710
        %v795 = vunpack.c.h.b16 %v710
        %v796 = vunpack.c.l.b16 %v711
        %v797 = vunpack.c.h.b16 %v711
        %v798 = vunpack.c.l.b16 %v712
        %v799 = vunpack.c.h.b16 %v712
        %v800 = vunpack.c.l.b16 %v713
        %v801 = vunpack.c.h.b16 %v713
        %v802 = vunpack.c.l.b16 %v714
        %v803 = vunpack.c.h.b16 %v714
        %v804 = vunpack.c.l.b16 %v715
        %v805 = vunpack.c.h.b16 %v715
        %v806 = vunpack.c.l.b16 %v716
        %v807 = vunpack.c.h.b16 %v716
        %v808 = vunpack.c.l.b16 %v717
        %v809 = vunpack.c.h.b16 %v717
        %v810 = vunpack.c.l.b16 %v718
        %v811 = vunpack.c.h.b16 %v718
        %v812 = vunpack.c.l.b16 %v719
        %v813 = vunpack.c.h.b16 %v719
        %v814 = vunpack.c.l.b16 %v720
        %v815 = vunpack.c.h.b16 %v720
        %v816 = vunpack.c.l.b16 %v721
        %v817 = vunpack.c.h.b16 %v721
        %v818 = vpack.c.b16 %v758, %v754
        %v819 = vpack.c.b16 %v759, %v755
        %v820 = vpack.c.b16 %v760, %v756
        %v821 = vpack.c.b16 %v761, %v757
        %v822 = vpack.c.b16 %v766, %v762
        %v823 = vpack.c.b16 %v767, %v763
        %v824 = vpack.c.b16 %v768, %v764
        %v825 = vpack.c.b16 %v769, %v765
        %v826 = vpack.c.b16 %v774, %v770
        %v827 = vpack.c.b16 %v775, %v771
        %v828 = vpack.c.b16 %v776, %v772
        %v829 = vpack.c.b16 %v777, %v773
        %v830 = vpack.c.b16 %v782, %v778
        %v831 = vpack.c.b16 %v783, %v779
        %v832 = vpack.c.b16 %v784, %v780
        %v833 = vpack.c.b16 %v785, %v781
        %v834 = vpack.c.b16 %v790, %v786
        %v835 = vpack.c.b16 %v791, %v787
        %v836 = vpack.c.b16 %v792, %v788
        %v837 = vpack.c.b16 %v793, %v789
        %v838 = vpack.c.b16 %v798, %v794
        %v839 = vpack.c.b16 %v799, %v795
        %v840 = vpack.c.b16 %v800, %v796
        %v841 = vpack.c.b16 %v801, %v797
        %v842 = vpack.c.b16 %v806, %v802
        %v843 = vpack.c.b16 %v807, %v803
        %v844 = vpack.c.b16 %v808, %v804
        %v845 = vpack.c.b16 %v809, %v805
        %v846 = vpack.c.b16 %v814, %v810
        %v847 = vpack.c.b16 %v815, %v811
        %v848 = vpack.c.b16 %v816, %v812
        %v849 = vpack.c.b16 %v817, %v813
        %882 = vmatprep.subr.bf16.mxu0 %v819
        %883 = vmatpush1.bf16.msra.mxu0 %v818
        %884 = vmatprep.subr.bf16.mxu0 %v823
        %885 = vmatpush1.bf16.msra.mxu0 %v822
        %886 = vmatprep.subr.bf16.mxu0 %v827
        %887 = vmatpush1.bf16.msra.mxu0 %v826
        %888 = vmatprep.subr.bf16.mxu0 %v831
        %889 = vmatpush1.bf16.msra.mxu0 %v830
        %890 = vmatprep.subr.bf16.mxu0 %v835
        %891 = vmatpush1.bf16.msra.mxu0 %v834
        %892 = vmatprep.subr.bf16.mxu0 %v839
        %893 = vmatpush1.bf16.msra.mxu0 %v838
        %894 = vmatprep.subr.bf16.mxu0 %v843
        %895 = vmatpush1.bf16.msra.mxu0 %v842
        %896 = vmatprep.subr.bf16.mxu0 %v847
        %897 = vmatpush1.bf16.msra.mxu0 %v846
        %898 = vmatprep.subr.bf16.mxu0 0
        %899 = vmatpush1.bf16.msra.mxu0 0
        %900 = vmatprep.subr.bf16.mxu0 0
        %901 = vmatpush1.bf16.msra.mxu0 0
        %902 = vmatprep.subr.bf16.mxu0 0
        %903 = vmatpush1.bf16.msra.mxu0 0
        %904 = vmatprep.subr.bf16.mxu0 0
        %905 = vmatpush1.bf16.msra.mxu0 0
        %906 = vmatprep.subr.bf16.mxu0 0
        %907 = vmatpush1.bf16.msra.mxu0 0
        %908 = vmatprep.subr.bf16.mxu0 0
        %909 = vmatpush1.bf16.msra.mxu0 0
        %910 = vmatprep.subr.bf16.mxu0 0
        %911 = vmatpush1.bf16.msra.mxu0 0
        %912 = vmatprep.subr.bf16.mxu0 0
        %913 = vmatpush1.bf16.msra.mxu0 0
        %914 = vmatprep.mubr.bf16.mxu0 0
        %915 = vmatmul.mubr.bf16.gmra.mrb[0].mxu0 %v689
        %v916 = vpop.f32.mrb[0].mxu0
        %v917 = vadd.f32 0.0, %v916
        %v918 = vpop.f32.mrb[0].mxu0
        %v919 = vadd.f32 0.0, %v918
        %v920 = vpop.f32.mrb[0].mxu0
        %v921 = vpop.f32.mrb[0].mxu0
        %922 = vdwg.mxu0
        %923 = vmatprep.subr.bf16.mxu0 %v821
        %924 = vmatpush1.bf16.msra.mxu0 %v820
        %925 = vmatprep.subr.bf16.mxu0 %v825
        %926 = vmatpush1.bf16.msra.mxu0 %v824
        %927 = vmatprep.subr.bf16.mxu0 %v829
        %928 = vmatpush1.bf16.msra.mxu0 %v828
        %929 = vmatprep.subr.bf16.mxu0 %v833
        %930 = vmatpush1.bf16.msra.mxu0 %v832
        %931 = vmatprep.subr.bf16.mxu0 %v837
        %932 = vmatpush1.bf16.msra.mxu0 %v836
        %933 = vmatprep.subr.bf16.mxu0 %v841
        %934 = vmatpush1.bf16.msra.mxu0 %v840
        %935 = vmatprep.subr.bf16.mxu0 %v845
        %936 = vmatpush1.bf16.msra.mxu0 %v844
        %937 = vmatprep.subr.bf16.mxu0 %v849
        %938 = vmatpush1.bf16.msra.mxu0 %v848
        %939 = vmatprep.subr.bf16.mxu0 0
        %940 = vmatpush1.bf16.msra.mxu0 0
        %941 = vmatprep.subr.bf16.mxu0 0
        %942 = vmatpush1.bf16.msra.mxu0 0
        %943 = vmatprep.subr.bf16.mxu0 0
        %944 = vmatpush1.bf16.msra.mxu0 0
        %945 = vmatprep.subr.bf16.mxu0 0
        %946 = vmatpush1.bf16.msra.mxu0 0
        %947 = vmatprep.subr.bf16.mxu0 0
        %948 = vmatpush1.bf16.msra.mxu0 0
        %949 = vmatprep.subr.bf16.mxu0 0
        %950 = vmatpush1.bf16.msra.mxu0 0
        %951 = vmatprep.subr.bf16.mxu0 0
        %952 = vmatpush1.bf16.msra.mxu0 0
        %953 = vmatprep.subr.bf16.mxu0 0
        %954 = vmatpush1.bf16.msra.mxu0 0
        %955 = vmatprep.mubr.bf16.mxu0 0
        %956 = vmatmul.mubr.bf16.gmra.mrb[0].mxu0 %v689
        %v957 = vpop.f32.mrb[0].mxu0
        %v958 = vadd.f32 0.0, %v957
        %v959 = vpop.f32.mrb[0].mxu0
        %v960 = vadd.f32 0.0, %v959
        %v961 = vpop.f32.mrb[0].mxu0
        %v962 = vpop.f32.mrb[0].mxu0
        %963 = vdwg.mxu0
        %v964 = vadd.f32 %v685, %v917
        %v965 = vadd.f32 %v686, %v919
        %v966 = vadd.f32 %v687, %v958
        %v967 = vadd.f32 %v688, %v960
        %v968 = vmul.f32 %v964, 0.5
        %v969 = vtanh.pop %v968
        %v970 = vmul.f32 %v969, 0.5
        %v971 = vadd.f32 %v970, 0.5
        %v972 = vmul.f32 %v965, 0.5
        %v973 = vtanh.pop %v972
        %v974 = vmul.f32 %v973, 0.5
        %v975 = vadd.f32 %v974, 0.5
        %v976 = vtanh.pop %v966
        %v977 = vmul.f32 %v967, 0.5
        %v978 = vtanh.pop %v977
        %v979 = vmul.f32 %v978, 0.5
        %v980 = vadd.f32 %v979, 0.5
        %v981 = vmul.f32 %v975, %v684
        %v982 = vmul.f32 %v971, %v976
        %v983 = vadd.f32 %v981, %v982
        %v984 = vtanh.pop %v983
        %v985 = vmul.f32 %v980, %v984
        %s986 = smul.u32 %s31, 4
        %p987 = scmp.lt.s32.totalorder %s986, 10
        %s988 = scalar_select %p987, 1, 0
        %v989 = vstv %s988
        %vm990 = vcmp.eq.s32.totalorder %v989, 1
        %v991 = vsel %vm990, %v985, %v683
        %v992 = vsel %vm990, %v983, %v684
        %v993 = vpack.c.bf16 %v991, %v991
        %994 = vst [vmem:[%s317] sm:$0xf] %v993
        %s995 = scalar_lea.vmem [#allocation4], 32
        %v996 = vld [vmem:[%s995] sm:$0xff]
        %v997 = vld [vmem:[%s995 + $0x8] sm:$0xff]
        %v998 = vld [vmem:[%s995 + $0x10] sm:$0xff]
        %v999 = vld [vmem:[%s995 + $0x18] sm:$0xff]
        %v1000 = vld [vmem:[#allocation10] sm:$0xff]
        %v1001 = vld [vmem:[#allocation10 + $0x8] sm:$0xff]
        %v1002 = vld [vmem:[#allocation10 + $0x10] sm:$0xff]
        %v1003 = vld [vmem:[#allocation10 + $0x18] sm:$0xff]
        %v1004 = vld [vmem:[#allocation10 + $0x20] sm:$0xff]
        %v1005 = vld [vmem:[#allocation10 + $0x28] sm:$0xff]
        %v1006 = vld [vmem:[#allocation10 + $0x30] sm:$0xff]
        %v1007 = vld [vmem:[#allocation10 + $0x38] sm:$0xff]
        %v1008 = vld [vmem:[#allocation10 + $0x40] sm:$0xff]
        %v1009 = vld [vmem:[#allocation10 + $0x48] sm:$0xff]
        %v1010 = vld [vmem:[#allocation10 + $0x50] sm:$0xff]
        %v1011 = vld [vmem:[#allocation10 + $0x58] sm:$0xff]
        %v1012 = vld [vmem:[#allocation10 + $0x60] sm:$0xff]
        %v1013 = vld [vmem:[#allocation10 + $0x68] sm:$0xff]
        %v1014 = vld [vmem:[#allocation10 + $0x70] sm:$0xff]
        %v1015 = vld [vmem:[#allocation10 + $0x78] sm:$0xff]
        %v1016 = vld [vmem:[#allocation10 + $0x80] sm:$0xff]
        %v1017 = vld [vmem:[#allocation10 + $0x88] sm:$0xff]
        %v1018 = vld [vmem:[#allocation10 + $0x90] sm:$0xff]
        %v1019 = vld [vmem:[#allocation10 + $0x98] sm:$0xff]
        %v1020 = vld [vmem:[#allocation10 + $0xa0] sm:$0xff]
        %v1021 = vld [vmem:[#allocation10 + $0xa8] sm:$0xff]
        %v1022 = vld [vmem:[#allocation10 + $0xb0] sm:$0xff]
        %v1023 = vld [vmem:[#allocation10 + $0xb8] sm:$0xff]
        %v1024 = vld [vmem:[#allocation10 + $0xc0] sm:$0xff]
        %v1025 = vld [vmem:[#allocation10 + $0xc8] sm:$0xff]
        %v1026 = vld [vmem:[#allocation10 + $0xd0] sm:$0xff]
        %v1027 = vld [vmem:[#allocation10 + $0xd8] sm:$0xff]
        %v1028 = vld [vmem:[#allocation10 + $0xe0] sm:$0xff]
        %v1029 = vld [vmem:[#allocation10 + $0xe8] sm:$0xff]
        %v1030 = vld [vmem:[#allocation10 + $0xf0] sm:$0xff]
        %v1031 = vld [vmem:[#allocation10 + $0xf8] sm:$0xff]
        %v1064 = vunpack.c.l.b16 %v1000
        %v1065 = vunpack.c.h.b16 %v1000
        %v1066 = vunpack.c.l.b16 %v1001
        %v1067 = vunpack.c.h.b16 %v1001
        %v1068 = vunpack.c.l.b16 %v1002
        %v1069 = vunpack.c.h.b16 %v1002
        %v1070 = vunpack.c.l.b16 %v1003
        %v1071 = vunpack.c.h.b16 %v1003
        %v1072 = vunpack.c.l.b16 %v1004
        %v1073 = vunpack.c.h.b16 %v1004
        %v1074 = vunpack.c.l.b16 %v1005
        %v1075 = vunpack.c.h.b16 %v1005
        %v1076 = vunpack.c.l.b16 %v1006
        %v1077 = vunpack.c.h.b16 %v1006
        %v1078 = vunpack.c.l.b16 %v1007
        %v1079 = vunpack.c.h.b16 %v1007
        %v1080 = vunpack.c.l.b16 %v1008
        %v1081 = vunpack.c.h.b16 %v1008
        %v1082 = vunpack.c.l.b16 %v1009
        %v1083 = vunpack.c.h.b16 %v1009
        %v1084 = vunpack.c.l.b16 %v1010
        %v1085 = vunpack.c.h.b16 %v1010
        %v1086 = vunpack.c.l.b16 %v1011
        %v1087 = vunpack.c.h.b16 %v1011
        %v1088 = vunpack.c.l.b16 %v1012
        %v1089 = vunpack.c.h.b16 %v1012
        %v1090 = vunpack.c.l.b16 %v1013
        %v1091 = vunpack.c.h.b16 %v1013
        %v1092 = vunpack.c.l.b16 %v1014
        %v1093 = vunpack.c.h.b16 %v1014
        %v1094 = vunpack.c.l.b16 %v1015
        %v1095 = vunpack.c.h.b16 %v1015
        %v1096 = vunpack.c.l.b16 %v1016
        %v1097 = vunpack.c.h.b16 %v1016
        %v1098 = vunpack.c.l.b16 %v1017
        %v1099 = vunpack.c.h.b16 %v1017
        %v1100 = vunpack.c.l.b16 %v1018
        %v1101 = vunpack.c.h.b16 %v1018
        %v1102 = vunpack.c.l.b16 %v1019
        %v1103 = vunpack.c.h.b16 %v1019
        %v1104 = vunpack.c.l.b16 %v1020
        %v1105 = vunpack.c.h.b16 %v1020
        %v1106 = vunpack.c.l.b16 %v1021
        %v1107 = vunpack.c.h.b16 %v1021
        %v1108 = vunpack.c.l.b16 %v1022
        %v1109 = vunpack.c.h.b16 %v1022
        %v1110 = vunpack.c.l.b16 %v1023
        %v1111 = vunpack.c.h.b16 %v1023
        %v1112 = vunpack.c.l.b16 %v1024
        %v1113 = vunpack.c.h.b16 %v1024
        %v1114 = vunpack.c.l.b16 %v1025
        %v1115 = vunpack.c.h.b16 %v1025
        %v1116 = vunpack.c.l.b16 %v1026
        %v1117 = vunpack.c.h.b16 %v1026
        %v1118 = vunpack.c.l.b16 %v1027
        %v1119 = vunpack.c.h.b16 %v1027
        %v1120 = vunpack.c.l.b16 %v1028
        %v1121 = vunpack.c.h.b16 %v1028
        %v1122 = vunpack.c.l.b16 %v1029
        %v1123 = vunpack.c.h.b16 %v1029
        %v1124 = vunpack.c.l.b16 %v1030
        %v1125 = vunpack.c.h.b16 %v1030
        %v1126 = vunpack.c.l.b16 %v1031
        %v1127 = vunpack.c.h.b16 %v1031
        %v1128 = vpack.c.b16 %v1068, %v1064
        %v1129 = vpack.c.b16 %v1069, %v1065
        %v1130 = vpack.c.b16 %v1070, %v1066
        %v1131 = vpack.c.b16 %v1071, %v1067
        %v1132 = vpack.c.b16 %v1076, %v1072
        %v1133 = vpack.c.b16 %v1077, %v1073
        %v1134 = vpack.c.b16 %v1078, %v1074
        %v1135 = vpack.c.b16 %v1079, %v1075
        %v1136 = vpack.c.b16 %v1084, %v1080
        %v1137 = vpack.c.b16 %v1085, %v1081
        %v1138 = vpack.c.b16 %v1086, %v1082
        %v1139 = vpack.c.b16 %v1087, %v1083
        %v1140 = vpack.c.b16 %v1092, %v1088
        %v1141 = vpack.c.b16 %v1093, %v1089
        %v1142 = vpack.c.b16 %v1094, %v1090
        %v1143 = vpack.c.b16 %v1095, %v1091
        %v1144 = vpack.c.b16 %v1100, %v1096
        %v1145 = vpack.c.b16 %v1101, %v1097
        %v1146 = vpack.c.b16 %v1102, %v1098
        %v1147 = vpack.c.b16 %v1103, %v1099
        %v1148 = vpack.c.b16 %v1108, %v1104
        %v1149 = vpack.c.b16 %v1109, %v1105
        %v1150 = vpack.c.b16 %v1110, %v1106
        %v1151 = vpack.c.b16 %v1111, %v1107
        %v1152 = vpack.c.b16 %v1116, %v1112
        %v1153 = vpack.c.b16 %v1117, %v1113
        %v1154 = vpack.c.b16 %v1118, %v1114
        %v1155 = vpack.c.b16 %v1119, %v1115
        %v1156 = vpack.c.b16 %v1124, %v1120
        %v1157 = vpack.c.b16 %v1125, %v1121
        %v1158 = vpack.c.b16 %v1126, %v1122
        %v1159 = vpack.c.b16 %v1127, %v1123
        %1192 = vmatprep.subr.bf16.mxu0 %v1129
        %1193 = vmatpush1.bf16.msra.mxu0 %v1128
        %1194 = vmatprep.subr.bf16.mxu0 %v1133
        %1195 = vmatpush1.bf16.msra.mxu0 %v1132
        %1196 = vmatprep.subr.bf16.mxu0 %v1137
        %1197 = vmatpush1.bf16.msra.mxu0 %v1136
        %1198 = vmatprep.subr.bf16.mxu0 %v1141
        %1199 = vmatpush1.bf16.msra.mxu0 %v1140
        %1200 = vmatprep.subr.bf16.mxu0 %v1145
        %1201 = vmatpush1.bf16.msra.mxu0 %v1144
        %1202 = vmatprep.subr.bf16.mxu0 %v1149
        %1203 = vmatpush1.bf16.msra.mxu0 %v1148
        %1204 = vmatprep.subr.bf16.mxu0 %v1153
        %1205 = vmatpush1.bf16.msra.mxu0 %v1152
        %1206 = vmatprep.subr.bf16.mxu0 %v1157
        %1207 = vmatpush1.bf16.msra.mxu0 %v1156
        %1208 = vmatprep.subr.bf16.mxu0 0
        %1209 = vmatpush1.bf16.msra.mxu0 0
        %1210 = vmatprep.subr.bf16.mxu0 0
        %1211 = vmatpush1.bf16.msra.mxu0 0
        %1212 = vmatprep.subr.bf16.mxu0 0
        %1213 = vmatpush1.bf16.msra.mxu0 0
        %1214 = vmatprep.subr.bf16.mxu0 0
        %1215 = vmatpush1.bf16.msra.mxu0 0
        %1216 = vmatprep.subr.bf16.mxu0 0
        %1217 = vmatpush1.bf16.msra.mxu0 0
        %1218 = vmatprep.subr.bf16.mxu0 0
        %1219 = vmatpush1.bf16.msra.mxu0 0
        %1220 = vmatprep.subr.bf16.mxu0 0
        %1221 = vmatpush1.bf16.msra.mxu0 0
        %1222 = vmatprep.subr.bf16.mxu0 0
        %1223 = vmatpush1.bf16.msra.mxu0 0
        %1224 = vmatprep.mubr.bf16.mxu0 0
        %1225 = vmatmul.mubr.bf16.gmra.mrb[0].mxu0 %v993
        %v1226 = vpop.f32.mrb[0].mxu0
        %v1227 = vadd.f32 0.0, %v1226
        %v1228 = vpop.f32.mrb[0].mxu0
        %v1229 = vadd.f32 0.0, %v1228
        %v1230 = vpop.f32.mrb[0].mxu0
        %v1231 = vpop.f32.mrb[0].mxu0
        %1232 = vdwg.mxu0
        %1233 = vmatprep.subr.bf16.mxu0 %v1131
        %1234 = vmatpush1.bf16.msra.mxu0 %v1130
        %1235 = vmatprep.subr.bf16.mxu0 %v1135
        %1236 = vmatpush1.bf16.msra.mxu0 %v1134
        %1237 = vmatprep.subr.bf16.mxu0 %v1139
        %1238 = vmatpush1.bf16.msra.mxu0 %v1138
        %1239 = vmatprep.subr.bf16.mxu0 %v1143
        %1240 = vmatpush1.bf16.msra.mxu0 %v1142
        %1241 = vmatprep.subr.bf16.mxu0 %v1147
        %1242 = vmatpush1.bf16.msra.mxu0 %v1146
        %1243 = vmatprep.subr.bf16.mxu0 %v1151
        %1244 = vmatpush1.bf16.msra.mxu0 %v1150
        %1245 = vmatprep.subr.bf16.mxu0 %v1155
        %1246 = vmatpush1.bf16.msra.mxu0 %v1154
        %1247 = vmatprep.subr.bf16.mxu0 %v1159
        %1248 = vmatpush1.bf16.msra.mxu0 %v1158
        %1249 = vmatprep.subr.bf16.mxu0 0
        %1250 = vmatpush1.bf16.msra.mxu0 0
        %1251 = vmatprep.subr.bf16.mxu0 0
        %1252 = vmatpush1.bf16.msra.mxu0 0
        %1253 = vmatprep.subr.bf16.mxu0 0
        %1254 = vmatpush1.bf16.msra.mxu0 0
        %1255 = vmatprep.subr.bf16.mxu0 0
        %1256 = vmatpush1.bf16.msra.mxu0 0
        %1257 = vmatprep.subr.bf16.mxu0 0
        %1258 = vmatpush1.bf16.msra.mxu0 0
        %1259 = vmatprep.subr.bf16.mxu0 0
        %1260 = vmatpush1.bf16.msra.mxu0 0
        %1261 = vmatprep.subr.bf16.mxu0 0
        %1262 = vmatpush1.bf16.msra.mxu0 0
        %1263 = vmatprep.subr.bf16.mxu0 0
        %1264 = vmatpush1.bf16.msra.mxu0 0
        %1265 = vmatprep.mubr.bf16.mxu0 0
        %1266 = vmatmul.mubr.bf16.gmra.mrb[0].mxu0 %v993
        %v1267 = vpop.f32.mrb[0].mxu0
        %v1268 = vadd.f32 0.0, %v1267
        %v1269 = vpop.f32.mrb[0].mxu0
        %v1270 = vadd.f32 0.0, %v1269
        %v1271 = vpop.f32.mrb[0].mxu0
        %v1272 = vpop.f32.mrb[0].mxu0
        %1273 = vdwg.mxu0
        %v1274 = vadd.f32 %v996, %v1227
        %v1275 = vadd.f32 %v997, %v1229
        %v1276 = vadd.f32 %v998, %v1268
        %v1277 = vadd.f32 %v999, %v1270
        %v1278 = vmul.f32 %v1274, 0.5
        %v1279 = vtanh.pop %v1278
        %v1280 = vmul.f32 %v1279, 0.5
        %v1281 = vadd.f32 %v1280, 0.5
        %v1282 = vmul.f32 %v1275, 0.5
        %v1283 = vtanh.pop %v1282
        %v1284 = vmul.f32 %v1283, 0.5
        %v1285 = vadd.f32 %v1284, 0.5
        %v1286 = vtanh.pop %v1276
        %v1287 = vmul.f32 %v1277, 0.5
        %v1288 = vtanh.pop %v1287
        %v1289 = vmul.f32 %v1288, 0.5
        %v1290 = vadd.f32 %v1289, 0.5
        %v1291 = vmul.f32 %v1285, %v992
        %v1292 = vmul.f32 %v1281, %v1286
        %v1293 = vadd.f32 %v1291, %v1292
        %v1294 = vtanh.pop %v1293
        %v1295 = vmul.f32 %v1290, %v1294
        %s1296 = sadd.s32 %s986, 1
        %p1297 = scmp.lt.s32.totalorder %s1296, 10
        %s1298 = scalar_select %p1297, 1, 0
        %v1299 = vstv %s1298
        %vm1300 = vcmp.eq.s32.totalorder %v1299, 1
        %v1301 = vsel %vm1300, %v1295, %v991
        %v1302 = vsel %vm1300, %v1293, %v992
        %v1303 = vpack.c.bf16 %v1301, %v1301
        %s1304 = scalar_lea.vmem %s317, 4 [#allocation11]
        %1305 = vst [vmem:[%s1304] sm:$0xf] %v1303
        %s1306 = scalar_lea.vmem [#allocation4], 64
        %v1307 = vld [vmem:[%s1306] sm:$0xff]
        %v1308 = vld [vmem:[%s1306 + $0x8] sm:$0xff]
        %v1309 = vld [vmem:[%s1306 + $0x10] sm:$0xff]
        %v1310 = vld [vmem:[%s1306 + $0x18] sm:$0xff]
        %v1311 = vld [vmem:[#allocation10] sm:$0xff]
        %v1312 = vld [vmem:[#allocation10 + $0x8] sm:$0xff]
        %v1313 = vld [vmem:[#allocation10 + $0x10] sm:$0xff]
        %v1314 = vld [vmem:[#allocation10 + $0x18] sm:$0xff]
        %v1315 = vld [vmem:[#allocation10 + $0x20] sm:$0xff]
        %v1316 = vld [vmem:[#allocation10 + $0x28] sm:$0xff]
        %v1317 = vld [vmem:[#allocation10 + $0x30] sm:$0xff]
        %v1318 = vld [vmem:[#allocation10 + $0x38] sm:$0xff]
        %v1319 = vld [vmem:[#allocation10 + $0x40] sm:$0xff]
        %v1320 = vld [vmem:[#allocation10 + $0x48] sm:$0xff]
        %v1321 = vld [vmem:[#allocation10 + $0x50] sm:$0xff]
        %v1322 = vld [vmem:[#allocation10 + $0x58] sm:$0xff]
        %v1323 = vld [vmem:[#allocation10 + $0x60] sm:$0xff]
        %v1324 = vld [vmem:[#allocation10 + $0x68] sm:$0xff]
        %v1325 = vld [vmem:[#allocation10 + $0x70] sm:$0xff]
        %v1326 = vld [vmem:[#allocation10 + $0x78] sm:$0xff]
        %v1327 = vld [vmem:[#allocation10 + $0x80] sm:$0xff]
        %v1328 = vld [vmem:[#allocation10 + $0x88] sm:$0xff]
        %v1329 = vld [vmem:[#allocation10 + $0x90] sm:$0xff]
        %v1330 = vld [vmem:[#allocation10 + $0x98] sm:$0xff]
        %v1331 = vld [vmem:[#allocation10 + $0xa0] sm:$0xff]
        %v1332 = vld [vmem:[#allocation10 + $0xa8] sm:$0xff]
        %v1333 = vld [vmem:[#allocation10 + $0xb0] sm:$0xff]
        %v1334 = vld [vmem:[#allocation10 + $0xb8] sm:$0xff]
        %v1335 = vld [vmem:[#allocation10 + $0xc0] sm:$0xff]
        %v1336 = vld [vmem:[#allocation10 + $0xc8] sm:$0xff]
        %v1337 = vld [vmem:[#allocation10 + $0xd0] sm:$0xff]
        %v1338 = vld [vmem:[#allocation10 + $0xd8] sm:$0xff]
        %v1339 = vld [vmem:[#allocation10 + $0xe0] sm:$0xff]
        %v1340 = vld [vmem:[#allocation10 + $0xe8] sm:$0xff]
        %v1341 = vld [vmem:[#allocation10 + $0xf0] sm:$0xff]
        %v1342 = vld [vmem:[#allocation10 + $0xf8] sm:$0xff]
        %v1375 = vunpack.c.l.b16 %v1311
        %v1376 = vunpack.c.h.b16 %v1311
        %v1377 = vunpack.c.l.b16 %v1312
        %v1378 = vunpack.c.h.b16 %v1312
        %v1379 = vunpack.c.l.b16 %v1313
        %v1380 = vunpack.c.h.b16 %v1313
        %v1381 = vunpack.c.l.b16 %v1314
        %v1382 = vunpack.c.h.b16 %v1314
        %v1383 = vunpack.c.l.b16 %v1315
        %v1384 = vunpack.c.h.b16 %v1315
        %v1385 = vunpack.c.l.b16 %v1316
        %v1386 = vunpack.c.h.b16 %v1316
        %v1387 = vunpack.c.l.b16 %v1317
        %v1388 = vunpack.c.h.b16 %v1317
        %v1389 = vunpack.c.l.b16 %v1318
        %v1390 = vunpack.c.h.b16 %v1318
        %v1391 = vunpack.c.l.b16 %v1319
        %v1392 = vunpack.c.h.b16 %v1319
        %v1393 = vunpack.c.l.b16 %v1320
        %v1394 = vunpack.c.h.b16 %v1320
        %v1395 = vunpack.c.l.b16 %v1321
        %v1396 = vunpack.c.h.b16 %v1321
        %v1397 = vunpack.c.l.b16 %v1322
        %v1398 = vunpack.c.h.b16 %v1322
        %v1399 = vunpack.c.l.b16 %v1323
        %v1400 = vunpack.c.h.b16 %v1323
        %v1401 = vunpack.c.l.b16 %v1324
        %v1402 = vunpack.c.h.b16 %v1324
        %v1403 = vunpack.c.l.b16 %v1325
        %v1404 = vunpack.c.h.b16 %v1325
        %v1405 = vunpack.c.l.b16 %v1326
        %v1406 = vunpack.c.h.b16 %v1326
        %v1407 = vunpack.c.l.b16 %v1327
        %v1408 = vunpack.c.h.b16 %v1327
        %v1409 = vunpack.c.l.b16 %v1328
        %v1410 = vunpack.c.h.b16 %v1328
        %v1411 = vunpack.c.l.b16 %v1329
        %v1412 = vunpack.c.h.b16 %v1329
        %v1413 = vunpack.c.l.b16 %v1330
        %v1414 = vunpack.c.h.b16 %v1330
        %v1415 = vunpack.c.l.b16 %v1331
        %v1416 = vunpack.c.h.b16 %v1331
        %v1417 = vunpack.c.l.b16 %v1332
        %v1418 = vunpack.c.h.b16 %v1332
        %v1419 = vunpack.c.l.b16 %v1333
        %v1420 = vunpack.c.h.b16 %v1333
        %v1421 = vunpack.c.l.b16 %v1334
        %v1422 = vunpack.c.h.b16 %v1334
        %v1423 = vunpack.c.l.b16 %v1335
        %v1424 = vunpack.c.h.b16 %v1335
        %v1425 = vunpack.c.l.b16 %v1336
        %v1426 = vunpack.c.h.b16 %v1336
        %v1427 = vunpack.c.l.b16 %v1337
        %v1428 = vunpack.c.h.b16 %v1337
        %v1429 = vunpack.c.l.b16 %v1338
        %v1430 = vunpack.c.h.b16 %v1338
        %v1431 = vunpack.c.l.b16 %v1339
        %v1432 = vunpack.c.h.b16 %v1339
        %v1433 = vunpack.c.l.b16 %v1340
        %v1434 = vunpack.c.h.b16 %v1340
        %v1435 = vunpack.c.l.b16 %v1341
        %v1436 = vunpack.c.h.b16 %v1341
        %v1437 = vunpack.c.l.b16 %v1342
        %v1438 = vunpack.c.h.b16 %v1342
        %v1439 = vpack.c.b16 %v1379, %v1375
        %v1440 = vpack.c.b16 %v1380, %v1376
        %v1441 = vpack.c.b16 %v1381, %v1377
        %v1442 = vpack.c.b16 %v1382, %v1378
        %v1443 = vpack.c.b16 %v1387, %v1383
        %v1444 = vpack.c.b16 %v1388, %v1384
        %v1445 = vpack.c.b16 %v1389, %v1385
        %v1446 = vpack.c.b16 %v1390, %v1386
        %v1447 = vpack.c.b16 %v1395, %v1391
        %v1448 = vpack.c.b16 %v1396, %v1392
        %v1449 = vpack.c.b16 %v1397, %v1393
        %v1450 = vpack.c.b16 %v1398, %v1394
        %v1451 = vpack.c.b16 %v1403, %v1399
        %v1452 = vpack.c.b16 %v1404, %v1400
        %v1453 = vpack.c.b16 %v1405, %v1401
        %v1454 = vpack.c.b16 %v1406, %v1402
        %v1455 = vpack.c.b16 %v1411, %v1407
        %v1456 = vpack.c.b16 %v1412, %v1408
        %v1457 = vpack.c.b16 %v1413, %v1409
        %v1458 = vpack.c.b16 %v1414, %v1410
        %v1459 = vpack.c.b16 %v1419, %v1415
        %v1460 = vpack.c.b16 %v1420, %v1416
        %v1461 = vpack.c.b16 %v1421, %v1417
        %v1462 = vpack.c.b16 %v1422, %v1418
        %v1463 = vpack.c.b16 %v1427, %v1423
        %v1464 = vpack.c.b16 %v1428, %v1424
        %v1465 = vpack.c.b16 %v1429, %v1425
        %v1466 = vpack.c.b16 %v1430, %v1426
        %v1467 = vpack.c.b16 %v1435, %v1431
        %v1468 = vpack.c.b16 %v1436, %v1432
        %v1469 = vpack.c.b16 %v1437, %v1433
        %v1470 = vpack.c.b16 %v1438, %v1434
        %1503 = vmatprep.subr.bf16.mxu0 %v1440
        %1504 = vmatpush1.bf16.msra.mxu0 %v1439
        %1505 = vmatprep.subr.bf16.mxu0 %v1444
        %1506 = vmatpush1.bf16.msra.mxu0 %v1443
        %1507 = vmatprep.subr.bf16.mxu0 %v1448
        %1508 = vmatpush1.bf16.msra.mxu0 %v1447
        %1509 = vmatprep.subr.bf16.mxu0 %v1452
        %1510 = vmatpush1.bf16.msra.mxu0 %v1451
        %1511 = vmatprep.subr.bf16.mxu0 %v1456
        %1512 = vmatpush1.bf16.msra.mxu0 %v1455
        %1513 = vmatprep.subr.bf16.mxu0 %v1460
        %1514 = vmatpush1.bf16.msra.mxu0 %v1459
        %1515 = vmatprep.subr.bf16.mxu0 %v1464
        %1516 = vmatpush1.bf16.msra.mxu0 %v1463
        %1517 = vmatprep.subr.bf16.mxu0 %v1468
        %1518 = vmatpush1.bf16.msra.mxu0 %v1467
        %1519 = vmatprep.subr.bf16.mxu0 0
        %1520 = vmatpush1.bf16.msra.mxu0 0
        %1521 = vmatprep.subr.bf16.mxu0 0
        %1522 = vmatpush1.bf16.msra.mxu0 0
        %1523 = vmatprep.subr.bf16.mxu0 0
        %1524 = vmatpush1.bf16.msra.mxu0 0
        %1525 = vmatprep.subr.bf16.mxu0 0
        %1526 = vmatpush1.bf16.msra.mxu0 0
        %1527 = vmatprep.subr.bf16.mxu0 0
        %1528 = vmatpush1.bf16.msra.mxu0 0
        %1529 = vmatprep.subr.bf16.mxu0 0
        %1530 = vmatpush1.bf16.msra.mxu0 0
        %1531 = vmatprep.subr.bf16.mxu0 0
        %1532 = vmatpush1.bf16.msra.mxu0 0
        %1533 = vmatprep.subr.bf16.mxu0 0
        %1534 = vmatpush1.bf16.msra.mxu0 0
        %1535 = vmatprep.mubr.bf16.mxu0 0
        %1536 = vmatmul.mubr.bf16.gmra.mrb[0].mxu0 %v1303
        %v1537 = vpop.f32.mrb[0].mxu0
        %v1538 = vadd.f32 0.0, %v1537
        %v1539 = vpop.f32.mrb[0].mxu0
        %v1540 = vadd.f32 0.0, %v1539
        %v1541 = vpop.f32.mrb[0].mxu0
        %v1542 = vpop.f32.mrb[0].mxu0
        %1543 = vdwg.mxu0
        %1544 = vmatprep.subr.bf16.mxu0 %v1442
        %1545 = vmatpush1.bf16.msra.mxu0 %v1441
        %1546 = vmatprep.subr.bf16.mxu0 %v1446
        %1547 = vmatpush1.bf16.msra.mxu0 %v1445
        %1548 = vmatprep.subr.bf16.mxu0 %v1450
        %1549 = vmatpush1.bf16.msra.mxu0 %v1449
        %1550 = vmatprep.subr.bf16.mxu0 %v1454
        %1551 = vmatpush1.bf16.msra.mxu0 %v1453
        %1552 = vmatprep.subr.bf16.mxu0 %v1458
        %1553 = vmatpush1.bf16.msra.mxu0 %v1457
        %1554 = vmatprep.subr.bf16.mxu0 %v1462
        %1555 = vmatpush1.bf16.msra.mxu0 %v1461
        %1556 = vmatprep.subr.bf16.mxu0 %v1466
        %1557 = vmatpush1.bf16.msra.mxu0 %v1465
        %1558 = vmatprep.subr.bf16.mxu0 %v1470
        %1559 = vmatpush1.bf16.msra.mxu0 %v1469
        %1560 = vmatprep.subr.bf16.mxu0 0
        %1561 = vmatpush1.bf16.msra.mxu0 0
        %1562 = vmatprep.subr.bf16.mxu0 0
        %1563 = vmatpush1.bf16.msra.mxu0 0
        %1564 = vmatprep.subr.bf16.mxu0 0
        %1565 = vmatpush1.bf16.msra.mxu0 0
        %1566 = vmatprep.subr.bf16.mxu0 0
        %1567 = vmatpush1.bf16.msra.mxu0 0
        %1568 = vmatprep.subr.bf16.mxu0 0
        %1569 = vmatpush1.bf16.msra.mxu0 0
        %1570 = vmatprep.subr.bf16.mxu0 0
        %1571 = vmatpush1.bf16.msra.mxu0 0
        %1572 = vmatprep.subr.bf16.mxu0 0
        %1573 = vmatpush1.bf16.msra.mxu0 0
        %1574 = vmatprep.subr.bf16.mxu0 0
        %1575 = vmatpush1.bf16.msra.mxu0 0
        %1576 = vmatprep.mubr.bf16.mxu0 0
        %1577 = vmatmul.mubr.bf16.gmra.mrb[0].mxu0 %v1303
        %v1578 = vpop.f32.mrb[0].mxu0
        %v1579 = vadd.f32 0.0, %v1578
        %v1580 = vpop.f32.mrb[0].mxu0
        %v1581 = vadd.f32 0.0, %v1580
        %v1582 = vpop.f32.mrb[0].mxu0
        %v1583 = vpop.f32.mrb[0].mxu0
        %1584 = vdwg.mxu0
        %v1585 = vadd.f32 %v1307, %v1538
        %v1586 = vadd.f32 %v1308, %v1540
        %v1587 = vadd.f32 %v1309, %v1579
        %v1588 = vadd.f32 %v1310, %v1581
        %v1589 = vmul.f32 %v1585, 0.5
        %v1590 = vtanh.pop %v1589
        %v1591 = vmul.f32 %v1590, 0.5
        %v1592 = vadd.f32 %v1591, 0.5
        %v1593 = vmul.f32 %v1586, 0.5
        %v1594 = vtanh.pop %v1593
        %v1595 = vmul.f32 %v1594, 0.5
        %v1596 = vadd.f32 %v1595, 0.5
        %v1597 = vtanh.pop %v1587
        %v1598 = vmul.f32 %v1588, 0.5
        %v1599 = vtanh.pop %v1598
        %v1600 = vmul.f32 %v1599, 0.5
        %v1601 = vadd.f32 %v1600, 0.5
        %v1602 = vmul.f32 %v1596, %v1302
        %v1603 = vmul.f32 %v1592, %v1597
        %v1604 = vadd.f32 %v1602, %v1603
        %v1605 = vtanh.pop %v1604
        %v1606 = vmul.f32 %v1601, %v1605
        %s1607 = sadd.s32 %s986, 2
        %p1608 = scmp.lt.s32.totalorder %s1607, 10
        %s1609 = scalar_select %p1608, 1, 0
        %v1610 = vstv %s1609
        %vm1611 = vcmp.eq.s32.totalorder %v1610, 1
        %v1612 = vsel %vm1611, %v1606, %v1301
        %v1613 = vsel %vm1611, %v1604, %v1302
        %v1614 = vpack.c.bf16 %v1612, %v1612
        %s1615 = scalar_lea.vmem %s317, 8 [#allocation11]
        %1616 = vst [vmem:[%s1615] sm:$0xf] %v1614
        %s1617 = scalar_lea.vmem [#allocation4], 96
        %v1618 = vld [vmem:[%s1617] sm:$0xff]
        %v1619 = vld [vmem:[%s1617 + $0x8] sm:$0xff]
        %v1620 = vld [vmem:[%s1617 + $0x10] sm:$0xff]
        %v1621 = vld [vmem:[%s1617 + $0x18] sm:$0xff]
        %v1622 = vld [vmem:[#allocation10] sm:$0xff]
        %v1623 = vld [vmem:[#allocation10 + $0x8] sm:$0xff]
        %v1624 = vld [vmem:[#allocation10 + $0x10] sm:$0xff]
        %v1625 = vld [vmem:[#allocation10 + $0x18] sm:$0xff]
        %v1626 = vld [vmem:[#allocation10 + $0x20] sm:$0xff]
        %v1627 = vld [vmem:[#allocation10 + $0x28] sm:$0xff]
        %v1628 = vld [vmem:[#allocation10 + $0x30] sm:$0xff]
        %v1629 = vld [vmem:[#allocation10 + $0x38] sm:$0xff]
        %v1630 = vld [vmem:[#allocation10 + $0x40] sm:$0xff]
        %v1631 = vld [vmem:[#allocation10 + $0x48] sm:$0xff]
        %v1632 = vld [vmem:[#allocation10 + $0x50] sm:$0xff]
        %v1633 = vld [vmem:[#allocation10 + $0x58] sm:$0xff]
        %v1634 = vld [vmem:[#allocation10 + $0x60] sm:$0xff]
        %v1635 = vld [vmem:[#allocation10 + $0x68] sm:$0xff]
        %v1636 = vld [vmem:[#allocation10 + $0x70] sm:$0xff]
        %v1637 = vld [vmem:[#allocation10 + $0x78] sm:$0xff]
        %v1638 = vld [vmem:[#allocation10 + $0x80] sm:$0xff]
        %v1639 = vld [vmem:[#allocation10 + $0x88] sm:$0xff]
        %v1640 = vld [vmem:[#allocation10 + $0x90] sm:$0xff]
        %v1641 = vld [vmem:[#allocation10 + $0x98] sm:$0xff]
        %v1642 = vld [vmem:[#allocation10 + $0xa0] sm:$0xff]
        %v1643 = vld [vmem:[#allocation10 + $0xa8] sm:$0xff]
        %v1644 = vld [vmem:[#allocation10 + $0xb0] sm:$0xff]
        %v1645 = vld [vmem:[#allocation10 + $0xb8] sm:$0xff]
        %v1646 = vld [vmem:[#allocation10 + $0xc0] sm:$0xff]
        %v1647 = vld [vmem:[#allocation10 + $0xc8] sm:$0xff]
        %v1648 = vld [vmem:[#allocation10 + $0xd0] sm:$0xff]
        %v1649 = vld [vmem:[#allocation10 + $0xd8] sm:$0xff]
        %v1650 = vld [vmem:[#allocation10 + $0xe0] sm:$0xff]
        %v1651 = vld [vmem:[#allocation10 + $0xe8] sm:$0xff]
        %v1652 = vld [vmem:[#allocation10 + $0xf0] sm:$0xff]
        %v1653 = vld [vmem:[#allocation10 + $0xf8] sm:$0xff]
        %v1686 = vunpack.c.l.b16 %v1622
        %v1687 = vunpack.c.h.b16 %v1622
        %v1688 = vunpack.c.l.b16 %v1623
        %v1689 = vunpack.c.h.b16 %v1623
        %v1690 = vunpack.c.l.b16 %v1624
        %v1691 = vunpack.c.h.b16 %v1624
        %v1692 = vunpack.c.l.b16 %v1625
        %v1693 = vunpack.c.h.b16 %v1625
        %v1694 = vunpack.c.l.b16 %v1626
        %v1695 = vunpack.c.h.b16 %v1626
        %v1696 = vunpack.c.l.b16 %v1627
        %v1697 = vunpack.c.h.b16 %v1627
        %v1698 = vunpack.c.l.b16 %v1628
        %v1699 = vunpack.c.h.b16 %v1628
        %v1700 = vunpack.c.l.b16 %v1629
        %v1701 = vunpack.c.h.b16 %v1629
        %v1702 = vunpack.c.l.b16 %v1630
        %v1703 = vunpack.c.h.b16 %v1630
        %v1704 = vunpack.c.l.b16 %v1631
        %v1705 = vunpack.c.h.b16 %v1631
        %v1706 = vunpack.c.l.b16 %v1632
        %v1707 = vunpack.c.h.b16 %v1632
        %v1708 = vunpack.c.l.b16 %v1633
        %v1709 = vunpack.c.h.b16 %v1633
        %v1710 = vunpack.c.l.b16 %v1634
        %v1711 = vunpack.c.h.b16 %v1634
        %v1712 = vunpack.c.l.b16 %v1635
        %v1713 = vunpack.c.h.b16 %v1635
        %v1714 = vunpack.c.l.b16 %v1636
        %v1715 = vunpack.c.h.b16 %v1636
        %v1716 = vunpack.c.l.b16 %v1637
        %v1717 = vunpack.c.h.b16 %v1637
        %v1718 = vunpack.c.l.b16 %v1638
        %v1719 = vunpack.c.h.b16 %v1638
        %v1720 = vunpack.c.l.b16 %v1639
        %v1721 = vunpack.c.h.b16 %v1639
        %v1722 = vunpack.c.l.b16 %v1640
        %v1723 = vunpack.c.h.b16 %v1640
        %v1724 = vunpack.c.l.b16 %v1641
        %v1725 = vunpack.c.h.b16 %v1641
        %v1726 = vunpack.c.l.b16 %v1642
        %v1727 = vunpack.c.h.b16 %v1642
        %v1728 = vunpack.c.l.b16 %v1643
        %v1729 = vunpack.c.h.b16 %v1643
        %v1730 = vunpack.c.l.b16 %v1644
        %v1731 = vunpack.c.h.b16 %v1644
        %v1732 = vunpack.c.l.b16 %v1645
        %v1733 = vunpack.c.h.b16 %v1645
        %v1734 = vunpack.c.l.b16 %v1646
        %v1735 = vunpack.c.h.b16 %v1646
        %v1736 = vunpack.c.l.b16 %v1647
        %v1737 = vunpack.c.h.b16 %v1647
        %v1738 = vunpack.c.l.b16 %v1648
        %v1739 = vunpack.c.h.b16 %v1648
        %v1740 = vunpack.c.l.b16 %v1649
        %v1741 = vunpack.c.h.b16 %v1649
        %v1742 = vunpack.c.l.b16 %v1650
        %v1743 = vunpack.c.h.b16 %v1650
        %v1744 = vunpack.c.l.b16 %v1651
        %v1745 = vunpack.c.h.b16 %v1651
        %v1746 = vunpack.c.l.b16 %v1652
        %v1747 = vunpack.c.h.b16 %v1652
        %v1748 = vunpack.c.l.b16 %v1653
        %v1749 = vunpack.c.h.b16 %v1653
        %v1750 = vpack.c.b16 %v1690, %v1686
        %v1751 = vpack.c.b16 %v1691, %v1687
        %v1752 = vpack.c.b16 %v1692, %v1688
        %v1753 = vpack.c.b16 %v1693, %v1689
        %v1754 = vpack.c.b16 %v1698, %v1694
        %v1755 = vpack.c.b16 %v1699, %v1695
        %v1756 = vpack.c.b16 %v1700, %v1696
        %v1757 = vpack.c.b16 %v1701, %v1697
        %v1758 = vpack.c.b16 %v1706, %v1702
        %v1759 = vpack.c.b16 %v1707, %v1703
        %v1760 = vpack.c.b16 %v1708, %v1704
        %v1761 = vpack.c.b16 %v1709, %v1705
        %v1762 = vpack.c.b16 %v1714, %v1710
        %v1763 = vpack.c.b16 %v1715, %v1711
        %v1764 = vpack.c.b16 %v1716, %v1712
        %v1765 = vpack.c.b16 %v1717, %v1713
        %v1766 = vpack.c.b16 %v1722, %v1718
        %v1767 = vpack.c.b16 %v1723, %v1719
        %v1768 = vpack.c.b16 %v1724, %v1720
        %v1769 = vpack.c.b16 %v1725, %v1721
        %v1770 = vpack.c.b16 %v1730, %v1726
        %v1771 = vpack.c.b16 %v1731, %v1727
        %v1772 = vpack.c.b16 %v1732, %v1728
        %v1773 = vpack.c.b16 %v1733, %v1729
        %v1774 = vpack.c.b16 %v1738, %v1734
        %v1775 = vpack.c.b16 %v1739, %v1735
        %v1776 = vpack.c.b16 %v1740, %v1736
        %v1777 = vpack.c.b16 %v1741, %v1737
        %v1778 = vpack.c.b16 %v1746, %v1742
        %v1779 = vpack.c.b16 %v1747, %v1743
        %v1780 = vpack.c.b16 %v1748, %v1744
        %v1781 = vpack.c.b16 %v1749, %v1745
        %1814 = vmatprep.subr.bf16.mxu0 %v1751
        %1815 = vmatpush1.bf16.msra.mxu0 %v1750
        %1816 = vmatprep.subr.bf16.mxu0 %v1755
        %1817 = vmatpush1.bf16.msra.mxu0 %v1754
        %1818 = vmatprep.subr.bf16.mxu0 %v1759
        %1819 = vmatpush1.bf16.msra.mxu0 %v1758
        %1820 = vmatprep.subr.bf16.mxu0 %v1763
        %1821 = vmatpush1.bf16.msra.mxu0 %v1762
        %1822 = vmatprep.subr.bf16.mxu0 %v1767
        %1823 = vmatpush1.bf16.msra.mxu0 %v1766
        %1824 = vmatprep.subr.bf16.mxu0 %v1771
        %1825 = vmatpush1.bf16.msra.mxu0 %v1770
        %1826 = vmatprep.subr.bf16.mxu0 %v1775
        %1827 = vmatpush1.bf16.msra.mxu0 %v1774
        %1828 = vmatprep.subr.bf16.mxu0 %v1779
        %1829 = vmatpush1.bf16.msra.mxu0 %v1778
        %1830 = vmatprep.subr.bf16.mxu0 0
        %1831 = vmatpush1.bf16.msra.mxu0 0
        %1832 = vmatprep.subr.bf16.mxu0 0
        %1833 = vmatpush1.bf16.msra.mxu0 0
        %1834 = vmatprep.subr.bf16.mxu0 0
        %1835 = vmatpush1.bf16.msra.mxu0 0
        %1836 = vmatprep.subr.bf16.mxu0 0
        %1837 = vmatpush1.bf16.msra.mxu0 0
        %1838 = vmatprep.subr.bf16.mxu0 0
        %1839 = vmatpush1.bf16.msra.mxu0 0
        %1840 = vmatprep.subr.bf16.mxu0 0
        %1841 = vmatpush1.bf16.msra.mxu0 0
        %1842 = vmatprep.subr.bf16.mxu0 0
        %1843 = vmatpush1.bf16.msra.mxu0 0
        %1844 = vmatprep.subr.bf16.mxu0 0
        %1845 = vmatpush1.bf16.msra.mxu0 0
        %1846 = vmatprep.mubr.bf16.mxu0 0
        %1847 = vmatmul.mubr.bf16.gmra.mrb[0].mxu0 %v1614
        %v1848 = vpop.f32.mrb[0].mxu0
        %v1849 = vadd.f32 0.0, %v1848
        %v1850 = vpop.f32.mrb[0].mxu0
        %v1851 = vadd.f32 0.0, %v1850
        %v1852 = vpop.f32.mrb[0].mxu0
        %v1853 = vpop.f32.mrb[0].mxu0
        %1854 = vdwg.mxu0
        %1855 = vmatprep.subr.bf16.mxu0 %v1753
        %1856 = vmatpush1.bf16.msra.mxu0 %v1752
        %1857 = vmatprep.subr.bf16.mxu0 %v1757
        %1858 = vmatpush1.bf16.msra.mxu0 %v1756
        %1859 = vmatprep.subr.bf16.mxu0 %v1761
        %1860 = vmatpush1.bf16.msra.mxu0 %v1760
        %1861 = vmatprep.subr.bf16.mxu0 %v1765
        %1862 = vmatpush1.bf16.msra.mxu0 %v1764
        %1863 = vmatprep.subr.bf16.mxu0 %v1769
        %1864 = vmatpush1.bf16.msra.mxu0 %v1768
        %1865 = vmatprep.subr.bf16.mxu0 %v1773
        %1866 = vmatpush1.bf16.msra.mxu0 %v1772
        %1867 = vmatprep.subr.bf16.mxu0 %v1777
        %1868 = vmatpush1.bf16.msra.mxu0 %v1776
        %1869 = vmatprep.subr.bf16.mxu0 %v1781
        %1870 = vmatpush1.bf16.msra.mxu0 %v1780
        %1871 = vmatprep.subr.bf16.mxu0 0
        %1872 = vmatpush1.bf16.msra.mxu0 0
        %1873 = vmatprep.subr.bf16.mxu0 0
        %1874 = vmatpush1.bf16.msra.mxu0 0
        %1875 = vmatprep.subr.bf16.mxu0 0
        %1876 = vmatpush1.bf16.msra.mxu0 0
        %1877 = vmatprep.subr.bf16.mxu0 0
        %1878 = vmatpush1.bf16.msra.mxu0 0
        %1879 = vmatprep.subr.bf16.mxu0 0
        %1880 = vmatpush1.bf16.msra.mxu0 0
        %1881 = vmatprep.subr.bf16.mxu0 0
        %1882 = vmatpush1.bf16.msra.mxu0 0
        %1883 = vmatprep.subr.bf16.mxu0 0
        %1884 = vmatpush1.bf16.msra.mxu0 0
        %1885 = vmatprep.subr.bf16.mxu0 0
        %1886 = vmatpush1.bf16.msra.mxu0 0
        %1887 = vmatprep.mubr.bf16.mxu0 0
        %1888 = vmatmul.mubr.bf16.gmra.mrb[0].mxu0 %v1614
        %v1889 = vpop.f32.mrb[0].mxu0
        %v1890 = vadd.f32 0.0, %v1889
        %v1891 = vpop.f32.mrb[0].mxu0
        %v1892 = vadd.f32 0.0, %v1891
        %v1893 = vpop.f32.mrb[0].mxu0
        %v1894 = vpop.f32.mrb[0].mxu0
        %1895 = vdwg.mxu0
        %v1896 = vadd.f32 %v1618, %v1849
        %v1897 = vadd.f32 %v1619, %v1851
        %v1898 = vadd.f32 %v1620, %v1890
        %v1899 = vadd.f32 %v1621, %v1892
        %v1900 = vmul.f32 %v1896, 0.5
        %v1901 = vtanh.pop %v1900
        %v1902 = vmul.f32 %v1901, 0.5
        %v1903 = vadd.f32 %v1902, 0.5
        %v1904 = vmul.f32 %v1897, 0.5
        %v1905 = vtanh.pop %v1904
        %v1906 = vmul.f32 %v1905, 0.5
        %v1907 = vadd.f32 %v1906, 0.5
        %v1908 = vtanh.pop %v1898
        %v1909 = vmul.f32 %v1899, 0.5
        %v1910 = vtanh.pop %v1909
        %v1911 = vmul.f32 %v1910, 0.5
        %v1912 = vadd.f32 %v1911, 0.5
        %v1913 = vmul.f32 %v1907, %v1613
        %v1914 = vmul.f32 %v1903, %v1908
        %v1915 = vadd.f32 %v1913, %v1914
        %v1916 = vtanh.pop %v1915
        %v1917 = vmul.f32 %v1912, %v1916
        %s1918 = sadd.s32 %s986, 3
        %p1919 = scmp.lt.s32.totalorder %s1918, 10
        %s1920 = scalar_select %p1919, 1, 0
        %v1921 = vstv %s1920
        %vm1922 = vcmp.eq.s32.totalorder %v1921, 1
        %v1923 = vsel %vm1922, %v1917, %v1612
        %v1924 = vsel %vm1922, %v1915, %v1613
        %v1925 = vpack.c.bf16 %v1923, %v1923
        %s1926 = scalar_lea.vmem %s317, 12 [#allocation11]
        %1927 = vst [vmem:[%s1926] sm:$0xf] %v1925
        %1928 = vst [vmem:[#allocation2] sm:$0xff] %v1923
        %1929 = vst [vmem:[#allocation3] sm:$0xff] %v1924
        %p1930 = scmp.eq.s32.totalorder %s31, 2
        // Predicated region
        $region53: #{tpu_custom_call.1} parent=35 // pred_check
          %p1931 = pneg %p1930
        $region54: #{tpu_custom_call.1} parent=35 // pred_check_branch
          %1933 = sbr.rel (%p1931) target = $region56
        $region55: #{tpu_custom_call.1} parent=35 // pred_region
          %v1934 = vld [vmem:[#allocation2] sm:$0xff]
          %1935 = vst [vmem:[#allocation12] sm:$0xff] %v1934
          %v1936 = vld [vmem:[#allocation3] sm:$0xff]
          %1937 = vst [vmem:[#allocation14] sm:$0xff] %v1936
        $region56: #{tpu_custom_call.1} parent=35 // pred_fallthru
          _
        %s1938 = sand.u32 %s139, 1
        %s1939 = scalar_lea.sflag [#allocation7], %s1938
        %s1940 = sand.u32 %s139, 1
        %s1941 = smul.addr %s1940, 16
        %s1942 = scalar_lea.vmem [#allocation11], %s1941
        // Predicated region
        $region57: #{tpu_custom_call.1} parent=35 // pred_check
          %p1943 = pneg %p149
        $region58: #{tpu_custom_call.1} parent=35 // pred_check_branch
          %1945 = sbr.rel (%p1943) target = $region60
        $region59: #{tpu_custom_call.1} parent=35 // pred_region
          %s1946 = smul.u32 4, %s31
          %s1948 = ssub.s32 256, 256
          %1949 = vsyncadd %s1939, %s1948
          %s1950 = sadd.s32 %s30, %s1946
          %s1951 = smul.addr %s1950, 64
          %s1952 = scalar_lea.hbm %s4, %s1951
          %s1953 = sshll.u32 %s1942, 4
          %s1954 = int_to_ptr.vmem [resolvable:$true] %s1953
          %1959 = dma.vmem_to_hbm [thread:$0]  %s1954, 256, %s1952, %s1939, 64, 64, 4
        $region60: #{tpu_custom_call.1} parent=35 // pred_fallthru
          _
        // Predicated region
        $region61: #{tpu_custom_call.1} parent=35 // pred_check
          %p1960 = pneg %p175
        $region62: #{tpu_custom_call.1} parent=35 // pred_check_branch
          %1962 = sbr.rel (%p1960) target = $region64
        $region63: #{tpu_custom_call.1} parent=35 // pred_region
          %s1964 = ssub.s32 128, 128
          %1965 = vsyncadd [#allocation13], %s1964
          %s1966 = smul.addr %s30, 128
          %s1967 = scalar_lea.hbm %s5, %s1966
          %s1969 = sshll.u32 [#allocation12], 4
          %s1970 = int_to_ptr.vmem [resolvable:$true] %s1969
          %1972 = dma.vmem_to_hbm [thread:$0]  %s1970, 128, %s1967, [#allocation13]
        $region64: #{tpu_custom_call.1} parent=35 // pred_fallthru
          _
        // Predicated region
        $region65: #{tpu_custom_call.1} parent=35 // pred_check
          %p1973 = pneg %p201
        $region66: #{tpu_custom_call.1} parent=35 // pred_check_branch
          %1975 = sbr.rel (%p1973) target = $region68
        $region67: #{tpu_custom_call.1} parent=35 // pred_region
          %s1977 = ssub.s32 128, 128
          %1978 = vsyncadd [#allocation13], %s1977
          %s1979 = smul.addr %s30, 128
          %s1980 = scalar_lea.hbm %s6, %s1979
          %s1982 = sshll.u32 [#allocation14], 4
          %s1983 = int_to_ptr.vmem [resolvable:$true] %s1982
          %1985 = dma.vmem_to_hbm [thread:$0]  %s1983, 128, %s1980, [#allocation13]
        $region68: #{tpu_custom_call.1} parent=35 // pred_fallthru
          _
        // Predicated region
        $region69: #{tpu_custom_call.1} parent=35 // pred_check
          %p1986 = pneg %p175
        $region70: #{tpu_custom_call.1} parent=35 // pred_check_branch
          %1988 = sbr.rel (%p1986) target = $region72
        $region71: #{tpu_custom_call.1} parent=35 // pred_region
          %1989 = dma.done [#allocation13], 128
        $region72: #{tpu_custom_call.1} parent=35 // pred_fallthru
          _
        // Predicated region
        $region73: #{tpu_custom_call.1} parent=35 // pred_check
          %p1990 = pneg %p201
        $region74: #{tpu_custom_call.1} parent=35 // pred_check_branch
          %1992 = sbr.rel (%p1990) target = $region76
        $region75: #{tpu_custom_call.1} parent=35 // pred_region
          %1993 = dma.done [#allocation13], 128
        $region76: #{tpu_custom_call.1} parent=35 // pred_fallthru
          _
      $region36: #{tpu_custom_call.1} parent=5 // pred_fallthru
        _
      %p1994 = scmp.le.s32.totalorder 2, %s21
      // Predicated region
      $region77: #{tpu_custom_call.1} parent=5 // pred_check
        %p1995 = pneg %p1994
      $region78: #{tpu_custom_call.1} parent=5 // pred_check_branch
        %1997 = sbr.rel (%p1995) target = $region80
      $region79: #{tpu_custom_call.1} parent=5 // pred_region
        %s1998 = ssub.s32 %s21, 2
        // Predicated region
        $region81: #{tpu_custom_call.1} parent=79 // pred_check
          %p1999 = pneg %p155
        $region82: #{tpu_custom_call.1} parent=79 // pred_check_branch
          %2001 = sbr.rel (%p1999) target = $region84
        $region83: #{tpu_custom_call.1} parent=79 // pred_region
          %s2002 = sand.u32 %s140, 1
          %s2003 = scalar_lea.sflag [#allocation7], %s2002
          %s2004 = sand.u32 %s140, 1
          %s2005 = smul.addr %s2004, 16
          %s2006 = scalar_lea.vmem [#allocation11], %s2005
          %2007 = dma.done %s2003, 256
        $region84: #{tpu_custom_call.1} parent=79 // pred_fallthru
          _
      $region80: #{tpu_custom_call.1} parent=5 // pred_fallthru
        _
    $region6: #{tpu_custom_call.1} parent=1 // loop_footer
      %s25 = sadd.s32 1, %s21
    $region7: #{tpu_custom_call.1} parent=1 // loop_footer_branch
      %20 = sbr.rel target = $region3
    $region8: #{tpu_custom_call.1} parent=1 // loop_exit
      _
    %2008 = vsyncpa [#allocation6], 1
    %s2009 = scalar_lea.sflag [#allocation6], 1
    %2010 = vsyncpa %s2009, 1
    %2011 = vsyncpa [#allocation9], 1
    %2012 = vsyncpa [#allocation7], 1
    %s2013 = scalar_lea.sflag [#allocation7], 1
    %2014 = vsyncpa %s2013, 1
    %2015 = vsyncpa [#allocation13], 1

// kernel: tpu_custom_call.1
$region0: #{tpu_custom_call.1}
  #allocation0 [shape = 'u32[]', space=smem, size = 0x4, offset = 0x4, fixed_abs, tag = 'smem constant byte address 0x4 - core index']
  #allocation1 [shape = 'u32[144,128]{1,0:T(1,128)}', space=vmem, size = 0x12000, scoped, tag = 'internal scratch']
  #allocation2 [shape = 'f32[8,128]{1,0:T(8,128)}', space=vmem, size = 0x1000, scoped, tag = 'scratch operand']
  #allocation3 [shape = 'f32[8,128]{1,0:T(8,128)}', space=vmem, size = 0x1000, scoped, tag = 'scratch operand']
  #allocation4 [shape = 'f32[4,8,512]{2,1,0:T(8,128)}', space=vmem, size = 0x10000, scoped, tag = 'scratch operand']
  %s0 = inlined_call_operand.hbm [shape: bf16[12,8,128], index: 0, kind: input, shape index: {}]
  %s1 = inlined_call_operand.hbm [shape: bf16[128,512], index: 1, kind: input, shape index: {}]
  %s2 = inlined_call_operand.hbm [shape: bf16[128,512], index: 2, kind: input, shape index: {}]
  %s3 = inlined_call_operand.vmem [shape: f32[1,512], index: 3, kind: input, shape index: {}]
  %s4 = inlined_call_operand.hbm [shape: bf16[12,8,128], index: 4, kind: output, shape index: {0}]
  %s5 = inlined_call_operand.hbm [shape: f32[8,128], index: 5, kind: output, shape index: {1}]
  %s6 = inlined_call_operand.hbm [shape: f32[8,128], index: 6, kind: output, shape index: {2}]
  %7 = xla_tuple %s4, %s5, %s6
  %s8 = sld [smem:[#allocation0]]
  $region85: #{tpu_custom_call.1} parent=0
    _
  %s10 = ssub.s32 1, %s8
  %s11 = scalar_select 0, %s10, %s8
  $region1: #{tpu_custom_call.1} parent=0
    #allocation5 [shape = 'u8[16384]{0}', space=vmem, size = 0x4000, scoped, tag = 'input window, operand 0']
    #allocation6 [shape = 's32[2]{0}', space=sflag, size = 0x8, scoped, tag = 'scoped memory for tpu_custom_call.1']
    #allocation7 [shape = 's32[2]{0}', space=sflag, size = 0x8, scoped, tag = 'scoped memory for tpu_custom_call.1']
    #allocation8 [shape = 'u8[131072]{0}', space=vmem, size = 0x20000, scoped, tag = 'input window, operand 1, single buffered']
    #allocation9 [shape = 's32[1]{0}', space=sflag, size = 0x4, scoped, tag = 'scoped memory for tpu_custom_call.1']
    #allocation10 [shape = 'u8[131072]{0}', space=vmem, size = 0x20000, scoped, tag = 'input window, operand 2, single buffered']
    #allocation11 [shape = 'u8[16384]{0}', space=vmem, size = 0x4000, scoped, tag = 'output window, operand 0']
    #allocation12 [shape = 'u8[4096]{0}', space=vmem, size = 0x1000, scoped, tag = 'output window, operand 1, single buffered']
    #allocation13 [shape = 's32[1]{0}', space=sflag, size = 0x4, scoped, tag = 'scoped memory for tpu_custom_call.1']
    #allocation14 [shape = 'u8[4096]{0}', space=vmem, size = 0x1000, scoped, tag = 'output window, operand 2, single buffered']
    %12 = vsyncpa [#allocation6], 0
    %s13 = scalar_lea.sflag [#allocation6], 1
    %14 = vsyncpa %s13, 0
    %15 = vsyncpa [#allocation9], 0
    %16 = vsyncpa [#allocation7], 0
    %s17 = scalar_lea.sflag [#allocation7], 1
    %18 = vsyncpa %s17, 0
    %19 = vsyncpa [#allocation13], 0
    loop: start=0, step=1, limit=5
    $region2: #{tpu_custom_call.1} parent=1 // loop_pre_header
      _
    $region3: #{tpu_custom_call.1} parent=1 // loop_header
      %s21 = sphi 0, %s25
      %p22 = scmp.ge.s32.totalorder %s21, 5
      %s28 = sphi 0, %s40
      %s29 = sphi 0, %s36
      %s30 = sphi 0, %s28
      %s31 = sphi 0, %s29
      %s32 = sphi 0, %s30
      %s33 = sphi 0, %s31
      %s45 = sphi 0, %s47
      %s48 = sphi 0, %s45
      %s49 = sphi 0, %s48
      %s65 = sphi 0, %s49
      %s69 = sphi 0, %s69
      %s71 = sphi 0, %s69
      %s72 = sphi 0, %s71
      %s86 = sphi 0, %s72
      %s90 = sphi 0, %s90
      %s92 = sphi 0, %s90
      %s93 = sphi 0, %s92
      %s107 = sphi 0, %s93
      %s111 = sphi 0, %s111
      %s113 = sphi 0, %s111
      %s114 = sphi 0, %s113
      %s128 = sphi 0, %s114
      %s136 = sphi 0, %s138
      %s139 = sphi 0, %s136
      %s140 = sphi 0, %s139
      %s156 = sphi 0, %s140
      %s162 = sphi 0, %s164
      %s165 = sphi 0, %s162
      %s166 = sphi 0, %s165
      %s182 = sphi 0, %s166
      %s188 = sphi 0, %s190
      %s191 = sphi 0, %s188
      %s192 = sphi 0, %s191
      %s208 = sphi 0, %s192
    $region4: #{tpu_custom_call.1} parent=1 // loop_header_branch
      %24 = sbr.rel (%p22) target = $region8
    $region5: #{tpu_custom_call.1} parent=1 // loop_body
      %s26 = ssub.s32 %s21, 1
      %s27 = ssub.s32 %s21, 2
      %s34 = sadd.s32 1, %s29
      %p35 = scmp.ge.s32.totalorder %s34, 3
      %s36 = scalar_select %p35, 0, %s34
      %s37 = sadd.s32 1, %s28
      %s38 = scalar_select %p35, %s37, %s28
      %p39 = scmp.ge.s32.totalorder %s38, 1
      %s40 = scalar_select %p39, 0, %s38
      %s41 = ssub.s32 %s29, %s36
      %s42 = ssub.s32 %s28, %s40
      %s43 = sor.u32 %s41, %s42
      %p44 = scmp.eq.s32.totalorder %s43, 0
      %s46 = sadd.s32 %s45, 1
      %s47 = scalar_select %p44, %s45, %s46
      %p50 = pneg %p44
      %p51 = scmp.eq.s32.totalorder %s21, 2
      %p52 = por %p50, %p51
      %p53 = scmp.ne.s32.totalorder %s45, %s48
      %p54 = scmp.eq.s32.totalorder %s21, 0
      %p55 = por %p53, %p54
      %p56 = scmp.ne.s32.totalorder %s45, %s48
      %p57 = scmp.eq.s32.totalorder %s26, 2
      %p58 = por %p56, %p57
      %p59 = scmp.ne.s32.totalorder %s48, %s49
      %p60 = scmp.eq.s32.totalorder %s26, 0
      %p61 = por %p59, %p60
      %p62 = scmp.ne.s32.totalorder %s48, %s49
      %p63 = scmp.eq.s32.totalorder %s27, 2
      %p64 = por %p62, %p63
      %p66 = scmp.ne.s32.totalorder %s49, %s65
      %p67 = scmp.eq.s32.totalorder %s27, 0
      %p68 = por %p66, %p67
      %s70 = sadd.s32 %s69, 1
      %p73 = scmp.eq.s32.totalorder %s21, 2
      %p74 = scmp.ne.s32.totalorder %s69, %s71
      %p75 = scmp.eq.s32.totalorder %s21, 0
      %p76 = por %p74, %p75
      %p77 = scmp.ne.s32.totalorder %s69, %s71
      %p78 = scmp.eq.s32.totalorder %s26, 2
      %p79 = por %p77, %p78
      %p80 = scmp.ne.s32.totalorder %s71, %s72
      %p81 = scmp.eq.s32.totalorder %s26, 0
      %p82 = por %p80, %p81
      %p83 = scmp.ne.s32.totalorder %s71, %s72
      %p84 = scmp.eq.s32.totalorder %s27, 2
      %p85 = por %p83, %p84
      %p87 = scmp.ne.s32.totalorder %s72, %s86
      %p88 = scmp.eq.s32.totalorder %s27, 0
      %p89 = por %p87, %p88
      %s91 = sadd.s32 %s90, 1
      %p94 = scmp.eq.s32.totalorder %s21, 2
      %p95 = scmp.ne.s32.totalorder %s90, %s92
      %p96 = scmp.eq.s32.totalorder %s21, 0
      %p97 = por %p95, %p96
      %p98 = scmp.ne.s32.totalorder %s90, %s92
      %p99 = scmp.eq.s32.totalorder %s26, 2
      %p100 = por %p98, %p99
      %p101 = scmp.ne.s32.totalorder %s92, %s93
      %p102 = scmp.eq.s32.totalorder %s26, 0
      %p103 = por %p101, %p102
      %p104 = scmp.ne.s32.totalorder %s92, %s93
      %p105 = scmp.eq.s32.totalorder %s27, 2
      %p106 = por %p104, %p105
      %p108 = scmp.ne.s32.totalorder %s93, %s107
      %p109 = scmp.eq.s32.totalorder %s27, 0
      %p110 = por %p108, %p109
      %s112 = sadd.s32 %s111, 1
      %p115 = scmp.eq.s32.totalorder %s21, 2
      %p116 = scmp.ne.s32.totalorder %s111, %s113
      %p117 = scmp.eq.s32.totalorder %s21, 0
      %p118 = por %p116, %p117
      %p119 = scmp.ne.s32.totalorder %s111, %s113
      %p120 = scmp.eq.s32.totalorder %s26, 2
      %p121 = por %p119, %p120
      %p122 = scmp.ne.s32.totalorder %s113, %s114
      %p123 = scmp.eq.s32.totalorder %s26, 0
      %p124 = por %p122, %p123
      %p125 = scmp.ne.s32.totalorder %s113, %s114
      %p126 = scmp.eq.s32.totalorder %s27, 2
      %p127 = por %p125, %p126
      %p129 = scmp.ne.s32.totalorder %s114, %s128
      %p130 = scmp.eq.s32.totalorder %s27, 0
      %p131 = por %p129, %p130
      %s132 = ssub.s32 %s29, %s36
      %s133 = ssub.s32 %s28, %s40
      %s134 = sor.u32 %s132, %s133
      %p135 = scmp.eq.s32.totalorder %s134, 0
      %s137 = sadd.s32 %s136, 1
      %s138 = scalar_select %p135, %s136, %s137
      %p141 = pneg %p135
      %p142 = scmp.eq.s32.totalorder %s21, 2
      %p143 = por %p141, %p142
      %p144 = scmp.ne.s32.totalorder %s136, %s139
      %p145 = scmp.eq.s32.totalorder %s21, 0
      %p146 = por %p144, %p145
      %p147 = scmp.ne.s32.totalorder %s136, %s139
      %p148 = scmp.eq.s32.totalorder %s26, 2
      %p149 = por %p147, %p148
      %p150 = scmp.ne.s32.totalorder %s139, %s140
      %p151 = scmp.eq.s32.totalorder %s26, 0
      %p152 = por %p150, %p151
      %p153 = scmp.ne.s32.totalorder %s139, %s140
      %p154 = scmp.eq.s32.totalorder %s27, 2
      %p155 = por %p153, %p154
      %p157 = scmp.ne.s32.totalorder %s140, %s156
      %p158 = scmp.eq.s32.totalorder %s27, 0
      %p159 = por %p157, %p158
      %s160 = ssub.s32 %s28, %s40
      %p161 = scmp.eq.s32.totalorder %s160, 0
      %s163 = sadd.s32 %s162, 1
      %s164 = scalar_select %p161, %s162, %s163
      %p167 = pneg %p161
      %p168 = scmp.eq.s32.totalorder %s21, 2
      %p169 = por %p167, %p168
      %p170 = scmp.ne.s32.totalorder %s162, %s165
      %p171 = scmp.eq.s32.totalorder %s21, 0
      %p172 = por %p170, %p171
      %p173 = scmp.ne.s32.totalorder %s162, %s165
      %p174 = scmp.eq.s32.totalorder %s26, 2
      %p175 = por %p173, %p174
      %p176 = scmp.ne.s32.totalorder %s165, %s166
      %p177 = scmp.eq.s32.totalorder %s26, 0
      %p178 = por %p176, %p177
      %p179 = scmp.ne.s32.totalorder %s165, %s166
      %p180 = scmp.eq.s32.totalorder %s27, 2
      %p181 = por %p179, %p180
      %p183 = scmp.ne.s32.totalorder %s166, %s182
      %p184 = scmp.eq.s32.totalorder %s27, 0
      %p185 = por %p183, %p184
      %s186 = ssub.s32 %s28, %s40
      %p187 = scmp.eq.s32.totalorder %s186, 0
      %s189 = sadd.s32 %s188, 1
      %s190 = scalar_select %p187, %s188, %s189
      %p193 = pneg %p187
      %p194 = scmp.eq.s32.totalorder %s21, 2
      %p195 = por %p193, %p194
      %p196 = scmp.ne.s32.totalorder %s188, %s191
      %p197 = scmp.eq.s32.totalorder %s21, 0
      %p198 = por %p196, %p197
      %p199 = scmp.ne.s32.totalorder %s188, %s191
      %p200 = scmp.eq.s32.totalorder %s26, 2
      %p201 = por %p199, %p200
      %p202 = scmp.ne.s32.totalorder %s191, %s192
      %p203 = scmp.eq.s32.totalorder %s26, 0
      %p204 = por %p202, %p203
      %p205 = scmp.ne.s32.totalorder %s191, %s192
      %p206 = scmp.eq.s32.totalorder %s27, 2
      %p207 = por %p205, %p206
      %p209 = scmp.ne.s32.totalorder %s192, %s208
      %p210 = scmp.eq.s32.totalorder %s27, 0
      %p211 = por %p209, %p210
      %p212 = scmp.le.s32.totalorder 1, %s21
      %p213 = scmp.lt.s32.totalorder %s21, 4
      %p214 = pnand %p212, %p213
      %p215 = pneg %p214
      // Predicated region
      $region9: #{tpu_custom_call.1} parent=5 // pred_check
        _
      $region10: #{tpu_custom_call.1} parent=5 // pred_check_branch
        %217 = sbr.rel (%p214) target = $region12
      $region11: #{tpu_custom_call.1} parent=5 // pred_region
        %s218 = ssub.s32 %s21, 1
        // Predicated region
        $region13: #{tpu_custom_call.1} parent=11 // pred_check
          %p219 = pneg %p82
        $region14: #{tpu_custom_call.1} parent=11 // pred_check_branch
          %221 = sbr.rel (%p219) target = $region16
        $region15: #{tpu_custom_call.1} parent=11 // pred_region
          %s223 = ssub.s32 4096, 4096
          %224 = vsyncadd [#allocation9], %s223
          %s225 = sshll.u32 [#allocation8], 4
          %s226 = int_to_ptr.vmem [resolvable:$true] %s225
          %231 = dma.hbm_to_vmem [thread:$0]  %s1, 4096, %s226, [#allocation9], 256, 256, 16
        $region16: #{tpu_custom_call.1} parent=11 // pred_fallthru
          _
        // Predicated region
        $region17: #{tpu_custom_call.1} parent=11 // pred_check
          %p232 = pneg %p103
        $region18: #{tpu_custom_call.1} parent=11 // pred_check_branch
          %234 = sbr.rel (%p232) target = $region20
        $region19: #{tpu_custom_call.1} parent=11 // pred_region
          %s236 = ssub.s32 4096, 4096
          %237 = vsyncadd [#allocation9], %s236
          %s238 = sshll.u32 [#allocation10], 4
          %s239 = int_to_ptr.vmem [resolvable:$true] %s238
          %244 = dma.hbm_to_vmem [thread:$0]  %s2, 4096, %s239, [#allocation9], 256, 256, 16
        $region20: #{tpu_custom_call.1} parent=11 // pred_fallthru
          _
        // Predicated region
        $region21: #{tpu_custom_call.1} parent=11 // pred_check
          %p245 = pneg %p124
        $region22: #{tpu_custom_call.1} parent=11 // pred_check_branch
          %247 = sbr.rel (%p245) target = $region24
        $region23: #{tpu_custom_call.1} parent=11 // pred_region
          _
        $region24: #{tpu_custom_call.1} parent=11 // pred_fallthru
          _
      $region12: #{tpu_custom_call.1} parent=5 // pred_fallthru
        _
      %p248 = scmp.lt.s32.totalorder %s21, 3
      // Predicated region
      $region25: #{tpu_custom_call.1} parent=5 // pred_check
        %p249 = pneg %p248
      $region26: #{tpu_custom_call.1} parent=5 // pred_check_branch
        %251 = sbr.rel (%p249) target = $region28
      $region27: #{tpu_custom_call.1} parent=5 // pred_region
        // Predicated region
        $region29: #{tpu_custom_call.1} parent=27 // pred_check
          %p252 = pneg %p55
        $region30: #{tpu_custom_call.1} parent=27 // pred_check_branch
          %254 = sbr.rel (%p252) target = $region32
        $region31: #{tpu_custom_call.1} parent=27 // pred_region
          %s255 = sand.u32 %s45, 1
          %s256 = scalar_lea.sflag [#allocation6], %s255
          %s257 = sand.u32 %s45, 1
          %s258 = smul.addr %s257, 16
          %s259 = scalar_lea.vmem [#allocation5], %s258
          %s260 = smul.u32 4, %s29
          %s262 = ssub.s32 256, 256
          %263 = vsyncadd %s256, %s262
          %s264 = sadd.s32 %s28, %s260
          %s265 = smul.addr %s264, 64
          %s266 = scalar_lea.hbm %s0, %s265
          %s267 = sshll.u32 %s259, 4
          %s268 = int_to_ptr.vmem [resolvable:$true] %s267
          %273 = dma.hbm_to_vmem [thread:$0]  %s266, 256, %s268, %s256, 64, 64, 4
        $region32: #{tpu_custom_call.1} parent=27 // pred_fallthru
          _
      $region28: #{tpu_custom_call.1} parent=5 // pred_fallthru
        _
      %p274 = scmp.le.s32.totalorder 1, %s21
      %p275 = scmp.lt.s32.totalorder %s21, 4
      %p276 = pnand %p274, %p275
      %p277 = pneg %p276
      // Predicated region
      $region33: #{tpu_custom_call.1} parent=5 // pred_check
        _
      $region34: #{tpu_custom_call.1} parent=5 // pred_check_branch
        %279 = sbr.rel (%p276) target = $region36
      $region35: #{tpu_custom_call.1} parent=5 // pred_region
        %s280 = ssub.s32 %s21, 1
        %s281 = sand.u32 %s48, 1
        %s282 = scalar_lea.sflag [#allocation6], %s281
        %s283 = sand.u32 %s48, 1
        %s284 = smul.addr %s283, 16
        %s285 = scalar_lea.vmem [#allocation5], %s284
        // Predicated region
        $region37: #{tpu_custom_call.1} parent=35 // pred_check
          %p286 = pneg %p61
        $region38: #{tpu_custom_call.1} parent=35 // pred_check_branch
          %288 = sbr.rel (%p286) target = $region40
        $region39: #{tpu_custom_call.1} parent=35 // pred_region
          %289 = dma.done %s282, 256
        $region40: #{tpu_custom_call.1} parent=35 // pred_fallthru
          _
        // Predicated region
        $region41: #{tpu_custom_call.1} parent=35 // pred_check
          %p290 = pneg %p82
        $region42: #{tpu_custom_call.1} parent=35 // pred_check_branch
          %292 = sbr.rel (%p290) target = $region44
        $region43: #{tpu_custom_call.1} parent=35 // pred_region
          %293 = dma.done [#allocation9], 4096
        $region44: #{tpu_custom_call.1} parent=35 // pred_fallthru
          _
        // Predicated region
        $region45: #{tpu_custom_call.1} parent=35 // pred_check
          %p294 = pneg %p103
        $region46: #{tpu_custom_call.1} parent=35 // pred_check_branch
          %296 = sbr.rel (%p294) target = $region48
        $region47: #{tpu_custom_call.1} parent=35 // pred_region
          %297 = dma.done [#allocation9], 4096
        $region48: #{tpu_custom_call.1} parent=35 // pred_fallthru
          _
        %s298 = sand.u32 %s48, 1
        %s299 = scalar_lea.sflag [#allocation6], %s298
        %s300 = sand.u32 %s48, 1
        %s301 = smul.addr %s300, 16
        %s302 = scalar_lea.vmem [#allocation5], %s301
        %p303 = pneg %p61
        %p304 = pneg %p58
        %p305 = pneg %p82
        %p306 = pneg %p79
        %p307 = pneg %p103
        %p308 = pneg %p100
        %p309 = pneg %p124
        %p310 = pneg %p121
        %p311 = pneg %p152
        %p312 = pneg %p149
        %s313 = sand.u32 %s139, 1
        %s314 = scalar_lea.sflag [#allocation7], %s313
        %s315 = sand.u32 %s139, 1
        %s316 = smul.addr %s315, 16
        %s317 = scalar_lea.vmem [#allocation11], %s316
        %p318 = pneg %p178
        %p319 = pneg %p175
        %p320 = pneg %p204
        %p321 = pneg %p201
        %s322 = smul.u32 4, %s31
        %s323 = smul.u32 4, %s31
        %p325 = scmp.eq.s32.totalorder %s31, 0
        // Predicated region
        $region49: #{tpu_custom_call.1} parent=35 // pred_check
          %p326 = pneg %p325
        $region50: #{tpu_custom_call.1} parent=35 // pred_check_branch
          %328 = sbr.rel (%p326) target = $region52
        $region51: #{tpu_custom_call.1} parent=35 // pred_region
          %329 = vst [vmem:[#allocation2] sm:$0xff] 0.0
          %330 = vst [vmem:[#allocation3] sm:$0xff] 0.0
        $region52: #{tpu_custom_call.1} parent=35 // pred_fallthru
          _
        %v331 = vld [vmem:[%s285] sm:$0xf]
        %v332 = vld [vmem:[%s285 + $0x4] sm:$0xf]
        %v333 = vld [vmem:[%s285 + $0x8] sm:$0xf]
        %v334 = vld [vmem:[%s285 + $0xc] sm:$0xf]
        %v335 = vld [vmem:[#allocation8] sm:$0xff]
        %v336 = vld [vmem:[#allocation8 + $0x8] sm:$0xff]
        %v337 = vld [vmem:[#allocation8 + $0x10] sm:$0xff]
        %v338 = vld [vmem:[#allocation8 + $0x18] sm:$0xff]
        %v339 = vld [vmem:[#allocation8 + $0x20] sm:$0xff]
        %v340 = vld [vmem:[#allocation8 + $0x28] sm:$0xff]
        %v341 = vld [vmem:[#allocation8 + $0x30] sm:$0xff]
        %v342 = vld [vmem:[#allocation8 + $0x38] sm:$0xff]
        %v343 = vld [vmem:[#allocation8 + $0x40] sm:$0xff]
        %v344 = vld [vmem:[#allocation8 + $0x48] sm:$0xff]
        %v345 = vld [vmem:[#allocation8 + $0x50] sm:$0xff]
        %v346 = vld [vmem:[#allocation8 + $0x58] sm:$0xff]
        %v347 = vld [vmem:[#allocation8 + $0x60] sm:$0xff]
        %v348 = vld [vmem:[#allocation8 + $0x68] sm:$0xff]
        %v349 = vld [vmem:[#allocation8 + $0x70] sm:$0xff]
        %v350 = vld [vmem:[#allocation8 + $0x78] sm:$0xff]
        %v351 = vld [vmem:[#allocation8 + $0x80] sm:$0xff]
        %v352 = vld [vmem:[#allocation8 + $0x88] sm:$0xff]
        %v353 = vld [vmem:[#allocation8 + $0x90] sm:$0xff]
        %v354 = vld [vmem:[#allocation8 + $0x98] sm:$0xff]
        %v355 = vld [vmem:[#allocation8 + $0xa0] sm:$0xff]
        %v356 = vld [vmem:[#allocation8 + $0xa8] sm:$0xff]
        %v357 = vld [vmem:[#allocation8 + $0xb0] sm:$0xff]
        %v358 = vld [vmem:[#allocation8 + $0xb8] sm:$0xff]
        %v359 = vld [vmem:[#allocation8 + $0xc0] sm:$0xff]
        %v360 = vld [vmem:[#allocation8 + $0xc8] sm:$0xff]
        %v361 = vld [vmem:[#allocation8 + $0xd0] sm:$0xff]
        %v362 = vld [vmem:[#allocation8 + $0xd8] sm:$0xff]
        %v363 = vld [vmem:[#allocation8 + $0xe0] sm:$0xff]
        %v364 = vld [vmem:[#allocation8 + $0xe8] sm:$0xff]
        %v365 = vld [vmem:[#allocation8 + $0xf0] sm:$0xff]
        %v366 = vld [vmem:[#allocation8 + $0xf8] sm:$0xff]
        %v367 = vld [vmem:[%s3] sm:$0xf]
        %v369 = vlaneseq
        %v370 = vshrl.u32 %v369, 7
        %v371 = vsub.s32 0, %v370
        %v372 = vrot.slane %v367, %v371
        %v373 = vlaneseq
        %v374 = vshrl.u32 %v373, 7
        %v375 = vsub.s32 1, %v374
        %v376 = vrot.slane %v367, %v375
        %v377 = vlaneseq
        %v378 = vshrl.u32 %v377, 7
        %v379 = vsub.s32 2, %v378
        %v380 = vrot.slane %v367, %v379
        %v381 = vlaneseq
        %v382 = vshrl.u32 %v381, 7
        %v383 = vsub.s32 3, %v382
        %v384 = vrot.slane %v367, %v383
        %v393 = vunpack.c.l.b16 %v331
        %v394 = vunpack.c.l.b16 %v332
        %v395 = vunpack.c.l.b16 %v333
        %v396 = vunpack.c.l.b16 %v334
        %v397 = vpack.c.b16 %v394, %v393
        %v398 = vpack.c.b16 %v396, %v395
        %v433 = vunpack.c.l.b16 %v335
        %v434 = vunpack.c.h.b16 %v335
        %v435 = vunpack.c.l.b16 %v336
        %v436 = vunpack.c.h.b16 %v336
        %v437 = vunpack.c.l.b16 %v337
        %v438 = vunpack.c.h.b16 %v337
        %v439 = vunpack.c.l.b16 %v338
        %v440 = vunpack.c.h.b16 %v338
        %v441 = vunpack.c.l.b16 %v339
        %v442 = vunpack.c.h.b16 %v339
        %v443 = vunpack.c.l.b16 %v340
        %v444 = vunpack.c.h.b16 %v340
        %v445 = vunpack.c.l.b16 %v341
        %v446 = vunpack.c.h.b16 %v341
        %v447 = vunpack.c.l.b16 %v342
        %v448 = vunpack.c.h.b16 %v342
        %v449 = vunpack.c.l.b16 %v343
        %v450 = vunpack.c.h.b16 %v343
        %v451 = vunpack.c.l.b16 %v344
        %v452 = vunpack.c.h.b16 %v344
        %v453 = vunpack.c.l.b16 %v345
        %v454 = vunpack.c.h.b16 %v345
        %v455 = vunpack.c.l.b16 %v346
        %v456 = vunpack.c.h.b16 %v346
        %v457 = vunpack.c.l.b16 %v347
        %v458 = vunpack.c.h.b16 %v347
        %v459 = vunpack.c.l.b16 %v348
        %v460 = vunpack.c.h.b16 %v348
        %v461 = vunpack.c.l.b16 %v349
        %v462 = vunpack.c.h.b16 %v349
        %v463 = vunpack.c.l.b16 %v350
        %v464 = vunpack.c.h.b16 %v350
        %v465 = vunpack.c.l.b16 %v351
        %v466 = vunpack.c.h.b16 %v351
        %v467 = vunpack.c.l.b16 %v352
        %v468 = vunpack.c.h.b16 %v352
        %v469 = vunpack.c.l.b16 %v353
        %v470 = vunpack.c.h.b16 %v353
        %v471 = vunpack.c.l.b16 %v354
        %v472 = vunpack.c.h.b16 %v354
        %v473 = vunpack.c.l.b16 %v355
        %v474 = vunpack.c.h.b16 %v355
        %v475 = vunpack.c.l.b16 %v356
        %v476 = vunpack.c.h.b16 %v356
        %v477 = vunpack.c.l.b16 %v357
        %v478 = vunpack.c.h.b16 %v357
        %v479 = vunpack.c.l.b16 %v358
        %v480 = vunpack.c.h.b16 %v358
        %v481 = vunpack.c.l.b16 %v359
        %v482 = vunpack.c.h.b16 %v359
        %v483 = vunpack.c.l.b16 %v360
        %v484 = vunpack.c.h.b16 %v360
        %v485 = vunpack.c.l.b16 %v361
        %v486 = vunpack.c.h.b16 %v361
        %v487 = vunpack.c.l.b16 %v362
        %v488 = vunpack.c.h.b16 %v362
        %v489 = vunpack.c.l.b16 %v363
        %v490 = vunpack.c.h.b16 %v363
        %v491 = vunpack.c.l.b16 %v364
        %v492 = vunpack.c.h.b16 %v364
        %v493 = vunpack.c.l.b16 %v365
        %v494 = vunpack.c.h.b16 %v365
        %v495 = vunpack.c.l.b16 %v366
        %v496 = vunpack.c.h.b16 %v366
        %v497 = vpack.c.b16 %v437, %v433
        %v498 = vpack.c.b16 %v438, %v434
        %v499 = vpack.c.b16 %v439, %v435
        %v500 = vpack.c.b16 %v440, %v436
        %v501 = vpack.c.b16 %v445, %v441
        %v502 = vpack.c.b16 %v446, %v442
        %v503 = vpack.c.b16 %v447, %v443
        %v504 = vpack.c.b16 %v448, %v444
        %v505 = vpack.c.b16 %v453, %v449
        %v506 = vpack.c.b16 %v454, %v450
        %v507 = vpack.c.b16 %v455, %v451
        %v508 = vpack.c.b16 %v456, %v452
        %v509 = vpack.c.b16 %v461, %v457
        %v510 = vpack.c.b16 %v462, %v458
        %v511 = vpack.c.b16 %v463, %v459
        %v512 = vpack.c.b16 %v464, %v460
        %v513 = vpack.c.b16 %v469, %v465
        %v514 = vpack.c.b16 %v470, %v466
        %v515 = vpack.c.b16 %v471, %v467
        %v516 = vpack.c.b16 %v472, %v468
        %v517 = vpack.c.b16 %v477, %v473
        %v518 = vpack.c.b16 %v478, %v474
        %v519 = vpack.c.b16 %v479, %v475
        %v520 = vpack.c.b16 %v480, %v476
        %v521 = vpack.c.b16 %v485, %v481
        %v522 = vpack.c.b16 %v486, %v482
        %v523 = vpack.c.b16 %v487, %v483
        %v524 = vpack.c.b16 %v488, %v484
        %v525 = vpack.c.b16 %v493, %v489
        %v526 = vpack.c.b16 %v494, %v490
        %v527 = vpack.c.b16 %v495, %v491
        %v528 = vpack.c.b16 %v496, %v492
        %561 = vmatprep.subr.bf16.mxu0 %v498
        %562 = vmatpush1.bf16.msra.mxu0 %v497
        %563 = vmatprep.subr.bf16.mxu0 %v502
        %564 = vmatpush1.bf16.msra.mxu0 %v501
        %565 = vmatprep.subr.bf16.mxu0 %v506
        %566 = vmatpush1.bf16.msra.mxu0 %v505
        %567 = vmatprep.subr.bf16.mxu0 %v510
        %568 = vmatpush1.bf16.msra.mxu0 %v509
        %569 = vmatprep.subr.bf16.mxu0 %v514
        %570 = vmatpush1.bf16.msra.mxu0 %v513
        %571 = vmatprep.subr.bf16.mxu0 %v518
        %572 = vmatpush1.bf16.msra.mxu0 %v517
        %573 = vmatprep.subr.bf16.mxu0 %v522
        %574 = vmatpush1.bf16.msra.mxu0 %v521
        %575 = vmatprep.subr.bf16.mxu0 %v526
        %576 = vmatpush1.bf16.msra.mxu0 %v525
        %577 = vmatprep.subr.bf16.mxu0 0
        %578 = vmatpush1.bf16.msra.mxu0 0
        %579 = vmatprep.subr.bf16.mxu0 0
        %580 = vmatpush1.bf16.msra.mxu0 0
        %581 = vmatprep.subr.bf16.mxu0 0
        %582 = vmatpush1.bf16.msra.mxu0 0
        %583 = vmatprep.subr.bf16.mxu0 0
        %584 = vmatpush1.bf16.msra.mxu0 0
        %585 = vmatprep.subr.bf16.mxu0 0
        %586 = vmatpush1.bf16.msra.mxu0 0
        %587 = vmatprep.subr.bf16.mxu0 0
        %588 = vmatpush1.bf16.msra.mxu0 0
        %589 = vmatprep.subr.bf16.mxu0 0
        %590 = vmatpush1.bf16.msra.mxu0 0
        %591 = vmatprep.subr.bf16.mxu0 0
        %592 = vmatpush1.bf16.msra.mxu0 0
        %593 = vmatprep.mubr.bf16.mxu0 0
        %594 = vmatmul.mubr.bf16.gmra.mrb[0].mxu0 %v397
        %v595 = vpop.f32.mrb[0].mxu0
        %v596 = vadd.f32 %v372, %v595
        %v597 = vpop.f32.mrb[0].mxu0
        %v598 = vadd.f32 %v376, %v597
        %v599 = vpop.f32.mrb[0].mxu0
        %v600 = vadd.f32 %v372, %v599
        %v601 = vpop.f32.mrb[0].mxu0
        %v602 = vadd.f32 %v376, %v601
        %603 = vmatprep.mubr.bf16.mxu0 0
        %604 = vmatmul.mubr.bf16.gmra.mrb[0].mxu0 %v398
        %v605 = vpop.f32.mrb[0].mxu0
        %v606 = vadd.f32 %v372, %v605
        %v607 = vpop.f32.mrb[0].mxu0
        %v608 = vadd.f32 %v376, %v607
        %v609 = vpop.f32.mrb[0].mxu0
        %v610 = vadd.f32 %v372, %v609
        %v611 = vpop.f32.mrb[0].mxu0
        %v612 = vadd.f32 %v376, %v611
        %613 = vdwg.mxu0
        %614 = vmatprep.subr.bf16.mxu0 %v500
        %615 = vmatpush1.bf16.msra.mxu0 %v499
        %616 = vmatprep.subr.bf16.mxu0 %v504
        %617 = vmatpush1.bf16.msra.mxu0 %v503
        %618 = vmatprep.subr.bf16.mxu0 %v508
        %619 = vmatpush1.bf16.msra.mxu0 %v507
        %620 = vmatprep.subr.bf16.mxu0 %v512
        %621 = vmatpush1.bf16.msra.mxu0 %v511
        %622 = vmatprep.subr.bf16.mxu0 %v516
        %623 = vmatpush1.bf16.msra.mxu0 %v515
        %624 = vmatprep.subr.bf16.mxu0 %v520
        %625 = vmatpush1.bf16.msra.mxu0 %v519
        %626 = vmatprep.subr.bf16.mxu0 %v524
        %627 = vmatpush1.bf16.msra.mxu0 %v523
        %628 = vmatprep.subr.bf16.mxu0 %v528
        %629 = vmatpush1.bf16.msra.mxu0 %v527
        %630 = vmatprep.subr.bf16.mxu0 0
        %631 = vmatpush1.bf16.msra.mxu0 0
        %632 = vmatprep.subr.bf16.mxu0 0
        %633 = vmatpush1.bf16.msra.mxu0 0
        %634 = vmatprep.subr.bf16.mxu0 0
        %635 = vmatpush1.bf16.msra.mxu0 0
        %636 = vmatprep.subr.bf16.mxu0 0
        %637 = vmatpush1.bf16.msra.mxu0 0
        %638 = vmatprep.subr.bf16.mxu0 0
        %639 = vmatpush1.bf16.msra.mxu0 0
        %640 = vmatprep.subr.bf16.mxu0 0
        %641 = vmatpush1.bf16.msra.mxu0 0
        %642 = vmatprep.subr.bf16.mxu0 0
        %643 = vmatpush1.bf16.msra.mxu0 0
        %644 = vmatprep.subr.bf16.mxu0 0
        %645 = vmatpush1.bf16.msra.mxu0 0
        %646 = vmatprep.mubr.bf16.mxu0 0
        %647 = vmatmul.mubr.bf16.gmra.mrb[0].mxu0 %v397
        %v648 = vpop.f32.mrb[0].mxu0
        %v649 = vadd.f32 %v380, %v648
        %v650 = vpop.f32.mrb[0].mxu0
        %v651 = vadd.f32 %v384, %v650
        %v652 = vpop.f32.mrb[0].mxu0
        %v653 = vadd.f32 %v380, %v652
        %v654 = vpop.f32.mrb[0].mxu0
        %v655 = vadd.f32 %v384, %v654
        %656 = vmatprep.mubr.bf16.mxu0 0
        %657 = vmatmul.mubr.bf16.gmra.mrb[0].mxu0 %v398
        %v658 = vpop.f32.mrb[0].mxu0
        %v659 = vadd.f32 %v380, %v658
        %v660 = vpop.f32.mrb[0].mxu0
        %v661 = vadd.f32 %v384, %v660
        %v662 = vpop.f32.mrb[0].mxu0
        %v663 = vadd.f32 %v380, %v662
        %v664 = vpop.f32.mrb[0].mxu0
        %v665 = vadd.f32 %v384, %v664
        %666 = vdwg.mxu0
        %667 = vst [vmem:[#allocation4] sm:$0xff] %v596
        %668 = vst [vmem:[#allocation4 + $0x8] sm:$0xff] %v598
        %669 = vst [vmem:[#allocation4 + $0x10] sm:$0xff] %v649
        %670 = vst [vmem:[#allocation4 + $0x18] sm:$0xff] %v651
        %671 = vst [vmem:[#allocation4 + $0x20] sm:$0xff] %v600
        %672 = vst [vmem:[#allocation4 + $0x28] sm:$0xff] %v602
        %673 = vst [vmem:[#allocation4 + $0x30] sm:$0xff] %v653
        %674 = vst [vmem:[#allocation4 + $0x38] sm:$0xff] %v655
        %675 = vst [vmem:[#allocation4 + $0x40] sm:$0xff] %v606
        %676 = vst [vmem:[#allocation4 + $0x48] sm:$0xff] %v608
        %677 = vst [vmem:[#allocation4 + $0x50] sm:$0xff] %v659
        %678 = vst [vmem:[#allocation4 + $0x58] sm:$0xff] %v661
        %679 = vst [vmem:[#allocation4 + $0x60] sm:$0xff] %v610
        %680 = vst [vmem:[#allocation4 + $0x68] sm:$0xff] %v612
        %681 = vst [vmem:[#allocation4 + $0x70] sm:$0xff] %v663
        %682 = vst [vmem:[#allocation4 + $0x78] sm:$0xff] %v665
        %v683 = vld [vmem:[#allocation2] sm:$0xff]
        %v684 = vld [vmem:[#allocation3] sm:$0xff]
        %v685 = vld [vmem:[#allocation4] sm:$0xff]
        %v686 = vld [vmem:[#allocation4 + $0x8] sm:$0xff]
        %v687 = vld [vmem:[#allocation4 + $0x10] sm:$0xff]
        %v688 = vld [vmem:[#allocation4 + $0x18] sm:$0xff]
        %v689 = vpack.c.bf16 %v683, %v683
        %v690 = vld [vmem:[#allocation10] sm:$0xff]
        %v691 = vld [vmem:[#allocation10 + $0x8] sm:$0xff]
        %v692 = vld [vmem:[#allocation10 + $0x10] sm:$0xff]
        %v693 = vld [vmem:[#allocation10 + $0x18] sm:$0xff]
        %v694 = vld [vmem:[#allocation10 + $0x20] sm:$0xff]
        %v695 = vld [vmem:[#allocation10 + $0x28] sm:$0xff]
        %v696 = vld [vmem:[#allocation10 + $0x30] sm:$0xff]
        %v697 = vld [vmem:[#allocation10 + $0x38] sm:$0xff]
        %v698 = vld [vmem:[#allocation10 + $0x40] sm:$0xff]
        %v699 = vld [vmem:[#allocation10 + $0x48] sm:$0xff]
        %v700 = vld [vmem:[#allocation10 + $0x50] sm:$0xff]
        %v701 = vld [vmem:[#allocation10 + $0x58] sm:$0xff]
        %v702 = vld [vmem:[#allocation10 + $0x60] sm:$0xff]
        %v703 = vld [vmem:[#allocation10 + $0x68] sm:$0xff]
        %v704 = vld [vmem:[#allocation10 + $0x70] sm:$0xff]
        %v705 = vld [vmem:[#allocation10 + $0x78] sm:$0xff]
        %v706 = vld [vmem:[#allocation10 + $0x80] sm:$0xff]
        %v707 = vld [vmem:[#allocation10 + $0x88] sm:$0xff]
        %v708 = vld [vmem:[#allocation10 + $0x90] sm:$0xff]
        %v709 = vld [vmem:[#allocation10 + $0x98] sm:$0xff]
        %v710 = vld [vmem:[#allocation10 + $0xa0] sm:$0xff]
        %v711 = vld [vmem:[#allocation10 + $0xa8] sm:$0xff]
        %v712 = vld [vmem:[#allocation10 + $0xb0] sm:$0xff]
        %v713 = vld [vmem:[#allocation10 + $0xb8] sm:$0xff]
        %v714 = vld [vmem:[#allocation10 + $0xc0] sm:$0xff]
        %v715 = vld [vmem:[#allocation10 + $0xc8] sm:$0xff]
        %v716 = vld [vmem:[#allocation10 + $0xd0] sm:$0xff]
        %v717 = vld [vmem:[#allocation10 + $0xd8] sm:$0xff]
        %v718 = vld [vmem:[#allocation10 + $0xe0] sm:$0xff]
        %v719 = vld [vmem:[#allocation10 + $0xe8] sm:$0xff]
        %v720 = vld [vmem:[#allocation10 + $0xf0] sm:$0xff]
        %v721 = vld [vmem:[#allocation10 + $0xf8] sm:$0xff]
        %v754 = vunpack.c.l.b16 %v690
        %v755 = vunpack.c.h.b16 %v690
        %v756 = vunpack.c.l.b16 %v691
        %v757 = vunpack.c.h.b16 %v691
        %v758 = vunpack.c.l.b16 %v692
        %v759 = vunpack.c.h.b16 %v692
        %v760 = vunpack.c.l.b16 %v693
        %v761 = vunpack.c.h.b16 %v693
        %v762 = vunpack.c.l.b16 %v694
        %v763 = vunpack.c.h.b16 %v694
        %v764 = vunpack.c.l.b16 %v695
        %v765 = vunpack.c.h.b16 %v695
        %v766 = vunpack.c.l.b16 %v696
        %v767 = vunpack.c.h.b16 %v696
        %v768 = vunpack.c.l.b16 %v697
        %v769 = vunpack.c.h.b16 %v697
        %v770 = vunpack.c.l.b16 %v698
        %v771 = vunpack.c.h.b16 %v698
        %v772 = vunpack.c.l.b16 %v699
        %v773 = vunpack.c.h.b16 %v699
        %v774 = vunpack.c.l.b16 %v700
        %v775 = vunpack.c.h.b16 %v700
        %v776 = vunpack.c.l.b16 %v701
        %v777 = vunpack.c.h.b16 %v701
        %v778 = vunpack.c.l.b16 %v702
        %v779 = vunpack.c.h.b16 %v702
        %v780 = vunpack.c.l.b16 %v703
        %v781 = vunpack.c.h.b16 %v703
        %v782 = vunpack.c.l.b16 %v704
        %v783 = vunpack.c.h.b16 %v704
        %v784 = vunpack.c.l.b16 %v705
        %v785 = vunpack.c.h.b16 %v705
        %v786 = vunpack.c.l.b16 %v706
        %v787 = vunpack.c.h.b16 %v706
        %v788 = vunpack.c.l.b16 %v707
        %v789 = vunpack.c.h.b16 %v707
        %v790 = vunpack.c.l.b16 %v708
        %v791 = vunpack.c.h.b16 %v708
        %v792 = vunpack.c.l.b16 %v709
        %v793 = vunpack.c.h.b16 %v709
        %v794 = vunpack.c.l.b16 %v710
        %v795 = vunpack.c.h.b16 %v710
        %v796 = vunpack.c.l.b16 %v711
        %v797 = vunpack.c.h.b16 %v711
        %v798 = vunpack.c.l.b16 %v712
        %v799 = vunpack.c.h.b16 %v712
        %v800 = vunpack.c.l.b16 %v713
        %v801 = vunpack.c.h.b16 %v713
        %v802 = vunpack.c.l.b16 %v714
        %v803 = vunpack.c.h.b16 %v714
        %v804 = vunpack.c.l.b16 %v715
        %v805 = vunpack.c.h.b16 %v715
        %v806 = vunpack.c.l.b16 %v716
        %v807 = vunpack.c.h.b16 %v716
        %v808 = vunpack.c.l.b16 %v717
        %v809 = vunpack.c.h.b16 %v717
        %v810 = vunpack.c.l.b16 %v718
        %v811 = vunpack.c.h.b16 %v718
        %v812 = vunpack.c.l.b16 %v719
        %v813 = vunpack.c.h.b16 %v719
        %v814 = vunpack.c.l.b16 %v720
        %v815 = vunpack.c.h.b16 %v720
        %v816 = vunpack.c.l.b16 %v721
        %v817 = vunpack.c.h.b16 %v721
        %v818 = vpack.c.b16 %v758, %v754
        %v819 = vpack.c.b16 %v759, %v755
        %v820 = vpack.c.b16 %v760, %v756
        %v821 = vpack.c.b16 %v761, %v757
        %v822 = vpack.c.b16 %v766, %v762
        %v823 = vpack.c.b16 %v767, %v763
        %v824 = vpack.c.b16 %v768, %v764
        %v825 = vpack.c.b16 %v769, %v765
        %v826 = vpack.c.b16 %v774, %v770
        %v827 = vpack.c.b16 %v775, %v771
        %v828 = vpack.c.b16 %v776, %v772
        %v829 = vpack.c.b16 %v777, %v773
        %v830 = vpack.c.b16 %v782, %v778
        %v831 = vpack.c.b16 %v783, %v779
        %v832 = vpack.c.b16 %v784, %v780
        %v833 = vpack.c.b16 %v785, %v781
        %v834 = vpack.c.b16 %v790, %v786
        %v835 = vpack.c.b16 %v791, %v787
        %v836 = vpack.c.b16 %v792, %v788
        %v837 = vpack.c.b16 %v793, %v789
        %v838 = vpack.c.b16 %v798, %v794
        %v839 = vpack.c.b16 %v799, %v795
        %v840 = vpack.c.b16 %v800, %v796
        %v841 = vpack.c.b16 %v801, %v797
        %v842 = vpack.c.b16 %v806, %v802
        %v843 = vpack.c.b16 %v807, %v803
        %v844 = vpack.c.b16 %v808, %v804
        %v845 = vpack.c.b16 %v809, %v805
        %v846 = vpack.c.b16 %v814, %v810
        %v847 = vpack.c.b16 %v815, %v811
        %v848 = vpack.c.b16 %v816, %v812
        %v849 = vpack.c.b16 %v817, %v813
        %882 = vmatprep.subr.bf16.mxu0 %v819
        %883 = vmatpush1.bf16.msra.mxu0 %v818
        %884 = vmatprep.subr.bf16.mxu0 %v823
        %885 = vmatpush1.bf16.msra.mxu0 %v822
        %886 = vmatprep.subr.bf16.mxu0 %v827
        %887 = vmatpush1.bf16.msra.mxu0 %v826
        %888 = vmatprep.subr.bf16.mxu0 %v831
        %889 = vmatpush1.bf16.msra.mxu0 %v830
        %890 = vmatprep.subr.bf16.mxu0 %v835
        %891 = vmatpush1.bf16.msra.mxu0 %v834
        %892 = vmatprep.subr.bf16.mxu0 %v839
        %893 = vmatpush1.bf16.msra.mxu0 %v838
        %894 = vmatprep.subr.bf16.mxu0 %v843
        %895 = vmatpush1.bf16.msra.mxu0 %v842
        %896 = vmatprep.subr.bf16.mxu0 %v847
        %897 = vmatpush1.bf16.msra.mxu0 %v846
        %898 = vmatprep.subr.bf16.mxu0 0
        %899 = vmatpush1.bf16.msra.mxu0 0
        %900 = vmatprep.subr.bf16.mxu0 0
        %901 = vmatpush1.bf16.msra.mxu0 0
        %902 = vmatprep.subr.bf16.mxu0 0
        %903 = vmatpush1.bf16.msra.mxu0 0
        %904 = vmatprep.subr.bf16.mxu0 0
        %905 = vmatpush1.bf16.msra.mxu0 0
        %906 = vmatprep.subr.bf16.mxu0 0
        %907 = vmatpush1.bf16.msra.mxu0 0
        %908 = vmatprep.subr.bf16.mxu0 0
        %909 = vmatpush1.bf16.msra.mxu0 0
        %910 = vmatprep.subr.bf16.mxu0 0
        %911 = vmatpush1.bf16.msra.mxu0 0
        %912 = vmatprep.subr.bf16.mxu0 0
        %913 = vmatpush1.bf16.msra.mxu0 0
        %914 = vmatprep.mubr.bf16.mxu0 0
        %915 = vmatmul.mubr.bf16.gmra.mrb[0].mxu0 %v689
        %v916 = vpop.f32.mrb[0].mxu0
        %v917 = vadd.f32 0.0, %v916
        %v918 = vpop.f32.mrb[0].mxu0
        %v919 = vadd.f32 0.0, %v918
        %v920 = vpop.f32.mrb[0].mxu0
        %v921 = vpop.f32.mrb[0].mxu0
        %922 = vdwg.mxu0
        %923 = vmatprep.subr.bf16.mxu0 %v821
        %924 = vmatpush1.bf16.msra.mxu0 %v820
        %925 = vmatprep.subr.bf16.mxu0 %v825
        %926 = vmatpush1.bf16.msra.mxu0 %v824
        %927 = vmatprep.subr.bf16.mxu0 %v829
        %928 = vmatpush1.bf16.msra.mxu0 %v828
        %929 = vmatprep.subr.bf16.mxu0 %v833
        %930 = vmatpush1.bf16.msra.mxu0 %v832
        %931 = vmatprep.subr.bf16.mxu0 %v837
        %932 = vmatpush1.bf16.msra.mxu0 %v836
        %933 = vmatprep.subr.bf16.mxu0 %v841
        %934 = vmatpush1.bf16.msra.mxu0 %v840
        %935 = vmatprep.subr.bf16.mxu0 %v845
        %936 = vmatpush1.bf16.msra.mxu0 %v844
        %937 = vmatprep.subr.bf16.mxu0 %v849
        %938 = vmatpush1.bf16.msra.mxu0 %v848
        %939 = vmatprep.subr.bf16.mxu0 0
        %940 = vmatpush1.bf16.msra.mxu0 0
        %941 = vmatprep.subr.bf16.mxu0 0
        %942 = vmatpush1.bf16.msra.mxu0 0
        %943 = vmatprep.subr.bf16.mxu0 0
        %944 = vmatpush1.bf16.msra.mxu0 0
        %945 = vmatprep.subr.bf16.mxu0 0
        %946 = vmatpush1.bf16.msra.mxu0 0
        %947 = vmatprep.subr.bf16.mxu0 0
        %948 = vmatpush1.bf16.msra.mxu0 0
        %949 = vmatprep.subr.bf16.mxu0 0
        %950 = vmatpush1.bf16.msra.mxu0 0
        %951 = vmatprep.subr.bf16.mxu0 0
        %952 = vmatpush1.bf16.msra.mxu0 0
        %953 = vmatprep.subr.bf16.mxu0 0
        %954 = vmatpush1.bf16.msra.mxu0 0
        %955 = vmatprep.mubr.bf16.mxu0 0
        %956 = vmatmul.mubr.bf16.gmra.mrb[0].mxu0 %v689
        %v957 = vpop.f32.mrb[0].mxu0
        %v958 = vadd.f32 0.0, %v957
        %v959 = vpop.f32.mrb[0].mxu0
        %v960 = vadd.f32 0.0, %v959
        %v961 = vpop.f32.mrb[0].mxu0
        %v962 = vpop.f32.mrb[0].mxu0
        %963 = vdwg.mxu0
        %v964 = vadd.f32 %v685, %v917
        %v965 = vadd.f32 %v686, %v919
        %v966 = vadd.f32 %v687, %v958
        %v967 = vadd.f32 %v688, %v960
        %v968 = vmul.f32 %v964, 0.5
        %v969 = vtanh.pop %v968
        %v970 = vmul.f32 %v969, 0.5
        %v971 = vadd.f32 %v970, 0.5
        %v972 = vmul.f32 %v965, 0.5
        %v973 = vtanh.pop %v972
        %v974 = vmul.f32 %v973, 0.5
        %v975 = vadd.f32 %v974, 0.5
        %v976 = vtanh.pop %v966
        %v977 = vmul.f32 %v967, 0.5
        %v978 = vtanh.pop %v977
        %v979 = vmul.f32 %v978, 0.5
        %v980 = vadd.f32 %v979, 0.5
        %v981 = vmul.f32 %v975, %v684
        %v982 = vmul.f32 %v971, %v976
        %v983 = vadd.f32 %v981, %v982
        %v984 = vtanh.pop %v983
        %v985 = vmul.f32 %v980, %v984
        %s986 = smul.u32 %s31, 4
        %p987 = scmp.lt.s32.totalorder %s986, 10
        %s988 = scalar_select %p987, 1, 0
        %v989 = vstv %s988
        %vm990 = vcmp.eq.s32.totalorder %v989, 1
        %v991 = vsel %vm990, %v985, %v683
        %v992 = vsel %vm990, %v983, %v684
        %v993 = vpack.c.bf16 %v991, %v991
        %994 = vst [vmem:[%s317] sm:$0xf] %v993
        %s995 = scalar_lea.vmem [#allocation4], 32
        %v996 = vld [vmem:[%s995] sm:$0xff]
        %v997 = vld [vmem:[%s995 + $0x8] sm:$0xff]
        %v998 = vld [vmem:[%s995 + $0x10] sm:$0xff]
        %v999 = vld [vmem:[%s995 + $0x18] sm:$0xff]
        %v1000 = vld [vmem:[#allocation10] sm:$0xff]
        %v1001 = vld [vmem:[#allocation10 + $0x8] sm:$0xff]
        %v1002 = vld [vmem:[#allocation10 + $0x10] sm:$0xff]
        %v1003 = vld [vmem:[#allocation10 + $0x18] sm:$0xff]
        %v1004 = vld [vmem:[#allocation10 + $0x20] sm:$0xff]
        %v1005 = vld [vmem:[#allocation10 + $0x28] sm:$0xff]
        %v1006 = vld [vmem:[#allocation10 + $0x30] sm:$0xff]
        %v1007 = vld [vmem:[#allocation10 + $0x38] sm:$0xff]
        %v1008 = vld [vmem:[#allocation10 + $0x40] sm:$0xff]
        %v1009 = vld [vmem:[#allocation10 + $0x48] sm:$0xff]
        %v1010 = vld [vmem:[#allocation10 + $0x50] sm:$0xff]
        %v1011 = vld [vmem:[#allocation10 + $0x58] sm:$0xff]
        %v1012 = vld [vmem:[#allocation10 + $0x60] sm:$0xff]
        %v1013 = vld [vmem:[#allocation10 + $0x68] sm:$0xff]
        %v1014 = vld [vmem:[#allocation10 + $0x70] sm:$0xff]
        %v1015 = vld [vmem:[#allocation10 + $0x78] sm:$0xff]
        %v1016 = vld [vmem:[#allocation10 + $0x80] sm:$0xff]
        %v1017 = vld [vmem:[#allocation10 + $0x88] sm:$0xff]
        %v1018 = vld [vmem:[#allocation10 + $0x90] sm:$0xff]
        %v1019 = vld [vmem:[#allocation10 + $0x98] sm:$0xff]
        %v1020 = vld [vmem:[#allocation10 + $0xa0] sm:$0xff]
        %v1021 = vld [vmem:[#allocation10 + $0xa8] sm:$0xff]
        %v1022 = vld [vmem:[#allocation10 + $0xb0] sm:$0xff]
        %v1023 = vld [vmem:[#allocation10 + $0xb8] sm:$0xff]
        %v1024 = vld [vmem:[#allocation10 + $0xc0] sm:$0xff]
        %v1025 = vld [vmem:[#allocation10 + $0xc8] sm:$0xff]
        %v1026 = vld [vmem:[#allocation10 + $0xd0] sm:$0xff]
        %v1027 = vld [vmem:[#allocation10 + $0xd8] sm:$0xff]
        %v1028 = vld [vmem:[#allocation10 + $0xe0] sm:$0xff]
        %v1029 = vld [vmem:[#allocation10 + $0xe8] sm:$0xff]
        %v1030 = vld [vmem:[#allocation10 + $0xf0] sm:$0xff]
        %v1031 = vld [vmem:[#allocation10 + $0xf8] sm:$0xff]
        %v1064 = vunpack.c.l.b16 %v1000
        %v1065 = vunpack.c.h.b16 %v1000
        %v1066 = vunpack.c.l.b16 %v1001
        %v1067 = vunpack.c.h.b16 %v1001
        %v1068 = vunpack.c.l.b16 %v1002
        %v1069 = vunpack.c.h.b16 %v1002
        %v1070 = vunpack.c.l.b16 %v1003
        %v1071 = vunpack.c.h.b16 %v1003
        %v1072 = vunpack.c.l.b16 %v1004
        %v1073 = vunpack.c.h.b16 %v1004
        %v1074 = vunpack.c.l.b16 %v1005
        %v1075 = vunpack.c.h.b16 %v1005
        %v1076 = vunpack.c.l.b16 %v1006
        %v1077 = vunpack.c.h.b16 %v1006
        %v1078 = vunpack.c.l.b16 %v1007
        %v1079 = vunpack.c.h.b16 %v1007
        %v1080 = vunpack.c.l.b16 %v1008
        %v1081 = vunpack.c.h.b16 %v1008
        %v1082 = vunpack.c.l.b16 %v1009
        %v1083 = vunpack.c.h.b16 %v1009
        %v1084 = vunpack.c.l.b16 %v1010
        %v1085 = vunpack.c.h.b16 %v1010
        %v1086 = vunpack.c.l.b16 %v1011
        %v1087 = vunpack.c.h.b16 %v1011
        %v1088 = vunpack.c.l.b16 %v1012
        %v1089 = vunpack.c.h.b16 %v1012
        %v1090 = vunpack.c.l.b16 %v1013
        %v1091 = vunpack.c.h.b16 %v1013
        %v1092 = vunpack.c.l.b16 %v1014
        %v1093 = vunpack.c.h.b16 %v1014
        %v1094 = vunpack.c.l.b16 %v1015
        %v1095 = vunpack.c.h.b16 %v1015
        %v1096 = vunpack.c.l.b16 %v1016
        %v1097 = vunpack.c.h.b16 %v1016
        %v1098 = vunpack.c.l.b16 %v1017
        %v1099 = vunpack.c.h.b16 %v1017
        %v1100 = vunpack.c.l.b16 %v1018
        %v1101 = vunpack.c.h.b16 %v1018
        %v1102 = vunpack.c.l.b16 %v1019
        %v1103 = vunpack.c.h.b16 %v1019
        %v1104 = vunpack.c.l.b16 %v1020
        %v1105 = vunpack.c.h.b16 %v1020
        %v1106 = vunpack.c.l.b16 %v1021
        %v1107 = vunpack.c.h.b16 %v1021
        %v1108 = vunpack.c.l.b16 %v1022
        %v1109 = vunpack.c.h.b16 %v1022
        %v1110 = vunpack.c.l.b16 %v1023
        %v1111 = vunpack.c.h.b16 %v1023
        %v1112 = vunpack.c.l.b16 %v1024
        %v1113 = vunpack.c.h.b16 %v1024
        %v1114 = vunpack.c.l.b16 %v1025
        %v1115 = vunpack.c.h.b16 %v1025
        %v1116 = vunpack.c.l.b16 %v1026
        %v1117 = vunpack.c.h.b16 %v1026
        %v1118 = vunpack.c.l.b16 %v1027
        %v1119 = vunpack.c.h.b16 %v1027
        %v1120 = vunpack.c.l.b16 %v1028
        %v1121 = vunpack.c.h.b16 %v1028
        %v1122 = vunpack.c.l.b16 %v1029
        %v1123 = vunpack.c.h.b16 %v1029
        %v1124 = vunpack.c.l.b16 %v1030
        %v1125 = vunpack.c.h.b16 %v1030
        %v1126 = vunpack.c.l.b16 %v1031
        %v1127 = vunpack.c.h.b16 %v1031
        %v1128 = vpack.c.b16 %v1068, %v1064
        %v1129 = vpack.c.b16 %v1069, %v1065
        %v1130 = vpack.c.b16 %v1070, %v1066
        %v1131 = vpack.c.b16 %v1071, %v1067
        %v1132 = vpack.c.b16 %v1076, %v1072
        %v1133 = vpack.c.b16 %v1077, %v1073
        %v1134 = vpack.c.b16 %v1078, %v1074
        %v1135 = vpack.c.b16 %v1079, %v1075
        %v1136 = vpack.c.b16 %v1084, %v1080
        %v1137 = vpack.c.b16 %v1085, %v1081
        %v1138 = vpack.c.b16 %v1086, %v1082
        %v1139 = vpack.c.b16 %v1087, %v1083
        %v1140 = vpack.c.b16 %v1092, %v1088
        %v1141 = vpack.c.b16 %v1093, %v1089
        %v1142 = vpack.c.b16 %v1094, %v1090
        %v1143 = vpack.c.b16 %v1095, %v1091
        %v1144 = vpack.c.b16 %v1100, %v1096
        %v1145 = vpack.c.b16 %v1101, %v1097
        %v1146 = vpack.c.b16 %v1102, %v1098
        %v1147 = vpack.c.b16 %v1103, %v1099
        %v1148 = vpack.c.b16 %v1108, %v1104
        %v1149 = vpack.c.b16 %v1109, %v1105
        %v1150 = vpack.c.b16 %v1110, %v1106
        %v1151 = vpack.c.b16 %v1111, %v1107
        %v1152 = vpack.c.b16 %v1116, %v1112
        %v1153 = vpack.c.b16 %v1117, %v1113
        %v1154 = vpack.c.b16 %v1118, %v1114
        %v1155 = vpack.c.b16 %v1119, %v1115
        %v1156 = vpack.c.b16 %v1124, %v1120
        %v1157 = vpack.c.b16 %v1125, %v1121
        %v1158 = vpack.c.b16 %v1126, %v1122
        %v1159 = vpack.c.b16 %v1127, %v1123
        %1192 = vmatprep.subr.bf16.mxu0 %v1129
        %1193 = vmatpush1.bf16.msra.mxu0 %v1128
        %1194 = vmatprep.subr.bf16.mxu0 %v1133
        %1195 = vmatpush1.bf16.msra.mxu0 %v1132
        %1196 = vmatprep.subr.bf16.mxu0 %v1137
        %1197 = vmatpush1.bf16.msra.mxu0 %v1136
        %1198 = vmatprep.subr.bf16.mxu0 %v1141
        %1199 = vmatpush1.bf16.msra.mxu0 %v1140
        %1200 = vmatprep.subr.bf16.mxu0 %v1145
        %1201 = vmatpush1.bf16.msra.mxu0 %v1144
        %1202 = vmatprep.subr.bf16.mxu0 %v1149
        %1203 = vmatpush1.bf16.msra.mxu0 %v1148
        %1204 = vmatprep.subr.bf16.mxu0 %v1153
        %1205 = vmatpush1.bf16.msra.mxu0 %v1152
        %1206 = vmatprep.subr.bf16.mxu0 %v1157
        %1207 = vmatpush1.bf16.msra.mxu0 %v1156
        %1208 = vmatprep.subr.bf16.mxu0 0
        %1209 = vmatpush1.bf16.msra.mxu0 0
        %1210 = vmatprep.subr.bf16.mxu0 0
        %1211 = vmatpush1.bf16.msra.mxu0 0
        %1212 = vmatprep.subr.bf16.mxu0 0
        %1213 = vmatpush1.bf16.msra.mxu0 0
        %1214 = vmatprep.subr.bf16.mxu0 0
        %1215 = vmatpush1.bf16.msra.mxu0 0
        %1216 = vmatprep.subr.bf16.mxu0 0
        %1217 = vmatpush1.bf16.msra.mxu0 0
        %1218 = vmatprep.subr.bf16.mxu0 0
        %1219 = vmatpush1.bf16.msra.mxu0 0
        %1220 = vmatprep.subr.bf16.mxu0 0
        %1221 = vmatpush1.bf16.msra.mxu0 0
        %1222 = vmatprep.subr.bf16.mxu0 0
        %1223 = vmatpush1.bf16.msra.mxu0 0
        %1224 = vmatprep.mubr.bf16.mxu0 0
        %1225 = vmatmul.mubr.bf16.gmra.mrb[0].mxu0 %v993
        %v1226 = vpop.f32.mrb[0].mxu0
        %v1227 = vadd.f32 0.0, %v1226
        %v1228 = vpop.f32.mrb[0].mxu0
        %v1229 = vadd.f32 0.0, %v1228
        %v1230 = vpop.f32.mrb[0].mxu0
        %v1231 = vpop.f32.mrb[0].mxu0
        %1232 = vdwg.mxu0
        %1233 = vmatprep.subr.bf16.mxu0 %v1131
        %1234 = vmatpush1.bf16.msra.mxu0 %v1130
        %1235 = vmatprep.subr.bf16.mxu0 %v1135
        %1236 = vmatpush1.bf16.msra.mxu0 %v1134
        %1237 = vmatprep.subr.bf16.mxu0 %v1139
        %1238 = vmatpush1.bf16.msra.mxu0 %v1138
        %1239 = vmatprep.subr.bf16.mxu0 %v1143
        %1240 = vmatpush1.bf16.msra.mxu0 %v1142
        %1241 = vmatprep.subr.bf16.mxu0 %v1147
        %1242 = vmatpush1.bf16.msra.mxu0 %v1146
        %1243 = vmatprep.subr.bf16.mxu0 %v1151
        %1244 = vmatpush1.bf16.msra.mxu0 %v1150
        %1245 = vmatprep.subr.bf16.mxu0 %v1155
        %1246 = vmatpush1.bf16.msra.mxu0 %v1154
        %1247 = vmatprep.subr.bf16.mxu0 %v1159
        %1248 = vmatpush1.bf16.msra.mxu0 %v1158
        %1249 = vmatprep.subr.bf16.mxu0 0
        %1250 = vmatpush1.bf16.msra.mxu0 0
        %1251 = vmatprep.subr.bf16.mxu0 0
        %1252 = vmatpush1.bf16.msra.mxu0 0
        %1253 = vmatprep.subr.bf16.mxu0 0
        %1254 = vmatpush1.bf16.msra.mxu0 0
        %1255 = vmatprep.subr.bf16.mxu0 0
        %1256 = vmatpush1.bf16.msra.mxu0 0
        %1257 = vmatprep.subr.bf16.mxu0 0
        %1258 = vmatpush1.bf16.msra.mxu0 0
        %1259 = vmatprep.subr.bf16.mxu0 0
        %1260 = vmatpush1.bf16.msra.mxu0 0
        %1261 = vmatprep.subr.bf16.mxu0 0
        %1262 = vmatpush1.bf16.msra.mxu0 0
        %1263 = vmatprep.subr.bf16.mxu0 0
        %1264 = vmatpush1.bf16.msra.mxu0 0
        %1265 = vmatprep.mubr.bf16.mxu0 0
        %1266 = vmatmul.mubr.bf16.gmra.mrb[0].mxu0 %v993
        %v1267 = vpop.f32.mrb[0].mxu0
        %v1268 = vadd.f32 0.0, %v1267
        %v1269 = vpop.f32.mrb[0].mxu0
        %v1270 = vadd.f32 0.0, %v1269
        %v1271 = vpop.f32.mrb[0].mxu0
        %v1272 = vpop.f32.mrb[0].mxu0
        %1273 = vdwg.mxu0
        %v1274 = vadd.f32 %v996, %v1227
        %v1275 = vadd.f32 %v997, %v1229
        %v1276 = vadd.f32 %v998, %v1268
        %v1277 = vadd.f32 %v999, %v1270
        %v1278 = vmul.f32 %v1274, 0.5
        %v1279 = vtanh.pop %v1278
        %v1280 = vmul.f32 %v1279, 0.5
        %v1281 = vadd.f32 %v1280, 0.5
        %v1282 = vmul.f32 %v1275, 0.5
        %v1283 = vtanh.pop %v1282
        %v1284 = vmul.f32 %v1283, 0.5
        %v1285 = vadd.f32 %v1284, 0.5
        %v1286 = vtanh.pop %v1276
        %v1287 = vmul.f32 %v1277, 0.5
        %v1288 = vtanh.pop %v1287
        %v1289 = vmul.f32 %v1288, 0.5
        %v1290 = vadd.f32 %v1289, 0.5
        %v1291 = vmul.f32 %v1285, %v992
        %v1292 = vmul.f32 %v1281, %v1286
        %v1293 = vadd.f32 %v1291, %v1292
        %v1294 = vtanh.pop %v1293
        %v1295 = vmul.f32 %v1290, %v1294
        %s1296 = sadd.s32 %s986, 1
        %p1297 = scmp.lt.s32.totalorder %s1296, 10
        %s1298 = scalar_select %p1297, 1, 0
        %v1299 = vstv %s1298
        %vm1300 = vcmp.eq.s32.totalorder %v1299, 1
        %v1301 = vsel %vm1300, %v1295, %v991
        %v1302 = vsel %vm1300, %v1293, %v992
        %v1303 = vpack.c.bf16 %v1301, %v1301
        %s1304 = scalar_lea.vmem %s317, 4 [#allocation11]
        %1305 = vst [vmem:[%s1304] sm:$0xf] %v1303
        %s1306 = scalar_lea.vmem [#allocation4], 64
        %v1307 = vld [vmem:[%s1306] sm:$0xff]
        %v1308 = vld [vmem:[%s1306 + $0x8] sm:$0xff]
        %v1309 = vld [vmem:[%s1306 + $0x10] sm:$0xff]
        %v1310 = vld [vmem:[%s1306 + $0x18] sm:$0xff]
        %v1311 = vld [vmem:[#allocation10] sm:$0xff]
        %v1312 = vld [vmem:[#allocation10 + $0x8] sm:$0xff]
        %v1313 = vld [vmem:[#allocation10 + $0x10] sm:$0xff]
        %v1314 = vld [vmem:[#allocation10 + $0x18] sm:$0xff]
        %v1315 = vld [vmem:[#allocation10 + $0x20] sm:$0xff]
        %v1316 = vld [vmem:[#allocation10 + $0x28] sm:$0xff]
        %v1317 = vld [vmem:[#allocation10 + $0x30] sm:$0xff]
        %v1318 = vld [vmem:[#allocation10 + $0x38] sm:$0xff]
        %v1319 = vld [vmem:[#allocation10 + $0x40] sm:$0xff]
        %v1320 = vld [vmem:[#allocation10 + $0x48] sm:$0xff]
        %v1321 = vld [vmem:[#allocation10 + $0x50] sm:$0xff]
        %v1322 = vld [vmem:[#allocation10 + $0x58] sm:$0xff]
        %v1323 = vld [vmem:[#allocation10 + $0x60] sm:$0xff]
        %v1324 = vld [vmem:[#allocation10 + $0x68] sm:$0xff]
        %v1325 = vld [vmem:[#allocation10 + $0x70] sm:$0xff]
        %v1326 = vld [vmem:[#allocation10 + $0x78] sm:$0xff]
        %v1327 = vld [vmem:[#allocation10 + $0x80] sm:$0xff]
        %v1328 = vld [vmem:[#allocation10 + $0x88] sm:$0xff]
        %v1329 = vld [vmem:[#allocation10 + $0x90] sm:$0xff]
        %v1330 = vld [vmem:[#allocation10 + $0x98] sm:$0xff]
        %v1331 = vld [vmem:[#allocation10 + $0xa0] sm:$0xff]
        %v1332 = vld [vmem:[#allocation10 + $0xa8] sm:$0xff]
        %v1333 = vld [vmem:[#allocation10 + $0xb0] sm:$0xff]
        %v1334 = vld [vmem:[#allocation10 + $0xb8] sm:$0xff]
        %v1335 = vld [vmem:[#allocation10 + $0xc0] sm:$0xff]
        %v1336 = vld [vmem:[#allocation10 + $0xc8] sm:$0xff]
        %v1337 = vld [vmem:[#allocation10 + $0xd0] sm:$0xff]
        %v1338 = vld [vmem:[#allocation10 + $0xd8] sm:$0xff]
        %v1339 = vld [vmem:[#allocation10 + $0xe0] sm:$0xff]
        %v1340 = vld [vmem:[#allocation10 + $0xe8] sm:$0xff]
        %v1341 = vld [vmem:[#allocation10 + $0xf0] sm:$0xff]
        %v1342 = vld [vmem:[#allocation10 + $0xf8] sm:$0xff]
        %v1375 = vunpack.c.l.b16 %v1311
        %v1376 = vunpack.c.h.b16 %v1311
        %v1377 = vunpack.c.l.b16 %v1312
        %v1378 = vunpack.c.h.b16 %v1312
        %v1379 = vunpack.c.l.b16 %v1313
        %v1380 = vunpack.c.h.b16 %v1313
        %v1381 = vunpack.c.l.b16 %v1314
        %v1382 = vunpack.c.h.b16 %v1314
        %v1383 = vunpack.c.l.b16 %v1315
        %v1384 = vunpack.c.h.b16 %v1315
        %v1385 = vunpack.c.l.b16 %v1316
        %v1386 = vunpack.c.h.b16 %v1316
        %v1387 = vunpack.c.l.b16 %v1317
        %v1388 = vunpack.c.h.b16 %v1317
        %v1389 = vunpack.c.l.b16 %v1318
        %v1390 = vunpack.c.h.b16 %v1318
        %v1391 = vunpack.c.l.b16 %v1319
        %v1392 = vunpack.c.h.b16 %v1319
        %v1393 = vunpack.c.l.b16 %v1320
        %v1394 = vunpack.c.h.b16 %v1320
        %v1395 = vunpack.c.l.b16 %v1321
        %v1396 = vunpack.c.h.b16 %v1321
        %v1397 = vunpack.c.l.b16 %v1322
        %v1398 = vunpack.c.h.b16 %v1322
        %v1399 = vunpack.c.l.b16 %v1323
        %v1400 = vunpack.c.h.b16 %v1323
        %v1401 = vunpack.c.l.b16 %v1324
        %v1402 = vunpack.c.h.b16 %v1324
        %v1403 = vunpack.c.l.b16 %v1325
        %v1404 = vunpack.c.h.b16 %v1325
        %v1405 = vunpack.c.l.b16 %v1326
        %v1406 = vunpack.c.h.b16 %v1326
        %v1407 = vunpack.c.l.b16 %v1327
        %v1408 = vunpack.c.h.b16 %v1327
        %v1409 = vunpack.c.l.b16 %v1328
        %v1410 = vunpack.c.h.b16 %v1328
        %v1411 = vunpack.c.l.b16 %v1329
        %v1412 = vunpack.c.h.b16 %v1329
        %v1413 = vunpack.c.l.b16 %v1330
        %v1414 = vunpack.c.h.b16 %v1330
        %v1415 = vunpack.c.l.b16 %v1331
        %v1416 = vunpack.c.h.b16 %v1331
        %v1417 = vunpack.c.l.b16 %v1332
        %v1418 = vunpack.c.h.b16 %v1332
        %v1419 = vunpack.c.l.b16 %v1333
        %v1420 = vunpack.c.h.b16 %v1333
        %v1421 = vunpack.c.l.b16 %v1334
        %v1422 = vunpack.c.h.b16 %v1334
        %v1423 = vunpack.c.l.b16 %v1335
        %v1424 = vunpack.c.h.b16 %v1335
        %v1425 = vunpack.c.l.b16 %v1336
        %v1426 = vunpack.c.h.b16 %v1336
        %v1427 = vunpack.c.l.b16 %v1337
        %v1428 = vunpack.c.h.b16 %v1337
        %v1429 = vunpack.c.l.b16 %v1338
        %v1430 = vunpack.c.h.b16 %v1338
        %v1431 = vunpack.c.l.b16 %v1339
        %v1432 = vunpack.c.h.b16 %v1339
        %v1433 = vunpack.c.l.b16 %v1340
        %v1434 = vunpack.c.h.b16 %v1340
        %v1435 = vunpack.c.l.b16 %v1341
        %v1436 = vunpack.c.h.b16 %v1341
        %v1437 = vunpack.c.l.b16 %v1342
        %v1438 = vunpack.c.h.b16 %v1342
        %v1439 = vpack.c.b16 %v1379, %v1375
        %v1440 = vpack.c.b16 %v1380, %v1376
        %v1441 = vpack.c.b16 %v1381, %v1377
        %v1442 = vpack.c.b16 %v1382, %v1378
        %v1443 = vpack.c.b16 %v1387, %v1383
        %v1444 = vpack.c.b16 %v1388, %v1384
        %v1445 = vpack.c.b16 %v1389, %v1385
        %v1446 = vpack.c.b16 %v1390, %v1386
        %v1447 = vpack.c.b16 %v1395, %v1391
        %v1448 = vpack.c.b16 %v1396, %v1392
        %v1449 = vpack.c.b16 %v1397, %v1393
        %v1450 = vpack.c.b16 %v1398, %v1394
        %v1451 = vpack.c.b16 %v1403, %v1399
        %v1452 = vpack.c.b16 %v1404, %v1400
        %v1453 = vpack.c.b16 %v1405, %v1401
        %v1454 = vpack.c.b16 %v1406, %v1402
        %v1455 = vpack.c.b16 %v1411, %v1407
        %v1456 = vpack.c.b16 %v1412, %v1408
        %v1457 = vpack.c.b16 %v1413, %v1409
        %v1458 = vpack.c.b16 %v1414, %v1410
        %v1459 = vpack.c.b16 %v1419, %v1415
        %v1460 = vpack.c.b16 %v1420, %v1416
        %v1461 = vpack.c.b16 %v1421, %v1417
        %v1462 = vpack.c.b16 %v1422, %v1418
        %v1463 = vpack.c.b16 %v1427, %v1423
        %v1464 = vpack.c.b16 %v1428, %v1424
        %v1465 = vpack.c.b16 %v1429, %v1425
        %v1466 = vpack.c.b16 %v1430, %v1426
        %v1467 = vpack.c.b16 %v1435, %v1431
        %v1468 = vpack.c.b16 %v1436, %v1432
        %v1469 = vpack.c.b16 %v1437, %v1433
        %v1470 = vpack.c.b16 %v1438, %v1434
        %1503 = vmatprep.subr.bf16.mxu0 %v1440
        %1504 = vmatpush1.bf16.msra.mxu0 %v1439
        %1505 = vmatprep.subr.bf16.mxu0 %v1444
        %1506 = vmatpush1.bf16.msra.mxu0 %v1443
        %1507 = vmatprep.subr.bf16.mxu0 %v1448
        %1508 = vmatpush1.bf16.msra.mxu0 %v1447
        %1509 = vmatprep.subr.bf16.mxu0 %v1452
        %1510 = vmatpush1.bf16.msra.mxu0 %v1451
        %1511 = vmatprep.subr.bf16.mxu0 %v1456
        %1512 = vmatpush1.bf16.msra.mxu0 %v1455
        %1513 = vmatprep.subr.bf16.mxu0 %v1460
        %1514 = vmatpush1.bf16.msra.mxu0 %v1459
        %1515 = vmatprep.subr.bf16.mxu0 %v1464
        %1516 = vmatpush1.bf16.msra.mxu0 %v1463
        %1517 = vmatprep.subr.bf16.mxu0 %v1468
        %1518 = vmatpush1.bf16.msra.mxu0 %v1467
        %1519 = vmatprep.subr.bf16.mxu0 0
        %1520 = vmatpush1.bf16.msra.mxu0 0
        %1521 = vmatprep.subr.bf16.mxu0 0
        %1522 = vmatpush1.bf16.msra.mxu0 0
        %1523 = vmatprep.subr.bf16.mxu0 0
        %1524 = vmatpush1.bf16.msra.mxu0 0
        %1525 = vmatprep.subr.bf16.mxu0 0
        %1526 = vmatpush1.bf16.msra.mxu0 0
        %1527 = vmatprep.subr.bf16.mxu0 0
        %1528 = vmatpush1.bf16.msra.mxu0 0
        %1529 = vmatprep.subr.bf16.mxu0 0
        %1530 = vmatpush1.bf16.msra.mxu0 0
        %1531 = vmatprep.subr.bf16.mxu0 0
        %1532 = vmatpush1.bf16.msra.mxu0 0
        %1533 = vmatprep.subr.bf16.mxu0 0
        %1534 = vmatpush1.bf16.msra.mxu0 0
        %1535 = vmatprep.mubr.bf16.mxu0 0
        %1536 = vmatmul.mubr.bf16.gmra.mrb[0].mxu0 %v1303
        %v1537 = vpop.f32.mrb[0].mxu0
        %v1538 = vadd.f32 0.0, %v1537
        %v1539 = vpop.f32.mrb[0].mxu0
        %v1540 = vadd.f32 0.0, %v1539
        %v1541 = vpop.f32.mrb[0].mxu0
        %v1542 = vpop.f32.mrb[0].mxu0
        %1543 = vdwg.mxu0
        %1544 = vmatprep.subr.bf16.mxu0 %v1442
        %1545 = vmatpush1.bf16.msra.mxu0 %v1441
        %1546 = vmatprep.subr.bf16.mxu0 %v1446
        %1547 = vmatpush1.bf16.msra.mxu0 %v1445
        %1548 = vmatprep.subr.bf16.mxu0 %v1450
        %1549 = vmatpush1.bf16.msra.mxu0 %v1449
        %1550 = vmatprep.subr.bf16.mxu0 %v1454
        %1551 = vmatpush1.bf16.msra.mxu0 %v1453
        %1552 = vmatprep.subr.bf16.mxu0 %v1458
        %1553 = vmatpush1.bf16.msra.mxu0 %v1457
        %1554 = vmatprep.subr.bf16.mxu0 %v1462
        %1555 = vmatpush1.bf16.msra.mxu0 %v1461
        %1556 = vmatprep.subr.bf16.mxu0 %v1466
        %1557 = vmatpush1.bf16.msra.mxu0 %v1465
        %1558 = vmatprep.subr.bf16.mxu0 %v1470
        %1559 = vmatpush1.bf16.msra.mxu0 %v1469
        %1560 = vmatprep.subr.bf16.mxu0 0
        %1561 = vmatpush1.bf16.msra.mxu0 0
        %1562 = vmatprep.subr.bf16.mxu0 0
        %1563 = vmatpush1.bf16.msra.mxu0 0
        %1564 = vmatprep.subr.bf16.mxu0 0
        %1565 = vmatpush1.bf16.msra.mxu0 0
        %1566 = vmatprep.subr.bf16.mxu0 0
        %1567 = vmatpush1.bf16.msra.mxu0 0
        %1568 = vmatprep.subr.bf16.mxu0 0
        %1569 = vmatpush1.bf16.msra.mxu0 0
        %1570 = vmatprep.subr.bf16.mxu0 0
        %1571 = vmatpush1.bf16.msra.mxu0 0
        %1572 = vmatprep.subr.bf16.mxu0 0
        %1573 = vmatpush1.bf16.msra.mxu0 0
        %1574 = vmatprep.subr.bf16.mxu0 0
        %1575 = vmatpush1.bf16.msra.mxu0 0
        %1576 = vmatprep.mubr.bf16.mxu0 0
        %1577 = vmatmul.mubr.bf16.gmra.mrb[0].mxu0 %v1303
        %v1578 = vpop.f32.mrb[0].mxu0
        %v1579 = vadd.f32 0.0, %v1578
        %v1580 = vpop.f32.mrb[0].mxu0
        %v1581 = vadd.f32 0.0, %v1580
        %v1582 = vpop.f32.mrb[0].mxu0
        %v1583 = vpop.f32.mrb[0].mxu0
        %1584 = vdwg.mxu0
        %v1585 = vadd.f32 %v1307, %v1538
        %v1586 = vadd.f32 %v1308, %v1540
        %v1587 = vadd.f32 %v1309, %v1579
        %v1588 = vadd.f32 %v1310, %v1581
        %v1589 = vmul.f32 %v1585, 0.5
        %v1590 = vtanh.pop %v1589
        %v1591 = vmul.f32 %v1590, 0.5
        %v1592 = vadd.f32 %v1591, 0.5
        %v1593 = vmul.f32 %v1586, 0.5
        %v1594 = vtanh.pop %v1593
        %v1595 = vmul.f32 %v1594, 0.5
        %v1596 = vadd.f32 %v1595, 0.5
        %v1597 = vtanh.pop %v1587
        %v1598 = vmul.f32 %v1588, 0.5
        %v1599 = vtanh.pop %v1598
        %v1600 = vmul.f32 %v1599, 0.5
        %v1601 = vadd.f32 %v1600, 0.5
        %v1602 = vmul.f32 %v1596, %v1302
        %v1603 = vmul.f32 %v1592, %v1597
        %v1604 = vadd.f32 %v1602, %v1603
        %v1605 = vtanh.pop %v1604
        %v1606 = vmul.f32 %v1601, %v1605
        %s1607 = sadd.s32 %s986, 2
        %p1608 = scmp.lt.s32.totalorder %s1607, 10
        %s1609 = scalar_select %p1608, 1, 0
        %v1610 = vstv %s1609
        %vm1611 = vcmp.eq.s32.totalorder %v1610, 1
        %v1612 = vsel %vm1611, %v1606, %v1301
        %v1613 = vsel %vm1611, %v1604, %v1302
        %v1614 = vpack.c.bf16 %v1612, %v1612
        %s1615 = scalar_lea.vmem %s317, 8 [#allocation11]
        %1616 = vst [vmem:[%s1615] sm:$0xf] %v1614
        %s1617 = scalar_lea.vmem [#allocation4], 96
        %v1618 = vld [vmem:[%s1617] sm:$0xff]
        %v1619 = vld [vmem:[%s1617 + $0x8] sm:$0xff]
        %v1620 = vld [vmem:[%s1617 + $0x10] sm:$0xff]
        %v1621 = vld [vmem:[%s1617 + $0x18] sm:$0xff]
        %v1622 = vld [vmem:[#allocation10] sm:$0xff]
        %v1623 = vld [vmem:[#allocation10 + $0x8] sm:$0xff]
        %v1624 = vld [vmem:[#allocation10 + $0x10] sm:$0xff]
        %v1625 = vld [vmem:[#allocation10 + $0x18] sm:$0xff]
        %v1626 = vld [vmem:[#allocation10 + $0x20] sm:$0xff]
        %v1627 = vld [vmem:[#allocation10 + $0x28] sm:$0xff]
        %v1628 = vld [vmem:[#allocation10 + $0x30] sm:$0xff]
        %v1629 = vld [vmem:[#allocation10 + $0x38] sm:$0xff]
        %v1630 = vld [vmem:[#allocation10 + $0x40] sm:$0xff]
        %v1631 = vld [vmem:[#allocation10 + $0x48] sm:$0xff]
        %v1632 = vld [vmem:[#allocation10 + $0x50] sm:$0xff]
        %v1633 = vld [vmem:[#allocation10 + $0x58] sm:$0xff]
        %v1634 = vld [vmem:[#allocation10 + $0x60] sm:$0xff]
        %v1635 = vld [vmem:[#allocation10 + $0x68] sm:$0xff]
        %v1636 = vld [vmem:[#allocation10 + $0x70] sm:$0xff]
        %v1637 = vld [vmem:[#allocation10 + $0x78] sm:$0xff]
        %v1638 = vld [vmem:[#allocation10 + $0x80] sm:$0xff]
        %v1639 = vld [vmem:[#allocation10 + $0x88] sm:$0xff]
        %v1640 = vld [vmem:[#allocation10 + $0x90] sm:$0xff]
        %v1641 = vld [vmem:[#allocation10 + $0x98] sm:$0xff]
        %v1642 = vld [vmem:[#allocation10 + $0xa0] sm:$0xff]
        %v1643 = vld [vmem:[#allocation10 + $0xa8] sm:$0xff]
        %v1644 = vld [vmem:[#allocation10 + $0xb0] sm:$0xff]
        %v1645 = vld [vmem:[#allocation10 + $0xb8] sm:$0xff]
        %v1646 = vld [vmem:[#allocation10 + $0xc0] sm:$0xff]
        %v1647 = vld [vmem:[#allocation10 + $0xc8] sm:$0xff]
        %v1648 = vld [vmem:[#allocation10 + $0xd0] sm:$0xff]
        %v1649 = vld [vmem:[#allocation10 + $0xd8] sm:$0xff]
        %v1650 = vld [vmem:[#allocation10 + $0xe0] sm:$0xff]
        %v1651 = vld [vmem:[#allocation10 + $0xe8] sm:$0xff]
        %v1652 = vld [vmem:[#allocation10 + $0xf0] sm:$0xff]
        %v1653 = vld [vmem:[#allocation10 + $0xf8] sm:$0xff]
        %v1686 = vunpack.c.l.b16 %v1622
        %v1687 = vunpack.c.h.b16 %v1622
        %v1688 = vunpack.c.l.b16 %v1623
        %v1689 = vunpack.c.h.b16 %v1623
        %v1690 = vunpack.c.l.b16 %v1624
        %v1691 = vunpack.c.h.b16 %v1624
        %v1692 = vunpack.c.l.b16 %v1625
        %v1693 = vunpack.c.h.b16 %v1625
        %v1694 = vunpack.c.l.b16 %v1626
        %v1695 = vunpack.c.h.b16 %v1626
        %v1696 = vunpack.c.l.b16 %v1627
        %v1697 = vunpack.c.h.b16 %v1627
        %v1698 = vunpack.c.l.b16 %v1628
        %v1699 = vunpack.c.h.b16 %v1628
        %v1700 = vunpack.c.l.b16 %v1629
        %v1701 = vunpack.c.h.b16 %v1629
        %v1702 = vunpack.c.l.b16 %v1630
        %v1703 = vunpack.c.h.b16 %v1630
        %v1704 = vunpack.c.l.b16 %v1631
        %v1705 = vunpack.c.h.b16 %v1631
        %v1706 = vunpack.c.l.b16 %v1632
        %v1707 = vunpack.c.h.b16 %v1632
        %v1708 = vunpack.c.l.b16 %v1633
        %v1709 = vunpack.c.h.b16 %v1633
        %v1710 = vunpack.c.l.b16 %v1634
        %v1711 = vunpack.c.h.b16 %v1634
        %v1712 = vunpack.c.l.b16 %v1635
        %v1713 = vunpack.c.h.b16 %v1635
        %v1714 = vunpack.c.l.b16 %v1636
        %v1715 = vunpack.c.h.b16 %v1636
        %v1716 = vunpack.c.l.b16 %v1637
        %v1717 = vunpack.c.h.b16 %v1637
        %v1718 = vunpack.c.l.b16 %v1638
        %v1719 = vunpack.c.h.b16 %v1638
        %v1720 = vunpack.c.l.b16 %v1639
        %v1721 = vunpack.c.h.b16 %v1639
        %v1722 = vunpack.c.l.b16 %v1640
        %v1723 = vunpack.c.h.b16 %v1640
        %v1724 = vunpack.c.l.b16 %v1641
        %v1725 = vunpack.c.h.b16 %v1641
        %v1726 = vunpack.c.l.b16 %v1642
        %v1727 = vunpack.c.h.b16 %v1642
        %v1728 = vunpack.c.l.b16 %v1643
        %v1729 = vunpack.c.h.b16 %v1643
        %v1730 = vunpack.c.l.b16 %v1644
        %v1731 = vunpack.c.h.b16 %v1644
        %v1732 = vunpack.c.l.b16 %v1645
        %v1733 = vunpack.c.h.b16 %v1645
        %v1734 = vunpack.c.l.b16 %v1646
        %v1735 = vunpack.c.h.b16 %v1646
        %v1736 = vunpack.c.l.b16 %v1647
        %v1737 = vunpack.c.h.b16 %v1647
        %v1738 = vunpack.c.l.b16 %v1648
        %v1739 = vunpack.c.h.b16 %v1648
        %v1740 = vunpack.c.l.b16 %v1649
        %v1741 = vunpack.c.h.b16 %v1649
        %v1742 = vunpack.c.l.b16 %v1650
        %v1743 = vunpack.c.h.b16 %v1650
        %v1744 = vunpack.c.l.b16 %v1651
        %v1745 = vunpack.c.h.b16 %v1651
        %v1746 = vunpack.c.l.b16 %v1652
        %v1747 = vunpack.c.h.b16 %v1652
        %v1748 = vunpack.c.l.b16 %v1653
        %v1749 = vunpack.c.h.b16 %v1653
        %v1750 = vpack.c.b16 %v1690, %v1686
        %v1751 = vpack.c.b16 %v1691, %v1687
        %v1752 = vpack.c.b16 %v1692, %v1688
        %v1753 = vpack.c.b16 %v1693, %v1689
        %v1754 = vpack.c.b16 %v1698, %v1694
        %v1755 = vpack.c.b16 %v1699, %v1695
        %v1756 = vpack.c.b16 %v1700, %v1696
        %v1757 = vpack.c.b16 %v1701, %v1697
        %v1758 = vpack.c.b16 %v1706, %v1702
        %v1759 = vpack.c.b16 %v1707, %v1703
        %v1760 = vpack.c.b16 %v1708, %v1704
        %v1761 = vpack.c.b16 %v1709, %v1705
        %v1762 = vpack.c.b16 %v1714, %v1710
        %v1763 = vpack.c.b16 %v1715, %v1711
        %v1764 = vpack.c.b16 %v1716, %v1712
        %v1765 = vpack.c.b16 %v1717, %v1713
        %v1766 = vpack.c.b16 %v1722, %v1718
        %v1767 = vpack.c.b16 %v1723, %v1719
        %v1768 = vpack.c.b16 %v1724, %v1720
        %v1769 = vpack.c.b16 %v1725, %v1721
        %v1770 = vpack.c.b16 %v1730, %v1726
        %v1771 = vpack.c.b16 %v1731, %v1727
        %v1772 = vpack.c.b16 %v1732, %v1728
        %v1773 = vpack.c.b16 %v1733, %v1729
        %v1774 = vpack.c.b16 %v1738, %v1734
        %v1775 = vpack.c.b16 %v1739, %v1735
        %v1776 = vpack.c.b16 %v1740, %v1736
        %v1777 = vpack.c.b16 %v1741, %v1737
        %v1778 = vpack.c.b16 %v1746, %v1742
        %v1779 = vpack.c.b16 %v1747, %v1743
        %v1780 = vpack.c.b16 %v1748, %v1744
        %v1781 = vpack.c.b16 %v1749, %v1745
        %1814 = vmatprep.subr.bf16.mxu0 %v1751
        %1815 = vmatpush1.bf16.msra.mxu0 %v1750
        %1816 = vmatprep.subr.bf16.mxu0 %v1755
        %1817 = vmatpush1.bf16.msra.mxu0 %v1754
        %1818 = vmatprep.subr.bf16.mxu0 %v1759
        %1819 = vmatpush1.bf16.msra.mxu0 %v1758
        %1820 = vmatprep.subr.bf16.mxu0 %v1763
        %1821 = vmatpush1.bf16.msra.mxu0 %v1762
        %1822 = vmatprep.subr.bf16.mxu0 %v1767
        %1823 = vmatpush1.bf16.msra.mxu0 %v1766
        %1824 = vmatprep.subr.bf16.mxu0 %v1771
        %1825 = vmatpush1.bf16.msra.mxu0 %v1770
        %1826 = vmatprep.subr.bf16.mxu0 %v1775
        %1827 = vmatpush1.bf16.msra.mxu0 %v1774
        %1828 = vmatprep.subr.bf16.mxu0 %v1779
        %1829 = vmatpush1.bf16.msra.mxu0 %v1778
        %1830 = vmatprep.subr.bf16.mxu0 0
        %1831 = vmatpush1.bf16.msra.mxu0 0
        %1832 = vmatprep.subr.bf16.mxu0 0
        %1833 = vmatpush1.bf16.msra.mxu0 0
        %1834 = vmatprep.subr.bf16.mxu0 0
        %1835 = vmatpush1.bf16.msra.mxu0 0
        %1836 = vmatprep.subr.bf16.mxu0 0
        %1837 = vmatpush1.bf16.msra.mxu0 0
        %1838 = vmatprep.subr.bf16.mxu0 0
        %1839 = vmatpush1.bf16.msra.mxu0 0
        %1840 = vmatprep.subr.bf16.mxu0 0
        %1841 = vmatpush1.bf16.msra.mxu0 0
        %1842 = vmatprep.subr.bf16.mxu0 0
        %1843 = vmatpush1.bf16.msra.mxu0 0
        %1844 = vmatprep.subr.bf16.mxu0 0
        %1845 = vmatpush1.bf16.msra.mxu0 0
        %1846 = vmatprep.mubr.bf16.mxu0 0
        %1847 = vmatmul.mubr.bf16.gmra.mrb[0].mxu0 %v1614
        %v1848 = vpop.f32.mrb[0].mxu0
        %v1849 = vadd.f32 0.0, %v1848
        %v1850 = vpop.f32.mrb[0].mxu0
        %v1851 = vadd.f32 0.0, %v1850
        %v1852 = vpop.f32.mrb[0].mxu0
        %v1853 = vpop.f32.mrb[0].mxu0
        %1854 = vdwg.mxu0
        %1855 = vmatprep.subr.bf16.mxu0 %v1753
        %1856 = vmatpush1.bf16.msra.mxu0 %v1752
        %1857 = vmatprep.subr.bf16.mxu0 %v1757
        %1858 = vmatpush1.bf16.msra.mxu0 %v1756
        %1859 = vmatprep.subr.bf16.mxu0 %v1761
        %1860 = vmatpush1.bf16.msra.mxu0 %v1760
        %1861 = vmatprep.subr.bf16.mxu0 %v1765
        %1862 = vmatpush1.bf16.msra.mxu0 %v1764
        %1863 = vmatprep.subr.bf16.mxu0 %v1769
        %1864 = vmatpush1.bf16.msra.mxu0 %v1768
        %1865 = vmatprep.subr.bf16.mxu0 %v1773
        %1866 = vmatpush1.bf16.msra.mxu0 %v1772
        %1867 = vmatprep.subr.bf16.mxu0 %v1777
        %1868 = vmatpush1.bf16.msra.mxu0 %v1776
        %1869 = vmatprep.subr.bf16.mxu0 %v1781
        %1870 = vmatpush1.bf16.msra.mxu0 %v1780
        %1871 = vmatprep.subr.bf16.mxu0 0
        %1872 = vmatpush1.bf16.msra.mxu0 0
        %1873 = vmatprep.subr.bf16.mxu0 0
        %1874 = vmatpush1.bf16.msra.mxu0 0
        %1875 = vmatprep.subr.bf16.mxu0 0
        %1876 = vmatpush1.bf16.msra.mxu0 0
        %1877 = vmatprep.subr.bf16.mxu0 0
        %1878 = vmatpush1.bf16.msra.mxu0 0
        %1879 = vmatprep.subr.bf16.mxu0 0
        %1880 = vmatpush1.bf16.msra.mxu0 0
        %1881 = vmatprep.subr.bf16.mxu0 0
        %1882 = vmatpush1.bf16.msra.mxu0 0
        %1883 = vmatprep.subr.bf16.mxu0 0
        %1884 = vmatpush1.bf16.msra.mxu0 0
        %1885 = vmatprep.subr.bf16.mxu0 0
        %1886 = vmatpush1.bf16.msra.mxu0 0
        %1887 = vmatprep.mubr.bf16.mxu0 0
        %1888 = vmatmul.mubr.bf16.gmra.mrb[0].mxu0 %v1614
        %v1889 = vpop.f32.mrb[0].mxu0
        %v1890 = vadd.f32 0.0, %v1889
        %v1891 = vpop.f32.mrb[0].mxu0
        %v1892 = vadd.f32 0.0, %v1891
        %v1893 = vpop.f32.mrb[0].mxu0
        %v1894 = vpop.f32.mrb[0].mxu0
        %1895 = vdwg.mxu0
        %v1896 = vadd.f32 %v1618, %v1849
        %v1897 = vadd.f32 %v1619, %v1851
        %v1898 = vadd.f32 %v1620, %v1890
        %v1899 = vadd.f32 %v1621, %v1892
        %v1900 = vmul.f32 %v1896, 0.5
        %v1901 = vtanh.pop %v1900
        %v1902 = vmul.f32 %v1901, 0.5
        %v1903 = vadd.f32 %v1902, 0.5
        %v1904 = vmul.f32 %v1897, 0.5
        %v1905 = vtanh.pop %v1904
        %v1906 = vmul.f32 %v1905, 0.5
        %v1907 = vadd.f32 %v1906, 0.5
        %v1908 = vtanh.pop %v1898
        %v1909 = vmul.f32 %v1899, 0.5
        %v1910 = vtanh.pop %v1909
        %v1911 = vmul.f32 %v1910, 0.5
        %v1912 = vadd.f32 %v1911, 0.5
        %v1913 = vmul.f32 %v1907, %v1613
        %v1914 = vmul.f32 %v1903, %v1908
        %v1915 = vadd.f32 %v1913, %v1914
        %v1916 = vtanh.pop %v1915
        %v1917 = vmul.f32 %v1912, %v1916
        %s1918 = sadd.s32 %s986, 3
        %p1919 = scmp.lt.s32.totalorder %s1918, 10
        %s1920 = scalar_select %p1919, 1, 0
        %v1921 = vstv %s1920
        %vm1922 = vcmp.eq.s32.totalorder %v1921, 1
        %v1923 = vsel %vm1922, %v1917, %v1612
        %v1924 = vsel %vm1922, %v1915, %v1613
        %v1925 = vpack.c.bf16 %v1923, %v1923
        %s1926 = scalar_lea.vmem %s317, 12 [#allocation11]
        %1927 = vst [vmem:[%s1926] sm:$0xf] %v1925
        %1928 = vst [vmem:[#allocation2] sm:$0xff] %v1923
        %1929 = vst [vmem:[#allocation3] sm:$0xff] %v1924
        %p1930 = scmp.eq.s32.totalorder %s31, 2
        // Predicated region
        $region53: #{tpu_custom_call.1} parent=35 // pred_check
          %p1931 = pneg %p1930
        $region54: #{tpu_custom_call.1} parent=35 // pred_check_branch
          %1933 = sbr.rel (%p1931) target = $region56
        $region55: #{tpu_custom_call.1} parent=35 // pred_region
          %v1934 = vld [vmem:[#allocation2] sm:$0xff]
          %1935 = vst [vmem:[#allocation12] sm:$0xff] %v1934
          %v1936 = vld [vmem:[#allocation3] sm:$0xff]
          %1937 = vst [vmem:[#allocation14] sm:$0xff] %v1936
        $region56: #{tpu_custom_call.1} parent=35 // pred_fallthru
          _
        %s1938 = sand.u32 %s139, 1
        %s1939 = scalar_lea.sflag [#allocation7], %s1938
        %s1940 = sand.u32 %s139, 1
        %s1941 = smul.addr %s1940, 16
        %s1942 = scalar_lea.vmem [#allocation11], %s1941
        // Predicated region
        $region57: #{tpu_custom_call.1} parent=35 // pred_check
          %p1943 = pneg %p149
        $region58: #{tpu_custom_call.1} parent=35 // pred_check_branch
          %1945 = sbr.rel (%p1943) target = $region60
        $region59: #{tpu_custom_call.1} parent=35 // pred_region
          %s1946 = smul.u32 4, %s31
          %s1948 = ssub.s32 256, 256
          %1949 = vsyncadd %s1939, %s1948
          %s1950 = sadd.s32 %s30, %s1946
          %s1951 = smul.addr %s1950, 64
          %s1952 = scalar_lea.hbm %s4, %s1951
          %s1953 = sshll.u32 %s1942, 4
          %s1954 = int_to_ptr.vmem [resolvable:$true] %s1953
          %1959 = dma.vmem_to_hbm [thread:$0]  %s1954, 256, %s1952, %s1939, 64, 64, 4
        $region60: #{tpu_custom_call.1} parent=35 // pred_fallthru
          _
        // Predicated region
        $region61: #{tpu_custom_call.1} parent=35 // pred_check
          %p1960 = pneg %p175
        $region62: #{tpu_custom_call.1} parent=35 // pred_check_branch
          %1962 = sbr.rel (%p1960) target = $region64
        $region63: #{tpu_custom_call.1} parent=35 // pred_region
          %s1964 = ssub.s32 128, 128
          %1965 = vsyncadd [#allocation13], %s1964
          %s1966 = smul.addr %s30, 128
          %s1967 = scalar_lea.hbm %s5, %s1966
          %s1969 = sshll.u32 [#allocation12], 4
          %s1970 = int_to_ptr.vmem [resolvable:$true] %s1969
          %1972 = dma.vmem_to_hbm [thread:$0]  %s1970, 128, %s1967, [#allocation13]
        $region64: #{tpu_custom_call.1} parent=35 // pred_fallthru
          _
        // Predicated region
        $region65: #{tpu_custom_call.1} parent=35 // pred_check
          %p1973 = pneg %p201
        $region66: #{tpu_custom_call.1} parent=35 // pred_check_branch
          %1975 = sbr.rel (%p1973) target = $region68
        $region67: #{tpu_custom_call.1} parent=35 // pred_region
          %s1977 = ssub.s32 128, 128
          %1978 = vsyncadd [#allocation13], %s1977
          %s1979 = smul.addr %s30, 128
          %s1980 = scalar_lea.hbm %s6, %s1979
          %s1982 = sshll.u32 [#allocation14], 4
          %s1983 = int_to_ptr.vmem [resolvable:$true] %s1982
          %1985 = dma.vmem_to_hbm [thread:$0]  %s1983, 128, %s1980, [#allocation13]
        $region68: #{tpu_custom_call.1} parent=35 // pred_fallthru
          _
        // Predicated region
        $region69: #{tpu_custom_call.1} parent=35 // pred_check
          %p1986 = pneg %p175
        $region70: #{tpu_custom_call.1} parent=35 // pred_check_branch
          %1988 = sbr.rel (%p1986) target = $region72
        $region71: #{tpu_custom_call.1} parent=35 // pred_region
          %1989 = dma.done [#allocation13], 128
        $region72: #{tpu_custom_call.1} parent=35 // pred_fallthru
          _
        // Predicated region
        $region73: #{tpu_custom_call.1} parent=35 // pred_check
          %p1990 = pneg %p201
        $region74: #{tpu_custom_call.1} parent=35 // pred_check_branch
          %1992 = sbr.rel (%p1990) target = $region76
        $region75: #{tpu_custom_call.1} parent=35 // pred_region
          %1993 = dma.done [#allocation13], 128
        $region76: #{tpu_custom_call.1} parent=35 // pred_fallthru
          _
      $region36: #{tpu_custom_call.1} parent=5 // pred_fallthru
        _
      %p1994 = scmp.le.s32.totalorder 2, %s21
      // Predicated region
      $region77: #{tpu_custom_call.1} parent=5 // pred_check
        %p1995 = pneg %p1994
      $region78: #{tpu_custom_call.1} parent=5 // pred_check_branch
        %1997 = sbr.rel (%p1995) target = $region80
      $region79: #{tpu_custom_call.1} parent=5 // pred_region
        %s1998 = ssub.s32 %s21, 2
        // Predicated region
        $region81: #{tpu_custom_call.1} parent=79 // pred_check
          %p1999 = pneg %p155
        $region82: #{tpu_custom_call.1} parent=79 // pred_check_branch
          %2001 = sbr.rel (%p1999) target = $region84
        $region83: #{tpu_custom_call.1} parent=79 // pred_region
          %s2002 = sand.u32 %s140, 1
          %s2003 = scalar_lea.sflag [#allocation7], %s2002
          %s2004 = sand.u32 %s140, 1
          %s2005 = smul.addr %s2004, 16
          %s2006 = scalar_lea.vmem [#allocation11], %s2005
          %2007 = dma.done %s2003, 256
        $region84: #{tpu_custom_call.1} parent=79 // pred_fallthru
          _
      $region80: #{tpu_custom_call.1} parent=5 // pred_fallthru
        _
    $region6: #{tpu_custom_call.1} parent=1 // loop_footer
      %s25 = sadd.s32 1, %s21
    $region7: #{tpu_custom_call.1} parent=1 // loop_footer_branch
      %20 = sbr.rel target = $region3
    $region8: #{tpu_custom_call.1} parent=1 // loop_exit
      _
    %2008 = vsyncpa [#allocation6], 1
    %s2009 = scalar_lea.sflag [#allocation6], 1
    %2010 = vsyncpa %s2009, 1
    %2011 = vsyncpa [#allocation9], 1
    %2012 = vsyncpa [#allocation7], 1
    %s2013 = scalar_lea.sflag [#allocation7], 1
    %2014 = vsyncpa %s2013, 1
    %2015 = vsyncpa [#allocation13], 1

</llo_original>
